<compile_context>
chip_gen: v5e
topology: v5e:2x2
jax: 0.10.0
libtpu: 0.0.40
codegen_flags: <defaults>
</compile_context>

<pallas_src>
import functools

import jax
import jax.numpy as jnp
import numpy as np
from jax import lax
from jax.experimental import pallas as pl
from jax.experimental.pallas import tpu as pltpu


def _hardswish(x):
    return x * jnp.clip(x + 3.0, 0.0, 6.0) * (1.0 / 6.0)


# ----------------------------------------------------------------------------
# Fused Block kernel (1x1 expand -> 3x3 depthwise -> CA -> 1x1 project + res)
# ----------------------------------------------------------------------------
def _block_kernel(x_ref, wexp_ref, wproj_ref, w1_ref, ww_ref, p_ref, o_ref, *,
                  H, W, C_exp, C_out, K, mip, B_blk, apply_residual):
    WC = W * C_exp
    # Packed-parameter row offsets (must match pack_block_params).
    ROW_B_EXP = 0
    ROW_B_DW = 1
    ROW_TAPS = 2
    ROW_W1 = ROW_TAPS + K * K
    ROW_WH = ROW_W1 + mip
    ROW_BH = ROW_WH + mip
    ROW_BW = ROW_BH + 1
    ROW_CAB = ROW_BW + 1
    ROW_BPROJ = ROW_CAB + 1

    b_exp_cat = p_ref[ROW_B_EXP:ROW_B_EXP + 1, :]            # (1, 3*WC)
    b_dw = p_ref[ROW_B_DW:ROW_B_DW + 1, :WC]                 # (1, WC)
    bh_row = p_ref[ROW_BH:ROW_BH + 1, :WC]
    bw_row = p_ref[ROW_BW:ROW_BW + 1, :WC]
    ca_bias_row = p_ref[ROW_CAB:ROW_CAB + 1, :W * mip]       # (1, W*mip)
    b_proj = p_ref[ROW_BPROJ:ROW_BPROJ + 1, :W * C_out]      # (1, W*C_out)

    # H-shift matrices for the depthwise conv (built once from iota, MXU lhs):
    #   s_dn @ v  ->  out[h] = v[h-1] (zero at h=0);  s_up @ v -> out[h] = v[h+1]
    r_i = lax.broadcasted_iota(jnp.int32, (H, H), 0)
    c_i = lax.broadcasted_iota(jnp.int32, (H, H), 1)
    s_dn = (c_i + 1 == r_i).astype(jnp.float32)
    s_up = (c_i == r_i + 1).astype(jnp.float32)

    w_dtype = wexp_ref.dtype
    inv_w = 1.0 / W

    for b in range(B_blk):                                   # unrolled (1 or 2)
        x_b = x_ref[b]                                       # (H, W*C_in) lane-dense

        # -- 1) 1x1 expand + folded BN + Hardswish.  The combined weight also
        #       emits the two W-shifted ('same'-padded) copies needed by the
        #       depthwise conv -> no roll / lane concat anywhere.
        ye3 = jnp.dot(x_b.astype(w_dtype), wexp_ref[...],
                      preferred_element_type=jnp.float32)    # (H, 3*WC)
        ye3 = _hardswish(ye3 + b_exp_cat)
        ye_m = ye3[:, 0:WC]            # taps reading x(w-1)
        ye_c = ye3[:, WC:2 * WC]       # taps reading x(w)
        ye_p = ye3[:, 2 * WC:]         # taps reading x(w+1)

        # -- 2) 3x3 depthwise conv (BN scale folded into taps); per-kh row sums
        #       on the VPU, the two H shifts on the MXU.
        def row_sum(kh):
            t = ROW_TAPS + kh * K
            return (ye_m * p_ref[t:t + 1, :WC] +
                    ye_c * p_ref[t + 1:t + 2, :WC] +
                    ye_p * p_ref[t + 2:t + 3, :WC])

        acc = row_sum(1)
        acc = acc + jnp.dot(s_dn, row_sum(0), preferred_element_type=jnp.float32)
        acc = acc + jnp.dot(s_up, row_sum(2), preferred_element_type=jnp.float32)
        yd = _hardswish(acc + b_dw)                          # (H, WC) lane-dense

        # -- 3) Coordinate Attention.
        # h-path: the mean over W is folded into the full-lane reduction with
        # W-tiled conv1 weights (mip rows); tiny, stays on VPU/XLU.
        ah_logit = bh_row
        for m in range(mip):
            w1_m = p_ref[ROW_W1 + m:ROW_W1 + m + 1, :WC]
            zh = jnp.sum(yd * w1_m, axis=-1, keepdims=True) * inv_w      # (H,1)
            gh = _hardswish(zh + p_ref[ROW_CAB:ROW_CAB + 1, m:m + 1])
            ah_logit = ah_logit + gh * p_ref[ROW_WH + m:ROW_WH + m + 1, :WC]
        a_h = jax.nn.sigmoid(ah_logit)                       # (H, WC)

        # w-path: mean over H (sublane reduce) + per-w-group 1x1 convs as
        # block-diagonal matmuls -> stays lane-dense, no relayout.
        pool_w = jnp.mean(yd, axis=0, keepdims=True)         # (1, WC)
        zw = jnp.dot(pool_w.astype(w_dtype), w1_ref[...],
                     preferred_element_type=jnp.float32)     # (1, W*mip)
        gw = _hardswish(zw + ca_bias_row)
        a_w = jax.nn.sigmoid(
            jnp.dot(gw.astype(w_dtype), ww_ref[...],
                    preferred_element_type=jnp.float32) + bw_row)        # (1, WC)

        yg = yd * a_h * a_w                                  # gated activation

        # -- 4) 1x1 project (BN scale folded into weights) + residual.
        out = jnp.dot(yg.astype(w_dtype), wproj_ref[...],
                      preferred_element_type=jnp.float32) + b_proj
        if apply_residual:
            out = out + x_b                                  # resident input tile
        o_ref[b] = out.astype(o_ref.dtype)                   # lane-dense store (W*C_out)


# ----------------------------------------------------------------------------
# Parameter packing: fold BN into weights, build block-diagonal / W-tiled
# matrices so the kernel works entirely in the lane-dense (H, W*C) layout.
# ----------------------------------------------------------------------------
def pack_block_params(p, H, W, weight_dtype=jnp.float32):
    del H
    C_in, C_exp = p["w_exp"].shape
    C_out = p["w_proj"].shape[1]
    K = p["w_dw"].shape[0]
    mip = p["w1"].shape[1]
    WC = W * C_exp
    f32 = jnp.float32
    eye = jnp.eye(W, dtype=f32)

    # 1x1 expand (BN scale folded) + the two W-shifted copies for the depthwise.
    we_s = p["w_exp"] * p["s_exp"]
    w_exp_cat = jnp.concatenate(
        [jnp.kron(jnp.eye(W, k=1, dtype=f32), we_s),     # produces x(w-1) copy
         jnp.kron(eye, we_s),                            # x(w)
         jnp.kron(jnp.eye(W, k=-1, dtype=f32), we_s)],   # x(w+1)
        axis=1)                                          # (W*C_in, 3*WC)
    b_exp_c = jnp.tile(p["b_exp"], (1, W))
    m_left = jnp.repeat((jnp.arange(W) >= 1).astype(f32), C_exp)[None, :]
    m_right = jnp.repeat((jnp.arange(W) <= W - 2).astype(f32), C_exp)[None, :]
    b_exp_cat = jnp.concatenate([b_exp_c * m_left, b_exp_c, b_exp_c * m_right],
                                axis=1)                  # (1, 3*WC)

    # Depthwise taps with BN scale folded, tiled across W.
    taps = (p["w_dw"] * p["s_dw"][0]).reshape(K * K, 1, C_exp)
    taps_rep = jnp.tile(taps, (1, W, 1)).reshape(K * K, WC)
    b_dw_rep = jnp.tile(p["b_dw"], (1, W))

    # Coordinate attention (bn1 scale folded into conv1).
    w1_fold = p["w1"] * p["s_ca"]                        # (C_exp, mip)
    ca_bias = p["b1"] * p["s_ca"] + p["t_ca"]            # (1, mip)
    w1_rows = jnp.tile(w1_fold.T, (1, W))                # (mip, WC)   h-path
    w1_bd = jnp.kron(eye, w1_fold)                       # (WC, W*mip) w-path
    ww_bd = jnp.kron(eye, p["ww"])                       # (W*mip, WC)
    wh_rows = jnp.tile(p["wh"], (1, W))                  # (mip, WC)
    bh_rep = jnp.tile(p["bh"], (1, W))
    bw_rep = jnp.tile(p["bw"], (1, W))
    ca_bias_rep = jnp.tile(ca_bias, (1, W))              # (1, W*mip)

    # 1x1 project (BN scale folded).
    w_proj_bd = jnp.kron(eye, p["w_proj"] * p["s_proj"])  # (WC, W*C_out)
    b_proj_rep = jnp.tile(p["b_proj"], (1, W))

    def padw(a):
        return jnp.pad(a, ((0, 0), (0, 3 * WC - a.shape[1])))

    p_big = jnp.concatenate(
        [b_exp_cat,            # row 0
         padw(b_dw_rep),       # row 1
         padw(taps_rep),       # rows 2 .. 2+K*K-1
         padw(w1_rows),        # mip rows
         padw(wh_rows),        # mip rows
         padw(bh_rep),
         padw(bw_rep),
         padw(ca_bias_rep),
         padw(b_proj_rep)],
        axis=0).astype(jnp.float32)

    return {
        "w_exp_cat": w_exp_cat.astype(weight_dtype),
        "w_proj_bd": w_proj_bd.astype(weight_dtype),
        "w1_bd": w1_bd.astype(weight_dtype),
        "ww_bd": ww_bd.astype(weight_dtype),
        "p_big": p_big,
    }


@functools.partial(jax.jit,
                   static_argnames=("kernel_size", "apply_residual",
                                    "images_per_step"))
def block_forward(x, packed, *, kernel_size=3, apply_residual=True,
                  images_per_step=None):
    N, H, W, C_in = x.shape
    C_exp = packed["w_exp_cat"].shape[1] // (3 * W)
    C_out = packed["w_proj_bd"].shape[1] // W
    mip = packed["w1_bd"].shape[1] // W
    K = kernel_size
    rows = packed["p_big"].shape[0]
    if apply_residual and C_in != C_out:
        raise ValueError("residual connection requires C_in == C_out")

    if images_per_step is None:
        # >=2 grid steps so both v7x TensorCores get work; on single-TC chips
        # (v5e / v6e) pass images_per_step=N to fold the batch into one step.
        images_per_step = N // 2 if (N % 2 == 0 and N >= 2) else N
    assert N % images_per_step == 0
    steps = N // images_per_step
    B_blk = images_per_step

    x_flat = x.reshape(N, H, W * C_in)          # lane-dense HBM layout

    kernel = functools.partial(
        _block_kernel, H=H, W=W, C_exp=C_exp, C_out=C_out, K=K, mip=mip,
        B_blk=B_blk, apply_residual=apply_residual)

    out = pl.pallas_call(
        kernel,
        out_shape=jax.ShapeDtypeStruct((N, H, W * C_out), x.dtype),
        grid=(steps,),
        in_specs=[
            pl.BlockSpec((B_blk, H, W * C_in), lambda s: (s, 0, 0)),     # x
            pl.BlockSpec((W * C_in, 3 * W * C_exp), lambda s: (0, 0)),   # expand (+shift) w
            pl.BlockSpec((W * C_exp, W * C_out), lambda s: (0, 0)),      # project w
            pl.BlockSpec((W * C_exp, W * mip), lambda s: (0, 0)),        # CA conv1 (w-path)
            pl.BlockSpec((W * mip, W * C_exp), lambda s: (0, 0)),        # CA conv_w
            pl.BlockSpec((rows, 3 * W * C_exp), lambda s: (0, 0)),       # packed params
        ],
        out_specs=pl.BlockSpec((B_blk, H, W * C_out), lambda s: (s, 0, 0)),
        compiler_params=pltpu.CompilerParams(
            dimension_semantics=("parallel",)),
    )(x_flat, packed["w_exp_cat"], packed["w_proj_bd"],
      packed["w1_bd"], packed["ww_bd"], packed["p_big"])
    return out.reshape(N, H, W, C_out)


# ----------------------------------------------------------------------------
# Pure-JAX reference (same math, XLA ops, HIGHEST precision) for verification
# ----------------------------------------------------------------------------
def block_reference(x, p, K=3):
    def hs(v):
        return v * jnp.clip(v + 3.0, 0.0, 6.0) / 6.0

    N, H, W, _ = x.shape
    y = jnp.einsum("nhwc,co->nhwo", x, p["w_exp"],
                   precision=jax.lax.Precision.HIGHEST) * p["s_exp"] + p["b_exp"]
    y = hs(y)
    xp = jnp.pad(y, ((0, 0), (1, 1), (1, 1), (0, 0)))
    acc = jnp.zeros_like(y)
    for kh in range(K):
        for kw in range(K):
            acc = acc + xp[:, kh:kh + H, kw:kw + W, :] * p["w_dw"][kh, kw]
    y = hs(acc * p["s_dw"] + p["b_dw"])
    ph = jnp.mean(y, axis=2)                       # (N,H,C)
    pw = jnp.mean(y, axis=1)                       # (N,W,C)
    z = jnp.concatenate([ph, pw], axis=1)          # (N,H+W,C)
    z = jnp.einsum("nlc,cm->nlm", z, p["w1"],
                   precision=jax.lax.Precision.HIGHEST) + p["b1"]
    z = hs(z * p["s_ca"] + p["t_ca"])
    zh, zw = z[:, :H], z[:, H:]
    a_h = jax.nn.sigmoid(jnp.einsum("nhm,mc->nhc", zh, p["wh"],
                                    precision=jax.lax.Precision.HIGHEST) + p["bh"])
    a_w = jax.nn.sigmoid(jnp.einsum("nwm,mc->nwc", zw, p["ww"],
                                    precision=jax.lax.Precision.HIGHEST) + p["bw"])
    y = y * a_h[:, :, None, :] * a_w[:, None, :, :]
    out = jnp.einsum("nhwc,co->nhwo", y, p["w_proj"],
                     precision=jax.lax.Precision.HIGHEST) * p["s_proj"] + p["b_proj"]
    return out + x


def make_params(key, C_in, C_exp, C_out, K, mip):
    ks = list(jax.random.split(key, 16))

    def bn_fold(k, c, eps):
        k1, k2, k3, k4 = jax.random.split(k, 4)
        gamma = 1.0 + 0.1 * jax.random.normal(k1, (c,), jnp.float32)
        beta = 0.1 * jax.random.normal(k2, (c,), jnp.float32)
        mean = 0.1 * jax.random.normal(k3, (c,), jnp.float32)
        var = jax.random.uniform(k4, (c,), jnp.float32, 0.5, 1.5)
        scale = gamma / jnp.sqrt(var + eps)
        bias = beta - mean * scale
        return scale.reshape(1, c), bias.reshape(1, c)

    p = {}
    p["w_exp"] = 0.2 * jax.random.normal(ks[0], (C_in, C_exp), jnp.float32)
    p["s_exp"], p["b_exp"] = bn_fold(ks[1], C_exp, 0.01)       # Stem BN eps=0.01
    p["w_dw"] = 0.2 * jax.random.normal(ks[2], (K, K, C_exp), jnp.float32)
    p["s_dw"], p["b_dw"] = bn_fold(ks[3], C_exp, 0.01)
    # CA params (conv1 bias=True, bn1 eps=1e-5 (PyTorch default), conv_h/w bias=True)
    p["w1"] = 0.2 * jax.random.normal(ks[4], (C_exp, mip), jnp.float32)
    p["b1"] = 0.1 * jax.random.normal(ks[5], (1, mip), jnp.float32)
    p["s_ca"], p["t_ca"] = bn_fold(ks[6], mip, 1e-5)
    p["wh"] = 0.2 * jax.random.normal(ks[7], (mip, C_exp), jnp.float32)
    p["bh"] = 0.1 * jax.random.normal(ks[8], (1, C_exp), jnp.float32)
    p["ww"] = 0.2 * jax.random.normal(ks[9], (mip, C_exp), jnp.float32)
    p["bw"] = 0.1 * jax.random.normal(ks[10], (1, C_exp), jnp.float32)
    p["w_proj"] = 0.2 * jax.random.normal(ks[11], (C_exp, C_out), jnp.float32)
    p["s_proj"], p["b_proj"] = bn_fold(ks[12], C_out, 0.01)
    return p


if __name__ == "__main__":
    # BlockConfig(in=16, exp_ratio=2, out=16, k=3, stride=1, dilation=1, 'HS', use_se=True)
    N, H, W = 2, 16, 16
    C_in, C_exp, C_out, K = 16, 32, 16, 3
    mip = C_exp // 16  # CA reduction=16

    key = jax.random.PRNGKey(0)
    kx, kp = jax.random.split(key)
    x = jax.random.normal(kx, (N, H, W, C_in), jnp.float32)   # NHWC (channels-last)
    raw = make_params(kp, C_in, C_exp, C_out, K, mip)
    ref = np.asarray(jax.block_until_ready(block_reference(x, raw, K=K)))

    # f32 MXU operands (works/accurate on all generations): tight check.
    packed_f32 = pack_block_params(raw, H, W, weight_dtype=jnp.float32)
    out = jax.block_until_ready(block_forward(x, packed_f32))
    np.testing.assert_allclose(np.asarray(out), ref, rtol=2e-2, atol=3e-3)

    # bf16 MXU operands (recommended on v6e/v7x; elementwise stages stay f32).
    packed_bf16 = pack_block_params(raw, H, W, weight_dtype=jnp.bfloat16)
    out_bf16 = jax.block_until_ready(block_forward(x, packed_bf16))
    np.testing.assert_allclose(np.asarray(out_bf16), ref, rtol=5e-2, atol=5e-2)

    print("KERNEL_OK")
</pallas_src>

<mosaic_0001>
module attributes {stable_mosaic.version = 11 : i64} {
  func.func @_block_kernel(%arg0: i32, %arg1: memref<1x16x256xf32, #tpu.memory_space<vmem>>, %arg2: memref<256x1536xf32, #tpu.memory_space<vmem>>, %arg3: memref<512x256xf32, #tpu.memory_space<vmem>>, %arg4: memref<512x32xf32, #tpu.memory_space<vmem>>, %arg5: memref<32x512xf32, #tpu.memory_space<vmem>>, %arg6: memref<19x1536xf32, #tpu.memory_space<vmem>>, %arg7: memref<1x16x256xf32, #tpu.memory_space<vmem>>) attributes {dimension_semantics = [#tpu.dimension_semantics<parallel>], iteration_bounds = array<i64: 2>, scalar_prefetch = 0 : i64, scratch_operands = 0 : i64, tpu.core_type = #tpu.core_type<tc>, window_params = [{transform_indices = @transform_0, window_bounds = array<i64: 1, 16, 256>}, {pipeline_mode = #tpu.pipeline_mode<synchronous>, transform_indices = @transform_1, window_bounds = array<i64: 256, 1536>}, {pipeline_mode = #tpu.pipeline_mode<synchronous>, transform_indices = @transform_2, window_bounds = array<i64: 512, 256>}, {pipeline_mode = #tpu.pipeline_mode<synchronous>, transform_indices = @transform_3, window_bounds = array<i64: 512, 32>}, {pipeline_mode = #tpu.pipeline_mode<synchronous>, transform_indices = @transform_4, window_bounds = array<i64: 32, 512>}, {pipeline_mode = #tpu.pipeline_mode<synchronous>, transform_indices = @transform_5, window_bounds = array<i64: 19, 1536>}, {transform_indices = @transform_6, window_bounds = array<i64: 1, 16, 256>}]} {
    %c0 = arith.constant 0 : index
    %c0_0 = arith.constant 0 : index
    %0 = vector.load %arg6[%c0, %c0_0] : memref<19x1536xf32, #tpu.memory_space<vmem>>, vector<1x1536xf32>
    %c1 = arith.constant 1 : index
    %c0_1 = arith.constant 0 : index
    %1 = vector.load %arg6[%c1, %c0_1] : memref<19x1536xf32, #tpu.memory_space<vmem>>, vector<1x512xf32>
    %c15 = arith.constant 15 : index
    %c0_2 = arith.constant 0 : index
    %2 = vector.load %arg6[%c15, %c0_2] : memref<19x1536xf32, #tpu.memory_space<vmem>>, vector<1x512xf32>
    %c16 = arith.constant 16 : index
    %c0_3 = arith.constant 0 : index
    %3 = vector.load %arg6[%c16, %c0_3] : memref<19x1536xf32, #tpu.memory_space<vmem>>, vector<1x512xf32>
    %c17 = arith.constant 17 : index
    %c0_4 = arith.constant 0 : index
    %4 = vector.load %arg6[%c17, %c0_4] : memref<19x1536xf32, #tpu.memory_space<vmem>>, vector<1x32xf32>
    %c18 = arith.constant 18 : index
    %c0_5 = arith.constant 0 : index
    %5 = vector.load %arg6[%c18, %c0_5] : memref<19x1536xf32, #tpu.memory_space<vmem>>, vector<1x256xf32>
    %6 = tpu.iota {dimensions = array<i32: 0>} : vector<16x16xi32>
    %7 = tpu.iota {dimensions = array<i32: 1>} : vector<16x16xi32>
    %c1_i32 = arith.constant 1 : i32
    %8 = vector.broadcast %c1_i32 : i32 to vector<16x16xi32>
    %9 = arith.addi %7, %8 : vector<16x16xi32>
    %10 = arith.cmpi eq, %9, %6 : vector<16x16xi32>
    %11 = arith.extui %10 : vector<16x16xi1> to vector<16x16xi32>
    %12 = arith.sitofp %11 : vector<16x16xi32> to vector<16x16xf32>
    %c1_i32_6 = arith.constant 1 : i32
    %13 = vector.broadcast %c1_i32_6 : i32 to vector<16x16xi32>
    %14 = arith.addi %6, %13 : vector<16x16xi32>
    %15 = arith.cmpi eq, %7, %14 : vector<16x16xi32>
    %16 = arith.extui %15 : vector<16x16xi1> to vector<16x16xi32>
    %17 = arith.sitofp %16 : vector<16x16xi32> to vector<16x16xf32>
    %c0_7 = arith.constant 0 : index
    %c0_8 = arith.constant 0 : index
    %c0_9 = arith.constant 0 : index
    %18 = vector.load %arg1[%c0_7, %c0_8, %c0_9] : memref<1x16x256xf32, #tpu.memory_space<vmem>>, vector<1x16x256xf32>
    %19 = vector.shape_cast %18 : vector<1x16x256xf32> to vector<16x256xf32>
    %c0_10 = arith.constant 0 : index
    %c0_11 = arith.constant 0 : index
    %20 = vector.load %arg2[%c0_10, %c0_11] : memref<256x1536xf32, #tpu.memory_space<vmem>>, vector<256x1536xf32>
    %cst = arith.constant dense<0.000000e+00> : vector<16x1536xf32>
    %21 = tpu.matmul %19, %20, %cst {dimension_numbers = #tpu.dot_dimension_numbers<[1], [0], [0], [1], [0, 0, 1, 1], [], []>} : vector<16x256xf32>, vector<256x1536xf32>, vector<16x1536xf32> -> vector<16x1536xf32>
    %22 = vector.broadcast %0 : vector<1x1536xf32> to vector<16x1536xf32>
    %23 = arith.addf %21, %22 : vector<16x1536xf32>
    %cst_12 = arith.constant 3.000000e+00 : f32
    %24 = vector.broadcast %cst_12 : f32 to vector<16x1536xf32>
    %25 = arith.addf %23, %24 : vector<16x1536xf32>
    %cst_13 = arith.constant 0.000000e+00 : f32
    %cst_14 = arith.constant 6.000000e+00 : f32
    %26 = vector.broadcast %cst_13 : f32 to vector<16x1536xf32>
    %27 = arith.maximumf %26, %25 : vector<16x1536xf32>
    %28 = vector.broadcast %cst_14 : f32 to vector<16x1536xf32>
    %29 = arith.minimumf %28, %27 : vector<16x1536xf32>
    %30 = arith.mulf %23, %29 : vector<16x1536xf32>
    %cst_15 = arith.constant 0.166666672 : f32
    %31 = vector.broadcast %cst_15 : f32 to vector<16x1536xf32>
    %32 = arith.mulf %30, %31 : vector<16x1536xf32>
    %33 = vector.extract_strided_slice %32 {offsets = [0, 0], sizes = [16, 512], strides = [1, 1]} : vector<16x1536xf32> to vector<16x512xf32>
    %34 = vector.extract_strided_slice %32 {offsets = [0, 512], sizes = [16, 512], strides = [1, 1]} : vector<16x1536xf32> to vector<16x512xf32>
    %35 = vector.extract_strided_slice %32 {offsets = [0, 1024], sizes = [16, 512], strides = [1, 1]} : vector<16x1536xf32> to vector<16x512xf32>
    %c5 = arith.constant 5 : index
    %c0_16 = arith.constant 0 : index
    %36 = vector.load %arg6[%c5, %c0_16] : memref<19x1536xf32, #tpu.memory_space<vmem>>, vector<1x512xf32>
    %37 = vector.broadcast %36 : vector<1x512xf32> to vector<16x512xf32>
    %38 = arith.mulf %33, %37 : vector<16x512xf32>
    %c6 = arith.constant 6 : index
    %c0_17 = arith.constant 0 : index
    %39 = vector.load %arg6[%c6, %c0_17] : memref<19x1536xf32, #tpu.memory_space<vmem>>, vector<1x512xf32>
    %40 = vector.broadcast %39 : vector<1x512xf32> to vector<16x512xf32>
    %41 = arith.mulf %34, %40 : vector<16x512xf32>
    %42 = arith.addf %38, %41 : vector<16x512xf32>
    %c7 = arith.constant 7 : index
    %c0_18 = arith.constant 0 : index
    %43 = vector.load %arg6[%c7, %c0_18] : memref<19x1536xf32, #tpu.memory_space<vmem>>, vector<1x512xf32>
    %44 = vector.broadcast %43 : vector<1x512xf32> to vector<16x512xf32>
    %45 = arith.mulf %35, %44 : vector<16x512xf32>
    %46 = arith.addf %42, %45 : vector<16x512xf32>
    %c2 = arith.constant 2 : index
    %c0_19 = arith.constant 0 : index
    %47 = vector.load %arg6[%c2, %c0_19] : memref<19x1536xf32, #tpu.memory_space<vmem>>, vector<1x512xf32>
    %48 = vector.broadcast %47 : vector<1x512xf32> to vector<16x512xf32>
    %49 = arith.mulf %33, %48 : vector<16x512xf32>
    %c3 = arith.constant 3 : index
    %c0_20 = arith.constant 0 : index
    %50 = vector.load %arg6[%c3, %c0_20] : memref<19x1536xf32, #tpu.memory_space<vmem>>, vector<1x512xf32>
    %51 = vector.broadcast %50 : vector<1x512xf32> to vector<16x512xf32>
    %52 = arith.mulf %34, %51 : vector<16x512xf32>
    %53 = arith.addf %49, %52 : vector<16x512xf32>
    %c4 = arith.constant 4 : index
    %c0_21 = arith.constant 0 : index
    %54 = vector.load %arg6[%c4, %c0_21] : memref<19x1536xf32, #tpu.memory_space<vmem>>, vector<1x512xf32>
    %55 = vector.broadcast %54 : vector<1x512xf32> to vector<16x512xf32>
    %56 = arith.mulf %35, %55 : vector<16x512xf32>
    %57 = arith.addf %53, %56 : vector<16x512xf32>
    %cst_22 = arith.constant dense<0.000000e+00> : vector<16x512xf32>
    %58 = tpu.matmul %12, %57, %cst_22 {dimension_numbers = #tpu.dot_dimension_numbers<[1], [0], [0], [1], [0, 0, 1, 1], [], []>} : vector<16x16xf32>, vector<16x512xf32>, vector<16x512xf32> -> vector<16x512xf32>
    %59 = arith.addf %46, %58 : vector<16x512xf32>
    %c8 = arith.constant 8 : index
    %c0_23 = arith.constant 0 : index
    %60 = vector.load %arg6[%c8, %c0_23] : memref<19x1536xf32, #tpu.memory_space<vmem>>, vector<1x512xf32>
    %61 = vector.broadcast %60 : vector<1x512xf32> to vector<16x512xf32>
    %62 = arith.mulf %33, %61 : vector<16x512xf32>
    %c9 = arith.constant 9 : index
    %c0_24 = arith.constant 0 : index
    %63 = vector.load %arg6[%c9, %c0_24] : memref<19x1536xf32, #tpu.memory_space<vmem>>, vector<1x512xf32>
    %64 = vector.broadcast %63 : vector<1x512xf32> to vector<16x512xf32>
    %65 = arith.mulf %34, %64 : vector<16x512xf32>
    %66 = arith.addf %62, %65 : vector<16x512xf32>
    %c10 = arith.constant 10 : index
    %c0_25 = arith.constant 0 : index
    %67 = vector.load %arg6[%c10, %c0_25] : memref<19x1536xf32, #tpu.memory_space<vmem>>, vector<1x512xf32>
    %68 = vector.broadcast %67 : vector<1x512xf32> to vector<16x512xf32>
    %69 = arith.mulf %35, %68 : vector<16x512xf32>
    %70 = arith.addf %66, %69 : vector<16x512xf32>
    %cst_26 = arith.constant dense<0.000000e+00> : vector<16x512xf32>
    %71 = tpu.matmul %17, %70, %cst_26 {dimension_numbers = #tpu.dot_dimension_numbers<[1], [0], [0], [1], [0, 0, 1, 1], [], []>} : vector<16x16xf32>, vector<16x512xf32>, vector<16x512xf32> -> vector<16x512xf32>
    %72 = arith.addf %59, %71 : vector<16x512xf32>
    %73 = vector.broadcast %1 : vector<1x512xf32> to vector<16x512xf32>
    %74 = arith.addf %72, %73 : vector<16x512xf32>
    %cst_27 = arith.constant 3.000000e+00 : f32
    %75 = vector.broadcast %cst_27 : f32 to vector<16x512xf32>
    %76 = arith.addf %74, %75 : vector<16x512xf32>
    %cst_28 = arith.constant 0.000000e+00 : f32
    %cst_29 = arith.constant 6.000000e+00 : f32
    %77 = vector.broadcast %cst_28 : f32 to vector<16x512xf32>
    %78 = arith.maximumf %77, %76 : vector<16x512xf32>
    %79 = vector.broadcast %cst_29 : f32 to vector<16x512xf32>
    %80 = arith.minimumf %79, %78 : vector<16x512xf32>
    %81 = arith.mulf %74, %80 : vector<16x512xf32>
    %cst_30 = arith.constant 0.166666672 : f32
    %82 = vector.broadcast %cst_30 : f32 to vector<16x512xf32>
    %83 = arith.mulf %81, %82 : vector<16x512xf32>
    %c11 = arith.constant 11 : index
    %c0_31 = arith.constant 0 : index
    %84 = vector.load %arg6[%c11, %c0_31] : memref<19x1536xf32, #tpu.memory_space<vmem>>, vector<1x512xf32>
    %85 = vector.broadcast %84 : vector<1x512xf32> to vector<16x512xf32>
    %86 = arith.mulf %83, %85 : vector<16x512xf32>
    %cst_32 = arith.constant dense<0.000000e+00> : vector<16xf32>
    %87 = vector.multi_reduction <add>, %86, %cst_32 [1] : vector<16x512xf32> to vector<16xf32>
    %88 = vector.shape_cast %87 : vector<16xf32> to vector<16x1xf32>
    %cst_33 = arith.constant 6.250000e-02 : f32
    %89 = vector.broadcast %cst_33 : f32 to vector<16x1xf32>
    %90 = arith.mulf %88, %89 : vector<16x1xf32>
    %c17_34 = arith.constant 17 : index
    %c0_35 = arith.constant 0 : index
    %91 = vector.load %arg6[%c17_34, %c0_35] : memref<19x1536xf32, #tpu.memory_space<vmem>>, vector<1x1xf32>
    %92 = vector.broadcast %91 : vector<1x1xf32> to vector<16x1xf32>
    %93 = arith.addf %90, %92 : vector<16x1xf32>
    %cst_36 = arith.constant 3.000000e+00 : f32
    %94 = vector.broadcast %cst_36 : f32 to vector<16x1xf32>
    %95 = arith.addf %93, %94 : vector<16x1xf32>
    %cst_37 = arith.constant 0.000000e+00 : f32
    %cst_38 = arith.constant 6.000000e+00 : f32
    %96 = vector.broadcast %cst_37 : f32 to vector<16x1xf32>
    %97 = arith.maximumf %96, %95 : vector<16x1xf32>
    %98 = vector.broadcast %cst_38 : f32 to vector<16x1xf32>
    %99 = arith.minimumf %98, %97 : vector<16x1xf32>
    %100 = arith.mulf %93, %99 : vector<16x1xf32>
    %cst_39 = arith.constant 0.166666672 : f32
    %101 = vector.broadcast %cst_39 : f32 to vector<16x1xf32>
    %102 = arith.mulf %100, %101 : vector<16x1xf32>
    %c13 = arith.constant 13 : index
    %c0_40 = arith.constant 0 : index
    %103 = vector.load %arg6[%c13, %c0_40] : memref<19x1536xf32, #tpu.memory_space<vmem>>, vector<1x512xf32>
    %104 = vector.broadcast %102 : vector<16x1xf32> to vector<16x512xf32>
    %105 = vector.broadcast %103 : vector<1x512xf32> to vector<16x512xf32>
    %106 = arith.mulf %104, %105 : vector<16x512xf32>
    %107 = vector.broadcast %2 : vector<1x512xf32> to vector<16x512xf32>
    %108 = arith.addf %107, %106 : vector<16x512xf32>
    %c12 = arith.constant 12 : index
    %c0_41 = arith.constant 0 : index
    %109 = vector.load %arg6[%c12, %c0_41] : memref<19x1536xf32, #tpu.memory_space<vmem>>, vector<1x512xf32>
    %110 = vector.broadcast %109 : vector<1x512xf32> to vector<16x512xf32>
    %111 = arith.mulf %83, %110 : vector<16x512xf32>
    %cst_42 = arith.constant dense<0.000000e+00> : vector<16xf32>
    %112 = vector.multi_reduction <add>, %111, %cst_42 [1] : vector<16x512xf32> to vector<16xf32>
    %113 = vector.shape_cast %112 : vector<16xf32> to vector<16x1xf32>
    %cst_43 = arith.constant 6.250000e-02 : f32
    %114 = vector.broadcast %cst_43 : f32 to vector<16x1xf32>
    %115 = arith.mulf %113, %114 : vector<16x1xf32>
    %c17_44 = arith.constant 17 : index
    %c1_45 = arith.constant 1 : index
    %116 = vector.load %arg6[%c17_44, %c1_45] : memref<19x1536xf32, #tpu.memory_space<vmem>>, vector<1x1xf32>
    %117 = vector.broadcast %116 : vector<1x1xf32> to vector<16x1xf32>
    %118 = arith.addf %115, %117 : vector<16x1xf32>
    %cst_46 = arith.constant 3.000000e+00 : f32
    %119 = vector.broadcast %cst_46 : f32 to vector<16x1xf32>
    %120 = arith.addf %118, %119 : vector<16x1xf32>
    %cst_47 = arith.constant 0.000000e+00 : f32
    %cst_48 = arith.constant 6.000000e+00 : f32
    %121 = vector.broadcast %cst_47 : f32 to vector<16x1xf32>
    %122 = arith.maximumf %121, %120 : vector<16x1xf32>
    %123 = vector.broadcast %cst_48 : f32 to vector<16x1xf32>
    %124 = arith.minimumf %123, %122 : vector<16x1xf32>
    %125 = arith.mulf %118, %124 : vector<16x1xf32>
    %cst_49 = arith.constant 0.166666672 : f32
    %126 = vector.broadcast %cst_49 : f32 to vector<16x1xf32>
    %127 = arith.mulf %125, %126 : vector<16x1xf32>
    %c14 = arith.constant 14 : index
    %c0_50 = arith.constant 0 : index
    %128 = vector.load %arg6[%c14, %c0_50] : memref<19x1536xf32, #tpu.memory_space<vmem>>, vector<1x512xf32>
    %129 = vector.broadcast %127 : vector<16x1xf32> to vector<16x512xf32>
    %130 = vector.broadcast %128 : vector<1x512xf32> to vector<16x512xf32>
    %131 = arith.mulf %129, %130 : vector<16x512xf32>
    %132 = arith.addf %108, %131 : vector<16x512xf32>
    %133 = arith.negf %132 : vector<16x512xf32>
    %134 = math.exp %133 : vector<16x512xf32>
    %cst_51 = arith.constant 1.000000e+00 : f32
    %135 = vector.broadcast %cst_51 : f32 to vector<16x512xf32>
    %136 = arith.addf %135, %134 : vector<16x512xf32>
    %137 = arith.divf %135, %136 : vector<16x512xf32>
    %cst_52 = arith.constant dense<0.000000e+00> : vector<512xf32>
    %138 = vector.multi_reduction <add>, %83, %cst_52 [0] : vector<16x512xf32> to vector<512xf32>
    %139 = vector.shape_cast %138 : vector<512xf32> to vector<1x512xf32>
    %cst_53 = arith.constant 1.600000e+01 : f32
    %140 = vector.broadcast %cst_53 : f32 to vector<1x512xf32>
    %141 = arith.divf %139, %140 : vector<1x512xf32>
    %c0_54 = arith.constant 0 : index
    %c0_55 = arith.constant 0 : index
    %142 = vector.load %arg4[%c0_54, %c0_55] : memref<512x32xf32, #tpu.memory_space<vmem>>, vector<512x32xf32>
    %cst_56 = arith.constant dense<0.000000e+00> : vector<1x32xf32>
    %143 = tpu.matmul %141, %142, %cst_56 {dimension_numbers = #tpu.dot_dimension_numbers<[1], [0], [0], [1], [0, 0, 1, 1], [], []>} : vector<1x512xf32>, vector<512x32xf32>, vector<1x32xf32> -> vector<1x32xf32>
    %144 = arith.addf %143, %4 : vector<1x32xf32>
    %cst_57 = arith.constant 3.000000e+00 : f32
    %145 = vector.broadcast %cst_57 : f32 to vector<1x32xf32>
    %146 = arith.addf %144, %145 : vector<1x32xf32>
    %cst_58 = arith.constant 0.000000e+00 : f32
    %cst_59 = arith.constant 6.000000e+00 : f32
    %147 = vector.broadcast %cst_58 : f32 to vector<1x32xf32>
    %148 = arith.maximumf %147, %146 : vector<1x32xf32>
    %149 = vector.broadcast %cst_59 : f32 to vector<1x32xf32>
    %150 = arith.minimumf %149, %148 : vector<1x32xf32>
    %151 = arith.mulf %144, %150 : vector<1x32xf32>
    %cst_60 = arith.constant 0.166666672 : f32
    %152 = vector.broadcast %cst_60 : f32 to vector<1x32xf32>
    %153 = arith.mulf %151, %152 : vector<1x32xf32>
    %c0_61 = arith.constant 0 : index
    %c0_62 = arith.constant 0 : index
    %154 = vector.load %arg5[%c0_61, %c0_62] : memref<32x512xf32, #tpu.memory_space<vmem>>, vector<32x512xf32>
    %cst_63 = arith.constant dense<0.000000e+00> : vector<1x512xf32>
    %155 = tpu.matmul %153, %154, %cst_63 {dimension_numbers = #tpu.dot_dimension_numbers<[1], [0], [0], [1], [0, 0, 1, 1], [], []>} : vector<1x32xf32>, vector<32x512xf32>, vector<1x512xf32> -> vector<1x512xf32>
    %156 = arith.addf %155, %3 : vector<1x512xf32>
    %157 = arith.negf %156 : vector<1x512xf32>
    %158 = math.exp %157 : vector<1x512xf32>
    %cst_64 = arith.constant 1.000000e+00 : f32
    %159 = vector.broadcast %cst_64 : f32 to vector<1x512xf32>
    %160 = arith.addf %159, %158 : vector<1x512xf32>
    %161 = arith.divf %159, %160 : vector<1x512xf32>
    %162 = arith.mulf %83, %137 : vector<16x512xf32>
    %163 = vector.broadcast %161 : vector<1x512xf32> to vector<16x512xf32>
    %164 = arith.mulf %162, %163 : vector<16x512xf32>
    %c0_65 = arith.constant 0 : index
    %c0_66 = arith.constant 0 : index
    %165 = vector.load %arg3[%c0_65, %c0_66] : memref<512x256xf32, #tpu.memory_space<vmem>>, vector<512x256xf32>
    %cst_67 = arith.constant dense<0.000000e+00> : vector<16x256xf32>
    %166 = tpu.matmul %164, %165, %cst_67 {dimension_numbers = #tpu.dot_dimension_numbers<[1], [0], [0], [1], [0, 0, 1, 1], [], []>} : vector<16x512xf32>, vector<512x256xf32>, vector<16x256xf32> -> vector<16x256xf32>
    %167 = vector.broadcast %5 : vector<1x256xf32> to vector<16x256xf32>
    %168 = arith.addf %166, %167 : vector<16x256xf32>
    %169 = arith.addf %168, %19 : vector<16x256xf32>
    %c0_68 = arith.constant 0 : index
    %c0_69 = arith.constant 0 : index
    %c0_70 = arith.constant 0 : index
    %170 = vector.load %arg7[%c0_68, %c0_69, %c0_70] : memref<1x16x256xf32, #tpu.memory_space<vmem>>, vector<1x16x256xf32>
    %171 = vector.shape_cast %170 : vector<1x16x256xf32> to vector<16x256xf32>
    %172 = vector.shape_cast %169 : vector<16x256xf32> to vector<1x16x256xf32>
    tpu.vector_store %arg7[%c0_68, %c0_69, %c0_70], %172 {strides = array<i32>} : memref<1x16x256xf32, #tpu.memory_space<vmem>>, vector<1x16x256xf32>,
    return
  }
  func.func @transform_0(%arg0: i32) -> (i32, i32, i32) {
    %c0_i32 = arith.constant 0 : i32
    %c0_i32_0 = arith.constant 0 : i32
    %c0_i32_1 = arith.constant 0 : i32
    return %arg0, %c0_i32, %c0_i32_0 : i32, i32, i32
  }
  func.func @transform_1(%arg0: i32) -> (i32, i32) {
    %c0_i32 = arith.constant 0 : i32
    %c0_i32_0 = arith.constant 0 : i32
    %c0_i32_1 = arith.constant 0 : i32
    return %c0_i32, %c0_i32_0 : i32, i32
  }
  func.func @transform_2(%arg0: i32) -> (i32, i32) {
    %c0_i32 = arith.constant 0 : i32
    %c0_i32_0 = arith.constant 0 : i32
    %c0_i32_1 = arith.constant 0 : i32
    return %c0_i32, %c0_i32_0 : i32, i32
  }
  func.func @transform_3(%arg0: i32) -> (i32, i32) {
    %c0_i32 = arith.constant 0 : i32
    %c0_i32_0 = arith.constant 0 : i32
    %c0_i32_1 = arith.constant 0 : i32
    return %c0_i32, %c0_i32_0 : i32, i32
  }
  func.func @transform_4(%arg0: i32) -> (i32, i32) {
    %c0_i32 = arith.constant 0 : i32
    %c0_i32_0 = arith.constant 0 : i32
    %c0_i32_1 = arith.constant 0 : i32
    return %c0_i32, %c0_i32_0 : i32, i32
  }
  func.func @transform_5(%arg0: i32) -> (i32, i32) {
    %c0_i32 = arith.constant 0 : i32
    %c0_i32_0 = arith.constant 0 : i32
    %c0_i32_1 = arith.constant 0 : i32
    return %c0_i32, %c0_i32_0 : i32, i32
  }
  func.func @transform_6(%arg0: i32) -> (i32, i32, i32) {
    %c0_i32 = arith.constant 0 : i32
    %c0_i32_0 = arith.constant 0 : i32
    %c0_i32_1 = arith.constant 0 : i32
    return %arg0, %c0_i32, %c0_i32_0 : i32, i32, i32
  }
}

</mosaic_0001>

<llo_original>
// kernel: block_forward.1
$region0: #{block_forward.1}
  #allocation0 [shape = 'u32[]', space=smem, size = 0x4, offset = 0x4, fixed_abs, tag = 'smem constant byte address 0x4 - core index']
  #allocation1 [shape = 'u32[72,128]{1,0:T(1,128)}', space=vmem, size = 0x9000, scoped, tag = 'internal scratch']
  %s0 = inlined_call_operand.vmem [shape: f32[2,16,256], index: 0, kind: input, shape index: {}]
  %s1 = inlined_call_operand.hbm [shape: f32[256,1536], index: 1, kind: input, shape index: {}]
  %s2 = inlined_call_operand.hbm [shape: f32[512,256], index: 2, kind: input, shape index: {}]
  %s3 = inlined_call_operand.vmem [shape: f32[512,32], index: 3, kind: input, shape index: {}]
  %s4 = inlined_call_operand.hbm [shape: f32[32,512], index: 4, kind: input, shape index: {}]
  %s5 = inlined_call_operand.hbm [shape: f32[19,1536], index: 5, kind: input, shape index: {}]
  %s6 = inlined_call_operand.vmem [shape: f32[2,16,256], index: 6, kind: output, shape index: {}]
  %s7 = sld [smem:[#allocation0]]
  $region73: #{block_forward.1} parent=0
    _
  %s9 = ssub.s32 1, %s7
  %s10 = scalar_select 0, %s9, %s7
  $region1: #{block_forward.1} parent=0
    #allocation2 [shape = 'u8[1572864]{0}', space=vmem, size = 0x180000, scoped, tag = 'input window, operand 1, single buffered']
    #allocation3 [shape = 's32[2]{0}', space=sflag, size = 0x8, scoped, tag = 'scoped memory for block_forward.1']
    #allocation4 [shape = 'u8[524288]{0}', space=vmem, size = 0x80000, scoped, tag = 'input window, operand 2, single buffered']
    #allocation5 [shape = 's32[1]{0}', space=sflag, size = 0x4, scoped, tag = 'scoped memory for block_forward.1']
    #allocation6 [shape = 'u8[65536]{0}', space=vmem, size = 0x10000, scoped, tag = 'input window, operand 4, single buffered']
    #allocation7 [shape = 'u8[147456]{0}', space=vmem, size = 0x24000, scoped, tag = 'input window, operand 5, single buffered']
    #allocation8 [shape = 's32[1]{0}', space=sflag, size = 0x4, scoped, tag = 'scoped memory for block_forward.1']
    %11 = vsyncpa [#allocation3], 0
    %12 = vsyncpa [#allocation5], 0
    %13 = vsyncpa [#allocation8], 0
    loop: start=0, step=1, limit=4
    $region2: #{block_forward.1} parent=1 // loop_pre_header
      _
    $region3: #{block_forward.1} parent=1 // loop_header
      %s15 = sphi 0, %s19
      %p16 = scmp.ge.s32.totalorder %s15, 4
      %s25 = sphi 0, %s27
      %s28 = sphi 0, %s25
      %s29 = sphi 0, %s28
      %s45 = sphi 0, %s29
      %s49 = sphi 0, %s49
      %s51 = sphi 0, %s49
      %s52 = sphi 0, %s51
      %s66 = sphi 0, %s52
      %s70 = sphi 0, %s70
      %s72 = sphi 0, %s70
      %s73 = sphi 0, %s72
      %s87 = sphi 0, %s73
      %s91 = sphi 0, %s91
      %s93 = sphi 0, %s91
      %s94 = sphi 0, %s93
      %s108 = sphi 0, %s94
      %s112 = sphi 0, %s112
      %s114 = sphi 0, %s112
      %s115 = sphi 0, %s114
      %s129 = sphi 0, %s115
      %s133 = sphi 0, %s133
      %s135 = sphi 0, %s133
      %s136 = sphi 0, %s135
      %s150 = sphi 0, %s136
      %s156 = sphi 0, %s158
      %s159 = sphi 0, %s156
      %s160 = sphi 0, %s159
      %s176 = sphi 0, %s160
    $region4: #{block_forward.1} parent=1 // loop_header_branch
      %18 = sbr.rel (%p16) target = $region8
    $region5: #{block_forward.1} parent=1 // loop_body
      %s20 = ssub.s32 %s15, 1
      %s21 = ssub.s32 %s15, 2
      %s22 = sadd.s32 %s15, 1
      %s23 = ssub.s32 %s15, %s22
      %p24 = scmp.eq.s32.totalorder %s23, 0
      %s26 = sadd.s32 %s25, 1
      %s27 = scalar_select %p24, %s25, %s26
      %p30 = pneg %p24
      %p31 = scmp.eq.s32.totalorder %s15, 1
      %p32 = por %p30, %p31
      %p33 = scmp.ne.s32.totalorder %s25, %s28
      %p34 = scmp.eq.s32.totalorder %s15, 0
      %p35 = por %p33, %p34
      %p36 = scmp.ne.s32.totalorder %s25, %s28
      %p37 = scmp.eq.s32.totalorder %s20, 1
      %p38 = por %p36, %p37
      %p39 = scmp.ne.s32.totalorder %s28, %s29
      %p40 = scmp.eq.s32.totalorder %s20, 0
      %p41 = por %p39, %p40
      %p42 = scmp.ne.s32.totalorder %s28, %s29
      %p43 = scmp.eq.s32.totalorder %s21, 1
      %p44 = por %p42, %p43
      %p46 = scmp.ne.s32.totalorder %s29, %s45
      %p47 = scmp.eq.s32.totalorder %s21, 0
      %p48 = por %p46, %p47
      %s50 = sadd.s32 %s49, 1
      %p53 = scmp.eq.s32.totalorder %s15, 1
      %p54 = scmp.ne.s32.totalorder %s49, %s51
      %p55 = scmp.eq.s32.totalorder %s15, 0
      %p56 = por %p54, %p55
      %p57 = scmp.ne.s32.totalorder %s49, %s51
      %p58 = scmp.eq.s32.totalorder %s20, 1
      %p59 = por %p57, %p58
      %p60 = scmp.ne.s32.totalorder %s51, %s52
      %p61 = scmp.eq.s32.totalorder %s20, 0
      %p62 = por %p60, %p61
      %p63 = scmp.ne.s32.totalorder %s51, %s52
      %p64 = scmp.eq.s32.totalorder %s21, 1
      %p65 = por %p63, %p64
      %p67 = scmp.ne.s32.totalorder %s52, %s66
      %p68 = scmp.eq.s32.totalorder %s21, 0
      %p69 = por %p67, %p68
      %s71 = sadd.s32 %s70, 1
      %p74 = scmp.eq.s32.totalorder %s15, 1
      %p75 = scmp.ne.s32.totalorder %s70, %s72
      %p76 = scmp.eq.s32.totalorder %s15, 0
      %p77 = por %p75, %p76
      %p78 = scmp.ne.s32.totalorder %s70, %s72
      %p79 = scmp.eq.s32.totalorder %s20, 1
      %p80 = por %p78, %p79
      %p81 = scmp.ne.s32.totalorder %s72, %s73
      %p82 = scmp.eq.s32.totalorder %s20, 0
      %p83 = por %p81, %p82
      %p84 = scmp.ne.s32.totalorder %s72, %s73
      %p85 = scmp.eq.s32.totalorder %s21, 1
      %p86 = por %p84, %p85
      %p88 = scmp.ne.s32.totalorder %s73, %s87
      %p89 = scmp.eq.s32.totalorder %s21, 0
      %p90 = por %p88, %p89
      %s92 = sadd.s32 %s91, 1
      %p95 = scmp.eq.s32.totalorder %s15, 1
      %p96 = scmp.ne.s32.totalorder %s91, %s93
      %p97 = scmp.eq.s32.totalorder %s15, 0
      %p98 = por %p96, %p97
      %p99 = scmp.ne.s32.totalorder %s91, %s93
      %p100 = scmp.eq.s32.totalorder %s20, 1
      %p101 = por %p99, %p100
      %p102 = scmp.ne.s32.totalorder %s93, %s94
      %p103 = scmp.eq.s32.totalorder %s20, 0
      %p104 = por %p102, %p103
      %p105 = scmp.ne.s32.totalorder %s93, %s94
      %p106 = scmp.eq.s32.totalorder %s21, 1
      %p107 = por %p105, %p106
      %p109 = scmp.ne.s32.totalorder %s94, %s108
      %p110 = scmp.eq.s32.totalorder %s21, 0
      %p111 = por %p109, %p110
      %s113 = sadd.s32 %s112, 1
      %p116 = scmp.eq.s32.totalorder %s15, 1
      %p117 = scmp.ne.s32.totalorder %s112, %s114
      %p118 = scmp.eq.s32.totalorder %s15, 0
      %p119 = por %p117, %p118
      %p120 = scmp.ne.s32.totalorder %s112, %s114
      %p121 = scmp.eq.s32.totalorder %s20, 1
      %p122 = por %p120, %p121
      %p123 = scmp.ne.s32.totalorder %s114, %s115
      %p124 = scmp.eq.s32.totalorder %s20, 0
      %p125 = por %p123, %p124
      %p126 = scmp.ne.s32.totalorder %s114, %s115
      %p127 = scmp.eq.s32.totalorder %s21, 1
      %p128 = por %p126, %p127
      %p130 = scmp.ne.s32.totalorder %s115, %s129
      %p131 = scmp.eq.s32.totalorder %s21, 0
      %p132 = por %p130, %p131
      %s134 = sadd.s32 %s133, 1
      %p137 = scmp.eq.s32.totalorder %s15, 1
      %p138 = scmp.ne.s32.totalorder %s133, %s135
      %p139 = scmp.eq.s32.totalorder %s15, 0
      %p140 = por %p138, %p139
      %p141 = scmp.ne.s32.totalorder %s133, %s135
      %p142 = scmp.eq.s32.totalorder %s20, 1
      %p143 = por %p141, %p142
      %p144 = scmp.ne.s32.totalorder %s135, %s136
      %p145 = scmp.eq.s32.totalorder %s20, 0
      %p146 = por %p144, %p145
      %p147 = scmp.ne.s32.totalorder %s135, %s136
      %p148 = scmp.eq.s32.totalorder %s21, 1
      %p149 = por %p147, %p148
      %p151 = scmp.ne.s32.totalorder %s136, %s150
      %p152 = scmp.eq.s32.totalorder %s21, 0
      %p153 = por %p151, %p152
      %s154 = ssub.s32 %s15, %s22
      %p155 = scmp.eq.s32.totalorder %s154, 0
      %s157 = sadd.s32 %s156, 1
      %s158 = scalar_select %p155, %s156, %s157
      %p161 = pneg %p155
      %p162 = scmp.eq.s32.totalorder %s15, 1
      %p163 = por %p161, %p162
      %p164 = scmp.ne.s32.totalorder %s156, %s159
      %p165 = scmp.eq.s32.totalorder %s15, 0
      %p166 = por %p164, %p165
      %p167 = scmp.ne.s32.totalorder %s156, %s159
      %p168 = scmp.eq.s32.totalorder %s20, 1
      %p169 = por %p167, %p168
      %p170 = scmp.ne.s32.totalorder %s159, %s160
      %p171 = scmp.eq.s32.totalorder %s20, 0
      %p172 = por %p170, %p171
      %p173 = scmp.ne.s32.totalorder %s159, %s160
      %p174 = scmp.eq.s32.totalorder %s21, 1
      %p175 = por %p173, %p174
      %p177 = scmp.ne.s32.totalorder %s160, %s176
      %p178 = scmp.eq.s32.totalorder %s21, 0
      %p179 = por %p177, %p178
      %p180 = scmp.le.s32.totalorder 1, %s15
      %p181 = scmp.lt.s32.totalorder %s15, 3
      %p182 = pnand %p180, %p181
      %p183 = pneg %p182
      // Predicated region
      $region9: #{block_forward.1} parent=5 // pred_check
        _
      $region10: #{block_forward.1} parent=5 // pred_check_branch
        %185 = sbr.rel (%p182) target = $region12
      $region11: #{block_forward.1} parent=5 // pred_region
        %s186 = ssub.s32 %s15, 1
        // Predicated region
        $region13: #{block_forward.1} parent=11 // pred_check
          %p187 = pneg %p62
        $region14: #{block_forward.1} parent=11 // pred_check_branch
          %189 = sbr.rel (%p187) target = $region16
        $region15: #{block_forward.1} parent=11 // pred_region
          %191 = vsyncadd [#allocation3], 0
          %s192 = sshll.u32 %s1, 4
          %s193 = int_to_ptr.hbm [resolvable:$true] %s192
          %s194 = sshll.u32 [#allocation2], 4
          %s195 = int_to_ptr.vmem [resolvable:$true] %s194
          %200 = dma.hbm_to_vmem [thread:$0]  %s193, 49152, %s195, [#allocation3], 1536, 1536, 96
        $region16: #{block_forward.1} parent=11 // pred_fallthru
          _
        // Predicated region
        $region17: #{block_forward.1} parent=11 // pred_check
          %p201 = pneg %p83
        $region18: #{block_forward.1} parent=11 // pred_check_branch
          %203 = sbr.rel (%p201) target = $region20
        $region19: #{block_forward.1} parent=11 // pred_region
          %205 = vsyncadd [#allocation5], 0
          %s206 = sshll.u32 %s2, 4
          %s207 = int_to_ptr.hbm [resolvable:$true] %s206
          %s208 = sshll.u32 [#allocation4], 4
          %s209 = int_to_ptr.vmem [resolvable:$true] %s208
          %214 = dma.hbm_to_vmem [thread:$0]  %s207, 16384, %s209, [#allocation5], 256, 256, 16
        $region20: #{block_forward.1} parent=11 // pred_fallthru
          _
        // Predicated region
        $region21: #{block_forward.1} parent=11 // pred_check
          %p215 = pneg %p104
        $region22: #{block_forward.1} parent=11 // pred_check_branch
          %217 = sbr.rel (%p215) target = $region24
        $region23: #{block_forward.1} parent=11 // pred_region
          _
        $region24: #{block_forward.1} parent=11 // pred_fallthru
          _
        // Predicated region
        $region25: #{block_forward.1} parent=11 // pred_check
          %p218 = pneg %p125
        $region26: #{block_forward.1} parent=11 // pred_check_branch
          %220 = sbr.rel (%p218) target = $region28
        $region27: #{block_forward.1} parent=11 // pred_region
          %222 = vsyncadd [#allocation5], 0
          %s223 = sshll.u32 %s4, 4
          %s224 = int_to_ptr.hbm [resolvable:$true] %s223
          %s225 = sshll.u32 [#allocation6], 4
          %s226 = int_to_ptr.vmem [resolvable:$true] %s225
          %231 = dma.hbm_to_vmem [thread:$0]  %s224, 2048, %s226, [#allocation5], 512, 512, 32
        $region28: #{block_forward.1} parent=11 // pred_fallthru
          _
        // Predicated region
        $region29: #{block_forward.1} parent=11 // pred_check
          %p232 = pneg %p146
        $region30: #{block_forward.1} parent=11 // pred_check_branch
          %234 = sbr.rel (%p232) target = $region32
        $region31: #{block_forward.1} parent=11 // pred_region
          %236 = vsyncadd [#allocation8], 0
          %s237 = sshll.u32 %s5, 4
          %s238 = int_to_ptr.hbm [resolvable:$true] %s237
          %s239 = sshll.u32 [#allocation7], 4
          %s240 = int_to_ptr.vmem [resolvable:$true] %s239
          %245 = dma.hbm_to_vmem [thread:$0]  %s238, 4608, %s240, [#allocation8], 1536, 1536, 96
        $region32: #{block_forward.1} parent=11 // pred_fallthru
          _
      $region12: #{block_forward.1} parent=5 // pred_fallthru
        _
      %p246 = scmp.lt.s32.totalorder %s15, 2
      // Predicated region
      $region33: #{block_forward.1} parent=5 // pred_check
        %p247 = pneg %p246
      $region34: #{block_forward.1} parent=5 // pred_check_branch
        %249 = sbr.rel (%p247) target = $region36
      $region35: #{block_forward.1} parent=5 // pred_region
        // Predicated region
        $region37: #{block_forward.1} parent=35 // pred_check
          %p250 = pneg %p35
        $region38: #{block_forward.1} parent=35 // pred_check_branch
          %252 = sbr.rel (%p250) target = $region40
        $region39: #{block_forward.1} parent=35 // pred_region
          %p253 = scmp.lt.s32.totalorder %s15, 1
          %s254 = scalar_select %p253, %s15, 1
          %s255 = smul.addr %s254, 4
          %s256 = smul.addr %s255, 8
          %s257 = scalar_lea.vmem %s0, %s256
        $region40: #{block_forward.1} parent=35 // pred_fallthru
          _
      $region36: #{block_forward.1} parent=5 // pred_fallthru
        _
      %p258 = scmp.le.s32.totalorder 1, %s15
      %p259 = scmp.lt.s32.totalorder %s15, 3
      %p260 = pnand %p258, %p259
      %p261 = pneg %p260
      // Predicated region
      $region41: #{block_forward.1} parent=5 // pred_check
        _
      $region42: #{block_forward.1} parent=5 // pred_check_branch
        %263 = sbr.rel (%p260) target = $region44
      $region43: #{block_forward.1} parent=5 // pred_region
        %s264 = ssub.s32 %s15, 1
        // Predicated region
        $region45: #{block_forward.1} parent=43 // pred_check
          %p265 = pneg %p62
        $region46: #{block_forward.1} parent=43 // pred_check_branch
          %267 = sbr.rel (%p265) target = $region48
        $region47: #{block_forward.1} parent=43 // pred_region
          %269 = dma.done [#allocation3], 49152
        $region48: #{block_forward.1} parent=43 // pred_fallthru
          _
        // Predicated region
        $region49: #{block_forward.1} parent=43 // pred_check
          %p270 = pneg %p83
        $region50: #{block_forward.1} parent=43 // pred_check_branch
          %272 = sbr.rel (%p270) target = $region52
        $region51: #{block_forward.1} parent=43 // pred_region
          %274 = dma.done [#allocation5], 16384
        $region52: #{block_forward.1} parent=43 // pred_fallthru
          _
        // Predicated region
        $region53: #{block_forward.1} parent=43 // pred_check
          %p275 = pneg %p125
        $region54: #{block_forward.1} parent=43 // pred_check_branch
          %277 = sbr.rel (%p275) target = $region56
        $region55: #{block_forward.1} parent=43 // pred_region
          %279 = dma.done [#allocation5], 2048
        $region56: #{block_forward.1} parent=43 // pred_fallthru
          _
        // Predicated region
        $region57: #{block_forward.1} parent=43 // pred_check
          %p280 = pneg %p146
        $region58: #{block_forward.1} parent=43 // pred_check_branch
          %282 = sbr.rel (%p280) target = $region60
        $region59: #{block_forward.1} parent=43 // pred_region
          %284 = dma.done [#allocation8], 4608
        $region60: #{block_forward.1} parent=43 // pred_fallthru
          _
        %p285 = scmp.lt.s32.totalorder %s20, 1
        %s286 = scalar_select %p285, %s20, 1
        %s287 = smul.addr %s286, 4
        %s288 = smul.addr %s287, 8
        %s289 = scalar_lea.vmem %s0, %s288
        %p290 = pneg %p41
        %p291 = pneg %p38
        %p292 = pneg %p62
        %p293 = pneg %p59
        %p294 = pneg %p83
        %p295 = pneg %p80
        %p296 = pneg %p104
        %p297 = pneg %p101
        %p298 = pneg %p125
        %p299 = pneg %p122
        %p300 = pneg %p146
        %p301 = pneg %p143
        %p302 = pneg %p172
        %p303 = pneg %p169
        %p304 = scmp.lt.s32.totalorder %s20, 1
        %s305 = scalar_select %p304, %s20, 1
        %s306 = smul.addr %s305, 4
        %s307 = smul.addr %s306, 8
        %s308 = scalar_lea.vmem %s6, %s307
        %p309 = scmp.lt.s32.totalorder %s20, 1
        %s310 = scalar_select %p309, %s20, 1
        %s311 = smul.addr %s310, 4
        %s312 = smul.addr %s311, 8
        %s313 = scalar_lea.vmem %s0, %s312
        %p314 = scmp.lt.s32.totalorder %s20, 1
        %s315 = scalar_select %p314, %s20, 1
        %s316 = smul.addr %s315, 4
        %s317 = smul.addr %s316, 8
        %s318 = scalar_lea.vmem %s6, %s317
        %v319 = vld [vmem:[#allocation7] ss:$8 sm:$0xf]
        %v320 = vld [vmem:[#allocation7] ss:$8 sm:$0xf0]
        %v321 = vor.u32 %v319, %v320
        %s322 = scalar_lea.vmem [#allocation7], 64
        %v323 = vld [vmem:[%s322] ss:$8 sm:$0xf]
        %s324 = scalar_lea.vmem [#allocation7], 1
        %v325 = vld [vmem:[%s324] ss:$8 sm:$0xf]
        %s326 = scalar_lea.vmem [#allocation7], 103
        %v327 = vld [vmem:[%s326] ss:$8 sm:$0xf]
        %s328 = scalar_lea.vmem [#allocation7], 192
        %v329 = vld [vmem:[%s328] ss:$8 sm:$0xf]
        %v330 = vld [vmem:[#allocation7 + $0xc1] ss:$0 sm:$0xff]
        %s331 = scalar_lea.vmem [#allocation7], 194
        %v332 = vld [vmem:[%s331] ss:$8 sm:$0x3]
        %v333 = vlaneseq
        %v334 = vshrl.u32 %v333, 7
        %v335 = vadd.s32 %v334, 8
        %v336 = vlaneseq
        %v337 = vand.u32 %v336, 127
        %v338 = vadd.s32 %v337, 1
        %vm339 = vcmp.eq.s32.totalorder %v338, %v334
        %vm340 = vcmp.eq.s32.totalorder %v338, %v335
        %v341 = vsel %vm339, 1, 0
        %v342 = vsel %vm340, 1, 0
        %v343 = vcvt.s32.f32 %v341
        %v344 = vcvt.s32.f32 %v342
        %v345 = vadd.s32 %v334, 1
        %v346 = vadd.s32 %v335, 1
        %vm347 = vcmp.eq.s32.totalorder %v337, %v345
        %vm348 = vcmp.eq.s32.totalorder %v337, %v346
        %v349 = vsel %vm347, 1, 0
        %v350 = vsel %vm348, 1, 0
        %v351 = vcvt.s32.f32 %v349
        %v352 = vcvt.s32.f32 %v350
        %v353 = vld [vmem:[%s313] sm:$0xff]
        %v354 = vld [vmem:[%s313 + $0x8] sm:$0xff]
        %v355 = vld [vmem:[%s313 + $0x10] sm:$0xff]
        %v356 = vld [vmem:[%s313 + $0x18] sm:$0xff]
        %v357 = vld [vmem:[#allocation2] sm:$0xff]
        %v358 = vld [vmem:[#allocation2 + $0x8] sm:$0xff]
        %v359 = vld [vmem:[#allocation2 + $0x10] sm:$0xff]
        %v360 = vld [vmem:[#allocation2 + $0x18] sm:$0xff]
        %v361 = vld [vmem:[#allocation2 + $0x20] sm:$0xff]
        %v362 = vld [vmem:[#allocation2 + $0x28] sm:$0xff]
        %v363 = vld [vmem:[#allocation2 + $0x30] sm:$0xff]
        %v364 = vld [vmem:[#allocation2 + $0x38] sm:$0xff]
        %v365 = vld [vmem:[#allocation2 + $0x40] sm:$0xff]
        %v366 = vld [vmem:[#allocation2 + $0x48] sm:$0xff]
        %v367 = vld [vmem:[#allocation2 + $0x50] sm:$0xff]
        %v368 = vld [vmem:[#allocation2 + $0x58] sm:$0xff]
        %v369 = vld [vmem:[#allocation2 + $0x60] sm:$0xff]
        %v370 = vld [vmem:[#allocation2 + $0x68] sm:$0xff]
        %v371 = vld [vmem:[#allocation2 + $0x70] sm:$0xff]
        %v372 = vld [vmem:[#allocation2 + $0x78] sm:$0xff]
        %v373 = vld [vmem:[#allocation2 + $0x80] sm:$0xff]
        %v374 = vld [vmem:[#allocation2 + $0x88] sm:$0xff]
        %v375 = vld [vmem:[#allocation2 + $0x90] sm:$0xff]
        %v376 = vld [vmem:[#allocation2 + $0x98] sm:$0xff]
        %v377 = vld [vmem:[#allocation2 + $0xa0] sm:$0xff]
        %v378 = vld [vmem:[#allocation2 + $0xa8] sm:$0xff]
        %v379 = vld [vmem:[#allocation2 + $0xb0] sm:$0xff]
        %v380 = vld [vmem:[#allocation2 + $0xb8] sm:$0xff]
        %v381 = vld [vmem:[#allocation2 + $0xc0] sm:$0xff]
        %v382 = vld [vmem:[#allocation2 + $0xc8] sm:$0xff]
        %v383 = vld [vmem:[#allocation2 + $0xd0] sm:$0xff]
        %v384 = vld [vmem:[#allocation2 + $0xd8] sm:$0xff]
        %v385 = vld [vmem:[#allocation2 + $0xe0] sm:$0xff]
        %v386 = vld [vmem:[#allocation2 + $0xe8] sm:$0xff]
        %v387 = vld [vmem:[#allocation2 + $0xf0] sm:$0xff]
        %v388 = vld [vmem:[#allocation2 + $0xf8] sm:$0xff]
        %v389 = vld [vmem:[#allocation2 + $0x100] sm:$0xff]
        %v390 = vld [vmem:[#allocation2 + $0x108] sm:$0xff]
        %v391 = vld [vmem:[#allocation2 + $0x110] sm:$0xff]
        %v392 = vld [vmem:[#allocation2 + $0x118] sm:$0xff]
        %v393 = vld [vmem:[#allocation2 + $0x120] sm:$0xff]
        %v394 = vld [vmem:[#allocation2 + $0x128] sm:$0xff]
        %v395 = vld [vmem:[#allocation2 + $0x130] sm:$0xff]
        %v396 = vld [vmem:[#allocation2 + $0x138] sm:$0xff]
        %v397 = vld [vmem:[#allocation2 + $0x140] sm:$0xff]
        %v398 = vld [vmem:[#allocation2 + $0x148] sm:$0xff]
        %v399 = vld [vmem:[#allocation2 + $0x150] sm:$0xff]
        %v400 = vld [vmem:[#allocation2 + $0x158] sm:$0xff]
        %v401 = vld [vmem:[#allocation2 + $0x160] sm:$0xff]
        %v402 = vld [vmem:[#allocation2 + $0x168] sm:$0xff]
        %v403 = vld [vmem:[#allocation2 + $0x170] sm:$0xff]
        %v404 = vld [vmem:[#allocation2 + $0x178] sm:$0xff]
        %v405 = vld [vmem:[#allocation2 + $0x180] sm:$0xff]
        %v406 = vld [vmem:[#allocation2 + $0x188] sm:$0xff]
        %v407 = vld [vmem:[#allocation2 + $0x190] sm:$0xff]
        %v408 = vld [vmem:[#allocation2 + $0x198] sm:$0xff]
        %v409 = vld [vmem:[#allocation2 + $0x1a0] sm:$0xff]
        %v410 = vld [vmem:[#allocation2 + $0x1a8] sm:$0xff]
        %v411 = vld [vmem:[#allocation2 + $0x1b0] sm:$0xff]
        %v412 = vld [vmem:[#allocation2 + $0x1b8] sm:$0xff]
        %v413 = vld [vmem:[#allocation2 + $0x1c0] sm:$0xff]
        %v414 = vld [vmem:[#allocation2 + $0x1c8] sm:$0xff]
        %v415 = vld [vmem:[#allocation2 + $0x1d0] sm:$0xff]
        %v416 = vld [vmem:[#allocation2 + $0x1d8] sm:$0xff]
        %v417 = vld [vmem:[#allocation2 + $0x1e0] sm:$0xff]
        %v418 = vld [vmem:[#allocation2 + $0x1e8] sm:$0xff]
        %v419 = vld [vmem:[#allocation2 + $0x1f0] sm:$0xff]
        %v420 = vld [vmem:[#allocation2 + $0x1f8] sm:$0xff]
        %v421 = vld [vmem:[#allocation2 + $0x200] sm:$0xff]
        %v422 = vld [vmem:[#allocation2 + $0x208] sm:$0xff]
        %v423 = vld [vmem:[#allocation2 + $0x210] sm:$0xff]
        %v424 = vld [vmem:[#allocation2 + $0x218] sm:$0xff]
        %v425 = vld [vmem:[#allocation2 + $0x220] sm:$0xff]
        %v426 = vld [vmem:[#allocation2 + $0x228] sm:$0xff]
        %v427 = vld [vmem:[#allocation2 + $0x230] sm:$0xff]
        %v428 = vld [vmem:[#allocation2 + $0x238] sm:$0xff]
        %v429 = vld [vmem:[#allocation2 + $0x240] sm:$0xff]
        %v430 = vld [vmem:[#allocation2 + $0x248] sm:$0xff]
        %v431 = vld [vmem:[#allocation2 + $0x250] sm:$0xff]
        %v432 = vld [vmem:[#allocation2 + $0x258] sm:$0xff]
        %v433 = vld [vmem:[#allocation2 + $0x260] sm:$0xff]
        %v434 = vld [vmem:[#allocation2 + $0x268] sm:$0xff]
        %v435 = vld [vmem:[#allocation2 + $0x270] sm:$0xff]
        %v436 = vld [vmem:[#allocation2 + $0x278] sm:$0xff]
        %v437 = vld [vmem:[#allocation2 + $0x280] sm:$0xff]
        %v438 = vld [vmem:[#allocation2 + $0x288] sm:$0xff]
        %v439 = vld [vmem:[#allocation2 + $0x290] sm:$0xff]
        %v440 = vld [vmem:[#allocation2 + $0x298] sm:$0xff]
        %v441 = vld [vmem:[#allocation2 + $0x2a0] sm:$0xff]
        %v442 = vld [vmem:[#allocation2 + $0x2a8] sm:$0xff]
        %v443 = vld [vmem:[#allocation2 + $0x2b0] sm:$0xff]
        %v444 = vld [vmem:[#allocation2 + $0x2b8] sm:$0xff]
        %v445 = vld [vmem:[#allocation2 + $0x2c0] sm:$0xff]
        %v446 = vld [vmem:[#allocation2 + $0x2c8] sm:$0xff]
        %v447 = vld [vmem:[#allocation2 + $0x2d0] sm:$0xff]
        %v448 = vld [vmem:[#allocation2 + $0x2d8] sm:$0xff]
        %v449 = vld [vmem:[#allocation2 + $0x2e0] sm:$0xff]
        %v450 = vld [vmem:[#allocation2 + $0x2e8] sm:$0xff]
        %v451 = vld [vmem:[#allocation2 + $0x2f0] sm:$0xff]
        %v452 = vld [vmem:[#allocation2 + $0x2f8] sm:$0xff]
        %v453 = vld [vmem:[#allocation2 + $0x300] sm:$0xff]
        %v454 = vld [vmem:[#allocation2 + $0x308] sm:$0xff]
        %v455 = vld [vmem:[#allocation2 + $0x310] sm:$0xff]
        %v456 = vld [vmem:[#allocation2 + $0x318] sm:$0xff]
        %v457 = vld [vmem:[#allocation2 + $0x320] sm:$0xff]
        %v458 = vld [vmem:[#allocation2 + $0x328] sm:$0xff]
        %v459 = vld [vmem:[#allocation2 + $0x330] sm:$0xff]
        %v460 = vld [vmem:[#allocation2 + $0x338] sm:$0xff]
        %v461 = vld [vmem:[#allocation2 + $0x340] sm:$0xff]
        %v462 = vld [vmem:[#allocation2 + $0x348] sm:$0xff]
        %v463 = vld [vmem:[#allocation2 + $0x350] sm:$0xff]
        %v464 = vld [vmem:[#allocation2 + $0x358] sm:$0xff]
        %v465 = vld [vmem:[#allocation2 + $0x360] sm:$0xff]
        %v466 = vld [vmem:[#allocation2 + $0x368] sm:$0xff]
        %v467 = vld [vmem:[#allocation2 + $0x370] sm:$0xff]
        %v468 = vld [vmem:[#allocation2 + $0x378] sm:$0xff]
        %v469 = vld [vmem:[#allocation2 + $0x380] sm:$0xff]
        %v470 = vld [vmem:[#allocation2 + $0x388] sm:$0xff]
        %v471 = vld [vmem:[#allocation2 + $0x390] sm:$0xff]
        %v472 = vld [vmem:[#allocation2 + $0x398] sm:$0xff]
        %v473 = vld [vmem:[#allocation2 + $0x3a0] sm:$0xff]
        %v474 = vld [vmem:[#allocation2 + $0x3a8] sm:$0xff]
        %v475 = vld [vmem:[#allocation2 + $0x3b0] sm:$0xff]
        %v476 = vld [vmem:[#allocation2 + $0x3b8] sm:$0xff]
        %v477 = vld [vmem:[#allocation2 + $0x3c0] sm:$0xff]
        %v478 = vld [vmem:[#allocation2 + $0x3c8] sm:$0xff]
        %v479 = vld [vmem:[#allocation2 + $0x3d0] sm:$0xff]
        %v480 = vld [vmem:[#allocation2 + $0x3d8] sm:$0xff]
        %v481 = vld [vmem:[#allocation2 + $0x3e0] sm:$0xff]
        %v482 = vld [vmem:[#allocation2 + $0x3e8] sm:$0xff]
        %v483 = vld [vmem:[#allocation2 + $0x3f0] sm:$0xff]
        %v484 = vld [vmem:[#allocation2 + $0x3f8] sm:$0xff]
        %v485 = vld [vmem:[#allocation2 + $0x400] sm:$0xff]
        %v486 = vld [vmem:[#allocation2 + $0x408] sm:$0xff]
        %v487 = vld [vmem:[#allocation2 + $0x410] sm:$0xff]
        %v488 = vld [vmem:[#allocation2 + $0x418] sm:$0xff]
        %v489 = vld [vmem:[#allocation2 + $0x420] sm:$0xff]
        %v490 = vld [vmem:[#allocation2 + $0x428] sm:$0xff]
        %v491 = vld [vmem:[#allocation2 + $0x430] sm:$0xff]
        %v492 = vld [vmem:[#allocation2 + $0x438] sm:$0xff]
        %v493 = vld [vmem:[#allocation2 + $0x440] sm:$0xff]
        %v494 = vld [vmem:[#allocation2 + $0x448] sm:$0xff]
        %v495 = vld [vmem:[#allocation2 + $0x450] sm:$0xff]
        %v496 = vld [vmem:[#allocation2 + $0x458] sm:$0xff]
        %v497 = vld [vmem:[#allocation2 + $0x460] sm:$0xff]
        %v498 = vld [vmem:[#allocation2 + $0x468] sm:$0xff]
        %v499 = vld [vmem:[#allocation2 + $0x470] sm:$0xff]
        %v500 = vld [vmem:[#allocation2 + $0x478] sm:$0xff]
        %v501 = vld [vmem:[#allocation2 + $0x480] sm:$0xff]
        %v502 = vld [vmem:[#allocation2 + $0x488] sm:$0xff]
        %v503 = vld [vmem:[#allocation2 + $0x490] sm:$0xff]
        %v504 = vld [vmem:[#allocation2 + $0x498] sm:$0xff]
        %v505 = vld [vmem:[#allocation2 + $0x4a0] sm:$0xff]
        %v506 = vld [vmem:[#allocation2 + $0x4a8] sm:$0xff]
        %v507 = vld [vmem:[#allocation2 + $0x4b0] sm:$0xff]
        %v508 = vld [vmem:[#allocation2 + $0x4b8] sm:$0xff]
        %v509 = vld [vmem:[#allocation2 + $0x4c0] sm:$0xff]
        %v510 = vld [vmem:[#allocation2 + $0x4c8] sm:$0xff]
        %v511 = vld [vmem:[#allocation2 + $0x4d0] sm:$0xff]
        %v512 = vld [vmem:[#allocation2 + $0x4d8] sm:$0xff]
        %v513 = vld [vmem:[#allocation2 + $0x4e0] sm:$0xff]
        %v514 = vld [vmem:[#allocation2 + $0x4e8] sm:$0xff]
        %v515 = vld [vmem:[#allocation2 + $0x4f0] sm:$0xff]
        %v516 = vld [vmem:[#allocation2 + $0x4f8] sm:$0xff]
        %v517 = vld [vmem:[#allocation2 + $0x500] sm:$0xff]
        %v518 = vld [vmem:[#allocation2 + $0x508] sm:$0xff]
        %v519 = vld [vmem:[#allocation2 + $0x510] sm:$0xff]
        %v520 = vld [vmem:[#allocation2 + $0x518] sm:$0xff]
        %v521 = vld [vmem:[#allocation2 + $0x520] sm:$0xff]
        %v522 = vld [vmem:[#allocation2 + $0x528] sm:$0xff]
        %v523 = vld [vmem:[#allocation2 + $0x530] sm:$0xff]
        %v524 = vld [vmem:[#allocation2 + $0x538] sm:$0xff]
        %v525 = vld [vmem:[#allocation2 + $0x540] sm:$0xff]
        %v526 = vld [vmem:[#allocation2 + $0x548] sm:$0xff]
        %v527 = vld [vmem:[#allocation2 + $0x550] sm:$0xff]
        %v528 = vld [vmem:[#allocation2 + $0x558] sm:$0xff]
        %v529 = vld [vmem:[#allocation2 + $0x560] sm:$0xff]
        %v530 = vld [vmem:[#allocation2 + $0x568] sm:$0xff]
        %v531 = vld [vmem:[#allocation2 + $0x570] sm:$0xff]
        %v532 = vld [vmem:[#allocation2 + $0x578] sm:$0xff]
        %v533 = vld [vmem:[#allocation2 + $0x580] sm:$0xff]
        %v534 = vld [vmem:[#allocation2 + $0x588] sm:$0xff]
        %v535 = vld [vmem:[#allocation2 + $0x590] sm:$0xff]
        %v536 = vld [vmem:[#allocation2 + $0x598] sm:$0xff]
        %v537 = vld [vmem:[#allocation2 + $0x5a0] sm:$0xff]
        %v538 = vld [vmem:[#allocation2 + $0x5a8] sm:$0xff]
        %v539 = vld [vmem:[#allocation2 + $0x5b0] sm:$0xff]
        %v540 = vld [vmem:[#allocation2 + $0x5b8] sm:$0xff]
        %v541 = vld [vmem:[#allocation2 + $0x5c0] sm:$0xff]
        %v542 = vld [vmem:[#allocation2 + $0x5c8] sm:$0xff]
        %v543 = vld [vmem:[#allocation2 + $0x5d0] sm:$0xff]
        %v544 = vld [vmem:[#allocation2 + $0x5d8] sm:$0xff]
        %v545 = vld [vmem:[#allocation2 + $0x5e0] sm:$0xff]
        %v546 = vld [vmem:[#allocation2 + $0x5e8] sm:$0xff]
        %v547 = vld [vmem:[#allocation2 + $0x5f0] sm:$0xff]
        %v548 = vld [vmem:[#allocation2 + $0x5f8] sm:$0xff]
        %v549 = vld [vmem:[#allocation2 + $0x600] sm:$0xff]
        %v550 = vld [vmem:[#allocation2 + $0x608] sm:$0xff]
        %v551 = vld [vmem:[#allocation2 + $0x610] sm:$0xff]
        %v552 = vld [vmem:[#allocation2 + $0x618] sm:$0xff]
        %v553 = vld [vmem:[#allocation2 + $0x620] sm:$0xff]
        %v554 = vld [vmem:[#allocation2 + $0x628] sm:$0xff]
        %v555 = vld [vmem:[#allocation2 + $0x630] sm:$0xff]
        %v556 = vld [vmem:[#allocation2 + $0x638] sm:$0xff]
        %v557 = vld [vmem:[#allocation2 + $0x640] sm:$0xff]
        %v558 = vld [vmem:[#allocation2 + $0x648] sm:$0xff]
        %v559 = vld [vmem:[#allocation2 + $0x650] sm:$0xff]
        %v560 = vld [vmem:[#allocation2 + $0x658] sm:$0xff]
        %v561 = vld [vmem:[#allocation2 + $0x660] sm:$0xff]
        %v562 = vld [vmem:[#allocation2 + $0x668] sm:$0xff]
        %v563 = vld [vmem:[#allocation2 + $0x670] sm:$0xff]
        %v564 = vld [vmem:[#allocation2 + $0x678] sm:$0xff]
        %v565 = vld [vmem:[#allocation2 + $0x680] sm:$0xff]
        %v566 = vld [vmem:[#allocation2 + $0x688] sm:$0xff]
        %v567 = vld [vmem:[#allocation2 + $0x690] sm:$0xff]
        %v568 = vld [vmem:[#allocation2 + $0x698] sm:$0xff]
        %v569 = vld [vmem:[#allocation2 + $0x6a0] sm:$0xff]
        %v570 = vld [vmem:[#allocation2 + $0x6a8] sm:$0xff]
        %v571 = vld [vmem:[#allocation2 + $0x6b0] sm:$0xff]
        %v572 = vld [vmem:[#allocation2 + $0x6b8] sm:$0xff]
        %v573 = vld [vmem:[#allocation2 + $0x6c0] sm:$0xff]
        %v574 = vld [vmem:[#allocation2 + $0x6c8] sm:$0xff]
        %v575 = vld [vmem:[#allocation2 + $0x6d0] sm:$0xff]
        %v576 = vld [vmem:[#allocation2 + $0x6d8] sm:$0xff]
        %v577 = vld [vmem:[#allocation2 + $0x6e0] sm:$0xff]
        %v578 = vld [vmem:[#allocation2 + $0x6e8] sm:$0xff]
        %v579 = vld [vmem:[#allocation2 + $0x6f0] sm:$0xff]
        %v580 = vld [vmem:[#allocation2 + $0x6f8] sm:$0xff]
        %v581 = vld [vmem:[#allocation2 + $0x700] sm:$0xff]
        %v582 = vld [vmem:[#allocation2 + $0x708] sm:$0xff]
        %v583 = vld [vmem:[#allocation2 + $0x710] sm:$0xff]
        %v584 = vld [vmem:[#allocation2 + $0x718] sm:$0xff]
        %v585 = vld [vmem:[#allocation2 + $0x720] sm:$0xff]
        %v586 = vld [vmem:[#allocation2 + $0x728] sm:$0xff]
        %v587 = vld [vmem:[#allocation2 + $0x730] sm:$0xff]
        %v588 = vld [vmem:[#allocation2 + $0x738] sm:$0xff]
        %v589 = vld [vmem:[#allocation2 + $0x740] sm:$0xff]
        %v590 = vld [vmem:[#allocation2 + $0x748] sm:$0xff]
        %v591 = vld [vmem:[#allocation2 + $0x750] sm:$0xff]
        %v592 = vld [vmem:[#allocation2 + $0x758] sm:$0xff]
        %v593 = vld [vmem:[#allocation2 + $0x760] sm:$0xff]
        %v594 = vld [vmem:[#allocation2 + $0x768] sm:$0xff]
        %v595 = vld [vmem:[#allocation2 + $0x770] sm:$0xff]
        %v596 = vld [vmem:[#allocation2 + $0x778] sm:$0xff]
        %v597 = vld [vmem:[#allocation2 + $0x780] sm:$0xff]
        %v598 = vld [vmem:[#allocation2 + $0x788] sm:$0xff]
        %v599 = vld [vmem:[#allocation2 + $0x790] sm:$0xff]
        %v600 = vld [vmem:[#allocation2 + $0x798] sm:$0xff]
        %v601 = vld [vmem:[#allocation2 + $0x7a0] sm:$0xff]
        %v602 = vld [vmem:[#allocation2 + $0x7a8] sm:$0xff]
        %v603 = vld [vmem:[#allocation2 + $0x7b0] sm:$0xff]
        %v604 = vld [vmem:[#allocation2 + $0x7b8] sm:$0xff]
        %v605 = vld [vmem:[#allocation2 + $0x7c0] sm:$0xff]
        %v606 = vld [vmem:[#allocation2 + $0x7c8] sm:$0xff]
        %v607 = vld [vmem:[#allocation2 + $0x7d0] sm:$0xff]
        %v608 = vld [vmem:[#allocation2 + $0x7d8] sm:$0xff]
        %v609 = vld [vmem:[#allocation2 + $0x7e0] sm:$0xff]
        %v610 = vld [vmem:[#allocation2 + $0x7e8] sm:$0xff]
        %v611 = vld [vmem:[#allocation2 + $0x7f0] sm:$0xff]
        %v612 = vld [vmem:[#allocation2 + $0x7f8] sm:$0xff]
        %v613 = vld [vmem:[#allocation2 + $0x800] sm:$0xff]
        %v614 = vld [vmem:[#allocation2 + $0x808] sm:$0xff]
        %v615 = vld [vmem:[#allocation2 + $0x810] sm:$0xff]
        %v616 = vld [vmem:[#allocation2 + $0x818] sm:$0xff]
        %v617 = vld [vmem:[#allocation2 + $0x820] sm:$0xff]
        %v618 = vld [vmem:[#allocation2 + $0x828] sm:$0xff]
        %v619 = vld [vmem:[#allocation2 + $0x830] sm:$0xff]
        %v620 = vld [vmem:[#allocation2 + $0x838] sm:$0xff]
        %v621 = vld [vmem:[#allocation2 + $0x840] sm:$0xff]
        %v622 = vld [vmem:[#allocation2 + $0x848] sm:$0xff]
        %v623 = vld [vmem:[#allocation2 + $0x850] sm:$0xff]
        %v624 = vld [vmem:[#allocation2 + $0x858] sm:$0xff]
        %v625 = vld [vmem:[#allocation2 + $0x860] sm:$0xff]
        %v626 = vld [vmem:[#allocation2 + $0x868] sm:$0xff]
        %v627 = vld [vmem:[#allocation2 + $0x870] sm:$0xff]
        %v628 = vld [vmem:[#allocation2 + $0x878] sm:$0xff]
        %v629 = vld [vmem:[#allocation2 + $0x880] sm:$0xff]
        %v630 = vld [vmem:[#allocation2 + $0x888] sm:$0xff]
        %v631 = vld [vmem:[#allocation2 + $0x890] sm:$0xff]
        %v632 = vld [vmem:[#allocation2 + $0x898] sm:$0xff]
        %v633 = vld [vmem:[#allocation2 + $0x8a0] sm:$0xff]
        %v634 = vld [vmem:[#allocation2 + $0x8a8] sm:$0xff]
        %v635 = vld [vmem:[#allocation2 + $0x8b0] sm:$0xff]
        %v636 = vld [vmem:[#allocation2 + $0x8b8] sm:$0xff]
        %v637 = vld [vmem:[#allocation2 + $0x8c0] sm:$0xff]
        %v638 = vld [vmem:[#allocation2 + $0x8c8] sm:$0xff]
        %v639 = vld [vmem:[#allocation2 + $0x8d0] sm:$0xff]
        %v640 = vld [vmem:[#allocation2 + $0x8d8] sm:$0xff]
        %v641 = vld [vmem:[#allocation2 + $0x8e0] sm:$0xff]
        %v642 = vld [vmem:[#allocation2 + $0x8e8] sm:$0xff]
        %v643 = vld [vmem:[#allocation2 + $0x8f0] sm:$0xff]
        %v644 = vld [vmem:[#allocation2 + $0x8f8] sm:$0xff]
        %v645 = vld [vmem:[#allocation2 + $0x900] sm:$0xff]
        %v646 = vld [vmem:[#allocation2 + $0x908] sm:$0xff]
        %v647 = vld [vmem:[#allocation2 + $0x910] sm:$0xff]
        %v648 = vld [vmem:[#allocation2 + $0x918] sm:$0xff]
        %v649 = vld [vmem:[#allocation2 + $0x920] sm:$0xff]
        %v650 = vld [vmem:[#allocation2 + $0x928] sm:$0xff]
        %v651 = vld [vmem:[#allocation2 + $0x930] sm:$0xff]
        %v652 = vld [vmem:[#allocation2 + $0x938] sm:$0xff]
        %v653 = vld [vmem:[#allocation2 + $0x940] sm:$0xff]
        %v654 = vld [vmem:[#allocation2 + $0x948] sm:$0xff]
        %v655 = vld [vmem:[#allocation2 + $0x950] sm:$0xff]
        %v656 = vld [vmem:[#allocation2 + $0x958] sm:$0xff]
        %v657 = vld [vmem:[#allocation2 + $0x960] sm:$0xff]
        %v658 = vld [vmem:[#allocation2 + $0x968] sm:$0xff]
        %v659 = vld [vmem:[#allocation2 + $0x970] sm:$0xff]
        %v660 = vld [vmem:[#allocation2 + $0x978] sm:$0xff]
        %v661 = vld [vmem:[#allocation2 + $0x980] sm:$0xff]
        %v662 = vld [vmem:[#allocation2 + $0x988] sm:$0xff]
        %v663 = vld [vmem:[#allocation2 + $0x990] sm:$0xff]
        %v664 = vld [vmem:[#allocation2 + $0x998] sm:$0xff]
        %v665 = vld [vmem:[#allocation2 + $0x9a0] sm:$0xff]
        %v666 = vld [vmem:[#allocation2 + $0x9a8] sm:$0xff]
        %v667 = vld [vmem:[#allocation2 + $0x9b0] sm:$0xff]
        %v668 = vld [vmem:[#allocation2 + $0x9b8] sm:$0xff]
        %v669 = vld [vmem:[#allocation2 + $0x9c0] sm:$0xff]
        %v670 = vld [vmem:[#allocation2 + $0x9c8] sm:$0xff]
        %v671 = vld [vmem:[#allocation2 + $0x9d0] sm:$0xff]
        %v672 = vld [vmem:[#allocation2 + $0x9d8] sm:$0xff]
        %v673 = vld [vmem:[#allocation2 + $0x9e0] sm:$0xff]
        %v674 = vld [vmem:[#allocation2 + $0x9e8] sm:$0xff]
        %v675 = vld [vmem:[#allocation2 + $0x9f0] sm:$0xff]
        %v676 = vld [vmem:[#allocation2 + $0x9f8] sm:$0xff]
        %v677 = vld [vmem:[#allocation2 + $0xa00] sm:$0xff]
        %v678 = vld [vmem:[#allocation2 + $0xa08] sm:$0xff]
        %v679 = vld [vmem:[#allocation2 + $0xa10] sm:$0xff]
        %v680 = vld [vmem:[#allocation2 + $0xa18] sm:$0xff]
        %v681 = vld [vmem:[#allocation2 + $0xa20] sm:$0xff]
        %v682 = vld [vmem:[#allocation2 + $0xa28] sm:$0xff]
        %v683 = vld [vmem:[#allocation2 + $0xa30] sm:$0xff]
        %v684 = vld [vmem:[#allocation2 + $0xa38] sm:$0xff]
        %v685 = vld [vmem:[#allocation2 + $0xa40] sm:$0xff]
        %v686 = vld [vmem:[#allocation2 + $0xa48] sm:$0xff]
        %v687 = vld [vmem:[#allocation2 + $0xa50] sm:$0xff]
        %v688 = vld [vmem:[#allocation2 + $0xa58] sm:$0xff]
        %v689 = vld [vmem:[#allocation2 + $0xa60] sm:$0xff]
        %v690 = vld [vmem:[#allocation2 + $0xa68] sm:$0xff]
        %v691 = vld [vmem:[#allocation2 + $0xa70] sm:$0xff]
        %v692 = vld [vmem:[#allocation2 + $0xa78] sm:$0xff]
        %v693 = vld [vmem:[#allocation2 + $0xa80] sm:$0xff]
        %v694 = vld [vmem:[#allocation2 + $0xa88] sm:$0xff]
        %v695 = vld [vmem:[#allocation2 + $0xa90] sm:$0xff]
        %v696 = vld [vmem:[#allocation2 + $0xa98] sm:$0xff]
        %v697 = vld [vmem:[#allocation2 + $0xaa0] sm:$0xff]
        %v698 = vld [vmem:[#allocation2 + $0xaa8] sm:$0xff]
        %v699 = vld [vmem:[#allocation2 + $0xab0] sm:$0xff]
        %v700 = vld [vmem:[#allocation2 + $0xab8] sm:$0xff]
        %v701 = vld [vmem:[#allocation2 + $0xac0] sm:$0xff]
        %v702 = vld [vmem:[#allocation2 + $0xac8] sm:$0xff]
        %v703 = vld [vmem:[#allocation2 + $0xad0] sm:$0xff]
        %v704 = vld [vmem:[#allocation2 + $0xad8] sm:$0xff]
        %v705 = vld [vmem:[#allocation2 + $0xae0] sm:$0xff]
        %v706 = vld [vmem:[#allocation2 + $0xae8] sm:$0xff]
        %v707 = vld [vmem:[#allocation2 + $0xaf0] sm:$0xff]
        %v708 = vld [vmem:[#allocation2 + $0xaf8] sm:$0xff]
        %v709 = vld [vmem:[#allocation2 + $0xb00] sm:$0xff]
        %v710 = vld [vmem:[#allocation2 + $0xb08] sm:$0xff]
        %v711 = vld [vmem:[#allocation2 + $0xb10] sm:$0xff]
        %v712 = vld [vmem:[#allocation2 + $0xb18] sm:$0xff]
        %v713 = vld [vmem:[#allocation2 + $0xb20] sm:$0xff]
        %v714 = vld [vmem:[#allocation2 + $0xb28] sm:$0xff]
        %v715 = vld [vmem:[#allocation2 + $0xb30] sm:$0xff]
        %v716 = vld [vmem:[#allocation2 + $0xb38] sm:$0xff]
        %v717 = vld [vmem:[#allocation2 + $0xb40] sm:$0xff]
        %v718 = vld [vmem:[#allocation2 + $0xb48] sm:$0xff]
        %v719 = vld [vmem:[#allocation2 + $0xb50] sm:$0xff]
        %v720 = vld [vmem:[#allocation2 + $0xb58] sm:$0xff]
        %v721 = vld [vmem:[#allocation2 + $0xb60] sm:$0xff]
        %v722 = vld [vmem:[#allocation2 + $0xb68] sm:$0xff]
        %v723 = vld [vmem:[#allocation2 + $0xb70] sm:$0xff]
        %v724 = vld [vmem:[#allocation2 + $0xb78] sm:$0xff]
        %v725 = vld [vmem:[#allocation2 + $0xb80] sm:$0xff]
        %v726 = vld [vmem:[#allocation2 + $0xb88] sm:$0xff]
        %v727 = vld [vmem:[#allocation2 + $0xb90] sm:$0xff]
        %v728 = vld [vmem:[#allocation2 + $0xb98] sm:$0xff]
        %v729 = vld [vmem:[#allocation2 + $0xba0] sm:$0xff]
        %v730 = vld [vmem:[#allocation2 + $0xba8] sm:$0xff]
        %v731 = vld [vmem:[#allocation2 + $0xbb0] sm:$0xff]
        %v732 = vld [vmem:[#allocation2 + $0xbb8] sm:$0xff]
        %v733 = vld [vmem:[#allocation2 + $0xbc0] sm:$0xff]
        %v734 = vld [vmem:[#allocation2 + $0xbc8] sm:$0xff]
        %v735 = vld [vmem:[#allocation2 + $0xbd0] sm:$0xff]
        %v736 = vld [vmem:[#allocation2 + $0xbd8] sm:$0xff]
        %v737 = vld [vmem:[#allocation2 + $0xbe0] sm:$0xff]
        %v738 = vld [vmem:[#allocation2 + $0xbe8] sm:$0xff]
        %v739 = vld [vmem:[#allocation2 + $0xbf0] sm:$0xff]
        %v740 = vld [vmem:[#allocation2 + $0xbf8] sm:$0xff]
        %v743 = vperm.slane %v321, 0
        %v744 = vperm.slane %v321, 1
        %v745 = vperm.slane %v321, 2
        %v746 = vperm.slane %v321, 3
        %v747 = vperm.slane %v321, 4
        %v748 = vperm.slane %v321, 5
        %v749 = vperm.slane %v321, 6
        %v750 = vperm.slane %v321, 7
        %v751 = vperm.slane %v323, 0
        %v752 = vperm.slane %v323, 1
        %v753 = vperm.slane %v323, 2
        %v754 = vperm.slane %v323, 3
        %767 = vmatpush.msra.mxu0 %v537
        %768 = vmatpush.msra.mxu0 %v525
        %769 = vmatpush.msra.mxu0 %v513
        %770 = vmatpush.msra.mxu0 %v501
        %771 = vmatpush.msra.mxu0 %v489
        %772 = vmatpush.msra.mxu0 %v477
        %773 = vmatpush.msra.mxu0 %v465
        %774 = vmatpush.msra.mxu0 %v453
        %775 = vmatpush.msra.mxu0 %v441
        %776 = vmatpush.msra.mxu0 %v429
        %777 = vmatpush.msra.mxu0 %v417
        %778 = vmatpush.msra.mxu0 %v405
        %779 = vmatpush.msra.mxu0 %v393
        %780 = vmatpush.msra.mxu0 %v381
        %781 = vmatpush.msra.mxu0 %v369
        %782 = vmatpush.msra.mxu0 %v357
        %783 = vmatmul.f32.gmra.mxu0 %v353
        %v784 = vpop.f32.mrf.mxu0
        %v785 = vadd.f32 %v743, %v784
        %786 = vmatmul.f32.gmra.mxu0 %v355
        %v787 = vpop.f32.mrf.mxu0
        %v788 = vadd.f32 %v743, %v787
        %789 = vdwg.mxu0
        %790 = vmatpush.msra.mxu0 %v729
        %791 = vmatpush.msra.mxu0 %v717
        %792 = vmatpush.msra.mxu0 %v705
        %793 = vmatpush.msra.mxu0 %v693
        %794 = vmatpush.msra.mxu0 %v681
        %795 = vmatpush.msra.mxu0 %v669
        %796 = vmatpush.msra.mxu0 %v657
        %797 = vmatpush.msra.mxu0 %v645
        %798 = vmatpush.msra.mxu0 %v633
        %799 = vmatpush.msra.mxu0 %v621
        %800 = vmatpush.msra.mxu0 %v609
        %801 = vmatpush.msra.mxu0 %v597
        %802 = vmatpush.msra.mxu0 %v585
        %803 = vmatpush.msra.mxu0 %v573
        %804 = vmatpush.msra.mxu0 %v561
        %805 = vmatpush.msra.mxu0 %v549
        %806 = vmatmul.f32.gmra.mxu0 %v354
        %v807 = vpop.f32.mrf.mxu0
        %v808 = vadd.f32 %v785, %v807
        %809 = vmatmul.f32.gmra.mxu0 %v356
        %v810 = vpop.f32.mrf.mxu0
        %v811 = vadd.f32 %v788, %v810
        %812 = vdwg.mxu0
        %813 = vmatpush.msra.mxu0 %v538
        %814 = vmatpush.msra.mxu0 %v526
        %815 = vmatpush.msra.mxu0 %v514
        %816 = vmatpush.msra.mxu0 %v502
        %817 = vmatpush.msra.mxu0 %v490
        %818 = vmatpush.msra.mxu0 %v478
        %819 = vmatpush.msra.mxu0 %v466
        %820 = vmatpush.msra.mxu0 %v454
        %821 = vmatpush.msra.mxu0 %v442
        %822 = vmatpush.msra.mxu0 %v430
        %823 = vmatpush.msra.mxu0 %v418
        %824 = vmatpush.msra.mxu0 %v406
        %825 = vmatpush.msra.mxu0 %v394
        %826 = vmatpush.msra.mxu0 %v382
        %827 = vmatpush.msra.mxu0 %v370
        %828 = vmatpush.msra.mxu0 %v358
        %829 = vmatmul.f32.gmra.mxu0 %v353
        %v830 = vpop.f32.mrf.mxu0
        %v831 = vadd.f32 %v744, %v830
        %832 = vmatmul.f32.gmra.mxu0 %v355
        %v833 = vpop.f32.mrf.mxu0
        %v834 = vadd.f32 %v744, %v833
        %835 = vdwg.mxu0
        %836 = vmatpush.msra.mxu0 %v730
        %837 = vmatpush.msra.mxu0 %v718
        %838 = vmatpush.msra.mxu0 %v706
        %839 = vmatpush.msra.mxu0 %v694
        %840 = vmatpush.msra.mxu0 %v682
        %841 = vmatpush.msra.mxu0 %v670
        %842 = vmatpush.msra.mxu0 %v658
        %843 = vmatpush.msra.mxu0 %v646
        %844 = vmatpush.msra.mxu0 %v634
        %845 = vmatpush.msra.mxu0 %v622
        %846 = vmatpush.msra.mxu0 %v610
        %847 = vmatpush.msra.mxu0 %v598
        %848 = vmatpush.msra.mxu0 %v586
        %849 = vmatpush.msra.mxu0 %v574
        %850 = vmatpush.msra.mxu0 %v562
        %851 = vmatpush.msra.mxu0 %v550
        %852 = vmatmul.f32.gmra.mxu0 %v354
        %v853 = vpop.f32.mrf.mxu0
        %v854 = vadd.f32 %v831, %v853
        %855 = vmatmul.f32.gmra.mxu0 %v356
        %v856 = vpop.f32.mrf.mxu0
        %v857 = vadd.f32 %v834, %v856
        %858 = vdwg.mxu0
        %859 = vmatpush.msra.mxu0 %v539
        %860 = vmatpush.msra.mxu0 %v527
        %861 = vmatpush.msra.mxu0 %v515
        %862 = vmatpush.msra.mxu0 %v503
        %863 = vmatpush.msra.mxu0 %v491
        %864 = vmatpush.msra.mxu0 %v479
        %865 = vmatpush.msra.mxu0 %v467
        %866 = vmatpush.msra.mxu0 %v455
        %867 = vmatpush.msra.mxu0 %v443
        %868 = vmatpush.msra.mxu0 %v431
        %869 = vmatpush.msra.mxu0 %v419
        %870 = vmatpush.msra.mxu0 %v407
        %871 = vmatpush.msra.mxu0 %v395
        %872 = vmatpush.msra.mxu0 %v383
        %873 = vmatpush.msra.mxu0 %v371
        %874 = vmatpush.msra.mxu0 %v359
        %875 = vmatmul.f32.gmra.mxu0 %v353
        %v876 = vpop.f32.mrf.mxu0
        %v877 = vadd.f32 %v745, %v876
        %878 = vmatmul.f32.gmra.mxu0 %v355
        %v879 = vpop.f32.mrf.mxu0
        %v880 = vadd.f32 %v745, %v879
        %881 = vdwg.mxu0
        %882 = vmatpush.msra.mxu0 %v731
        %883 = vmatpush.msra.mxu0 %v719
        %884 = vmatpush.msra.mxu0 %v707
        %885 = vmatpush.msra.mxu0 %v695
        %886 = vmatpush.msra.mxu0 %v683
        %887 = vmatpush.msra.mxu0 %v671
        %888 = vmatpush.msra.mxu0 %v659
        %889 = vmatpush.msra.mxu0 %v647
        %890 = vmatpush.msra.mxu0 %v635
        %891 = vmatpush.msra.mxu0 %v623
        %892 = vmatpush.msra.mxu0 %v611
        %893 = vmatpush.msra.mxu0 %v599
        %894 = vmatpush.msra.mxu0 %v587
        %895 = vmatpush.msra.mxu0 %v575
        %896 = vmatpush.msra.mxu0 %v563
        %897 = vmatpush.msra.mxu0 %v551
        %898 = vmatmul.f32.gmra.mxu0 %v354
        %v899 = vpop.f32.mrf.mxu0
        %v900 = vadd.f32 %v877, %v899
        %901 = vmatmul.f32.gmra.mxu0 %v356
        %v902 = vpop.f32.mrf.mxu0
        %v903 = vadd.f32 %v880, %v902
        %904 = vdwg.mxu0
        %905 = vmatpush.msra.mxu0 %v540
        %906 = vmatpush.msra.mxu0 %v528
        %907 = vmatpush.msra.mxu0 %v516
        %908 = vmatpush.msra.mxu0 %v504
        %909 = vmatpush.msra.mxu0 %v492
        %910 = vmatpush.msra.mxu0 %v480
        %911 = vmatpush.msra.mxu0 %v468
        %912 = vmatpush.msra.mxu0 %v456
        %913 = vmatpush.msra.mxu0 %v444
        %914 = vmatpush.msra.mxu0 %v432
        %915 = vmatpush.msra.mxu0 %v420
        %916 = vmatpush.msra.mxu0 %v408
        %917 = vmatpush.msra.mxu0 %v396
        %918 = vmatpush.msra.mxu0 %v384
        %919 = vmatpush.msra.mxu0 %v372
        %920 = vmatpush.msra.mxu0 %v360
        %921 = vmatmul.f32.gmra.mxu0 %v353
        %v922 = vpop.f32.mrf.mxu0
        %v923 = vadd.f32 %v746, %v922
        %924 = vmatmul.f32.gmra.mxu0 %v355
        %v925 = vpop.f32.mrf.mxu0
        %v926 = vadd.f32 %v746, %v925
        %927 = vdwg.mxu0
        %928 = vmatpush.msra.mxu0 %v732
        %929 = vmatpush.msra.mxu0 %v720
        %930 = vmatpush.msra.mxu0 %v708
        %931 = vmatpush.msra.mxu0 %v696
        %932 = vmatpush.msra.mxu0 %v684
        %933 = vmatpush.msra.mxu0 %v672
        %934 = vmatpush.msra.mxu0 %v660
        %935 = vmatpush.msra.mxu0 %v648
        %936 = vmatpush.msra.mxu0 %v636
        %937 = vmatpush.msra.mxu0 %v624
        %938 = vmatpush.msra.mxu0 %v612
        %939 = vmatpush.msra.mxu0 %v600
        %940 = vmatpush.msra.mxu0 %v588
        %941 = vmatpush.msra.mxu0 %v576
        %942 = vmatpush.msra.mxu0 %v564
        %943 = vmatpush.msra.mxu0 %v552
        %944 = vmatmul.f32.gmra.mxu0 %v354
        %v945 = vpop.f32.mrf.mxu0
        %v946 = vadd.f32 %v923, %v945
        %947 = vmatmul.f32.gmra.mxu0 %v356
        %v948 = vpop.f32.mrf.mxu0
        %v949 = vadd.f32 %v926, %v948
        %950 = vdwg.mxu0
        %951 = vmatpush.msra.mxu0 %v541
        %952 = vmatpush.msra.mxu0 %v529
        %953 = vmatpush.msra.mxu0 %v517
        %954 = vmatpush.msra.mxu0 %v505
        %955 = vmatpush.msra.mxu0 %v493
        %956 = vmatpush.msra.mxu0 %v481
        %957 = vmatpush.msra.mxu0 %v469
        %958 = vmatpush.msra.mxu0 %v457
        %959 = vmatpush.msra.mxu0 %v445
        %960 = vmatpush.msra.mxu0 %v433
        %961 = vmatpush.msra.mxu0 %v421
        %962 = vmatpush.msra.mxu0 %v409
        %963 = vmatpush.msra.mxu0 %v397
        %964 = vmatpush.msra.mxu0 %v385
        %965 = vmatpush.msra.mxu0 %v373
        %966 = vmatpush.msra.mxu0 %v361
        %967 = vmatmul.f32.gmra.mxu0 %v353
        %v968 = vpop.f32.mrf.mxu0
        %v969 = vadd.f32 %v747, %v968
        %970 = vmatmul.f32.gmra.mxu0 %v355
        %v971 = vpop.f32.mrf.mxu0
        %v972 = vadd.f32 %v747, %v971
        %973 = vdwg.mxu0
        %974 = vmatpush.msra.mxu0 %v733
        %975 = vmatpush.msra.mxu0 %v721
        %976 = vmatpush.msra.mxu0 %v709
        %977 = vmatpush.msra.mxu0 %v697
        %978 = vmatpush.msra.mxu0 %v685
        %979 = vmatpush.msra.mxu0 %v673
        %980 = vmatpush.msra.mxu0 %v661
        %981 = vmatpush.msra.mxu0 %v649
        %982 = vmatpush.msra.mxu0 %v637
        %983 = vmatpush.msra.mxu0 %v625
        %984 = vmatpush.msra.mxu0 %v613
        %985 = vmatpush.msra.mxu0 %v601
        %986 = vmatpush.msra.mxu0 %v589
        %987 = vmatpush.msra.mxu0 %v577
        %988 = vmatpush.msra.mxu0 %v565
        %989 = vmatpush.msra.mxu0 %v553
        %990 = vmatmul.f32.gmra.mxu0 %v354
        %v991 = vpop.f32.mrf.mxu0
        %v992 = vadd.f32 %v969, %v991
        %993 = vmatmul.f32.gmra.mxu0 %v356
        %v994 = vpop.f32.mrf.mxu0
        %v995 = vadd.f32 %v972, %v994
        %996 = vdwg.mxu0
        %997 = vmatpush.msra.mxu0 %v542
        %998 = vmatpush.msra.mxu0 %v530
        %999 = vmatpush.msra.mxu0 %v518
        %1000 = vmatpush.msra.mxu0 %v506
        %1001 = vmatpush.msra.mxu0 %v494
        %1002 = vmatpush.msra.mxu0 %v482
        %1003 = vmatpush.msra.mxu0 %v470
        %1004 = vmatpush.msra.mxu0 %v458
        %1005 = vmatpush.msra.mxu0 %v446
        %1006 = vmatpush.msra.mxu0 %v434
        %1007 = vmatpush.msra.mxu0 %v422
        %1008 = vmatpush.msra.mxu0 %v410
        %1009 = vmatpush.msra.mxu0 %v398
        %1010 = vmatpush.msra.mxu0 %v386
        %1011 = vmatpush.msra.mxu0 %v374
        %1012 = vmatpush.msra.mxu0 %v362
        %1013 = vmatmul.f32.gmra.mxu0 %v353
        %v1014 = vpop.f32.mrf.mxu0
        %v1015 = vadd.f32 %v748, %v1014
        %1016 = vmatmul.f32.gmra.mxu0 %v355
        %v1017 = vpop.f32.mrf.mxu0
        %v1018 = vadd.f32 %v748, %v1017
        %1019 = vdwg.mxu0
        %1020 = vmatpush.msra.mxu0 %v734
        %1021 = vmatpush.msra.mxu0 %v722
        %1022 = vmatpush.msra.mxu0 %v710
        %1023 = vmatpush.msra.mxu0 %v698
        %1024 = vmatpush.msra.mxu0 %v686
        %1025 = vmatpush.msra.mxu0 %v674
        %1026 = vmatpush.msra.mxu0 %v662
        %1027 = vmatpush.msra.mxu0 %v650
        %1028 = vmatpush.msra.mxu0 %v638
        %1029 = vmatpush.msra.mxu0 %v626
        %1030 = vmatpush.msra.mxu0 %v614
        %1031 = vmatpush.msra.mxu0 %v602
        %1032 = vmatpush.msra.mxu0 %v590
        %1033 = vmatpush.msra.mxu0 %v578
        %1034 = vmatpush.msra.mxu0 %v566
        %1035 = vmatpush.msra.mxu0 %v554
        %1036 = vmatmul.f32.gmra.mxu0 %v354
        %v1037 = vpop.f32.mrf.mxu0
        %v1038 = vadd.f32 %v1015, %v1037
        %1039 = vmatmul.f32.gmra.mxu0 %v356
        %v1040 = vpop.f32.mrf.mxu0
        %v1041 = vadd.f32 %v1018, %v1040
        %1042 = vdwg.mxu0
        %1043 = vmatpush.msra.mxu0 %v543
        %1044 = vmatpush.msra.mxu0 %v531
        %1045 = vmatpush.msra.mxu0 %v519
        %1046 = vmatpush.msra.mxu0 %v507
        %1047 = vmatpush.msra.mxu0 %v495
        %1048 = vmatpush.msra.mxu0 %v483
        %1049 = vmatpush.msra.mxu0 %v471
        %1050 = vmatpush.msra.mxu0 %v459
        %1051 = vmatpush.msra.mxu0 %v447
        %1052 = vmatpush.msra.mxu0 %v435
        %1053 = vmatpush.msra.mxu0 %v423
        %1054 = vmatpush.msra.mxu0 %v411
        %1055 = vmatpush.msra.mxu0 %v399
        %1056 = vmatpush.msra.mxu0 %v387
        %1057 = vmatpush.msra.mxu0 %v375
        %1058 = vmatpush.msra.mxu0 %v363
        %1059 = vmatmul.f32.gmra.mxu0 %v353
        %v1060 = vpop.f32.mrf.mxu0
        %v1061 = vadd.f32 %v749, %v1060
        %1062 = vmatmul.f32.gmra.mxu0 %v355
        %v1063 = vpop.f32.mrf.mxu0
        %v1064 = vadd.f32 %v749, %v1063
        %1065 = vdwg.mxu0
        %1066 = vmatpush.msra.mxu0 %v735
        %1067 = vmatpush.msra.mxu0 %v723
        %1068 = vmatpush.msra.mxu0 %v711
        %1069 = vmatpush.msra.mxu0 %v699
        %1070 = vmatpush.msra.mxu0 %v687
        %1071 = vmatpush.msra.mxu0 %v675
        %1072 = vmatpush.msra.mxu0 %v663
        %1073 = vmatpush.msra.mxu0 %v651
        %1074 = vmatpush.msra.mxu0 %v639
        %1075 = vmatpush.msra.mxu0 %v627
        %1076 = vmatpush.msra.mxu0 %v615
        %1077 = vmatpush.msra.mxu0 %v603
        %1078 = vmatpush.msra.mxu0 %v591
        %1079 = vmatpush.msra.mxu0 %v579
        %1080 = vmatpush.msra.mxu0 %v567
        %1081 = vmatpush.msra.mxu0 %v555
        %1082 = vmatmul.f32.gmra.mxu0 %v354
        %v1083 = vpop.f32.mrf.mxu0
        %v1084 = vadd.f32 %v1061, %v1083
        %1085 = vmatmul.f32.gmra.mxu0 %v356
        %v1086 = vpop.f32.mrf.mxu0
        %v1087 = vadd.f32 %v1064, %v1086
        %1088 = vdwg.mxu0
        %1089 = vmatpush.msra.mxu0 %v544
        %1090 = vmatpush.msra.mxu0 %v532
        %1091 = vmatpush.msra.mxu0 %v520
        %1092 = vmatpush.msra.mxu0 %v508
        %1093 = vmatpush.msra.mxu0 %v496
        %1094 = vmatpush.msra.mxu0 %v484
        %1095 = vmatpush.msra.mxu0 %v472
        %1096 = vmatpush.msra.mxu0 %v460
        %1097 = vmatpush.msra.mxu0 %v448
        %1098 = vmatpush.msra.mxu0 %v436
        %1099 = vmatpush.msra.mxu0 %v424
        %1100 = vmatpush.msra.mxu0 %v412
        %1101 = vmatpush.msra.mxu0 %v400
        %1102 = vmatpush.msra.mxu0 %v388
        %1103 = vmatpush.msra.mxu0 %v376
        %1104 = vmatpush.msra.mxu0 %v364
        %1105 = vmatmul.f32.gmra.mxu0 %v353
        %v1106 = vpop.f32.mrf.mxu0
        %v1107 = vadd.f32 %v750, %v1106
        %1108 = vmatmul.f32.gmra.mxu0 %v355
        %v1109 = vpop.f32.mrf.mxu0
        %v1110 = vadd.f32 %v750, %v1109
        %1111 = vdwg.mxu0
        %1112 = vmatpush.msra.mxu0 %v736
        %1113 = vmatpush.msra.mxu0 %v724
        %1114 = vmatpush.msra.mxu0 %v712
        %1115 = vmatpush.msra.mxu0 %v700
        %1116 = vmatpush.msra.mxu0 %v688
        %1117 = vmatpush.msra.mxu0 %v676
        %1118 = vmatpush.msra.mxu0 %v664
        %1119 = vmatpush.msra.mxu0 %v652
        %1120 = vmatpush.msra.mxu0 %v640
        %1121 = vmatpush.msra.mxu0 %v628
        %1122 = vmatpush.msra.mxu0 %v616
        %1123 = vmatpush.msra.mxu0 %v604
        %1124 = vmatpush.msra.mxu0 %v592
        %1125 = vmatpush.msra.mxu0 %v580
        %1126 = vmatpush.msra.mxu0 %v568
        %1127 = vmatpush.msra.mxu0 %v556
        %1128 = vmatmul.f32.gmra.mxu0 %v354
        %v1129 = vpop.f32.mrf.mxu0
        %v1130 = vadd.f32 %v1107, %v1129
        %1131 = vmatmul.f32.gmra.mxu0 %v356
        %v1132 = vpop.f32.mrf.mxu0
        %v1133 = vadd.f32 %v1110, %v1132
        %1134 = vdwg.mxu0
        %1135 = vmatpush.msra.mxu0 %v545
        %1136 = vmatpush.msra.mxu0 %v533
        %1137 = vmatpush.msra.mxu0 %v521
        %1138 = vmatpush.msra.mxu0 %v509
        %1139 = vmatpush.msra.mxu0 %v497
        %1140 = vmatpush.msra.mxu0 %v485
        %1141 = vmatpush.msra.mxu0 %v473
        %1142 = vmatpush.msra.mxu0 %v461
        %1143 = vmatpush.msra.mxu0 %v449
        %1144 = vmatpush.msra.mxu0 %v437
        %1145 = vmatpush.msra.mxu0 %v425
        %1146 = vmatpush.msra.mxu0 %v413
        %1147 = vmatpush.msra.mxu0 %v401
        %1148 = vmatpush.msra.mxu0 %v389
        %1149 = vmatpush.msra.mxu0 %v377
        %1150 = vmatpush.msra.mxu0 %v365
        %1151 = vmatmul.f32.gmra.mxu0 %v353
        %v1152 = vpop.f32.mrf.mxu0
        %v1153 = vadd.f32 %v751, %v1152
        %1154 = vmatmul.f32.gmra.mxu0 %v355
        %v1155 = vpop.f32.mrf.mxu0
        %v1156 = vadd.f32 %v751, %v1155
        %1157 = vdwg.mxu0
        %1158 = vmatpush.msra.mxu0 %v737
        %1159 = vmatpush.msra.mxu0 %v725
        %1160 = vmatpush.msra.mxu0 %v713
        %1161 = vmatpush.msra.mxu0 %v701
        %1162 = vmatpush.msra.mxu0 %v689
        %1163 = vmatpush.msra.mxu0 %v677
        %1164 = vmatpush.msra.mxu0 %v665
        %1165 = vmatpush.msra.mxu0 %v653
        %1166 = vmatpush.msra.mxu0 %v641
        %1167 = vmatpush.msra.mxu0 %v629
        %1168 = vmatpush.msra.mxu0 %v617
        %1169 = vmatpush.msra.mxu0 %v605
        %1170 = vmatpush.msra.mxu0 %v593
        %1171 = vmatpush.msra.mxu0 %v581
        %1172 = vmatpush.msra.mxu0 %v569
        %1173 = vmatpush.msra.mxu0 %v557
        %1174 = vmatmul.f32.gmra.mxu0 %v354
        %v1175 = vpop.f32.mrf.mxu0
        %v1176 = vadd.f32 %v1153, %v1175
        %1177 = vmatmul.f32.gmra.mxu0 %v356
        %v1178 = vpop.f32.mrf.mxu0
        %v1179 = vadd.f32 %v1156, %v1178
        %1180 = vdwg.mxu0
        %1181 = vmatpush.msra.mxu0 %v546
        %1182 = vmatpush.msra.mxu0 %v534
        %1183 = vmatpush.msra.mxu0 %v522
        %1184 = vmatpush.msra.mxu0 %v510
        %1185 = vmatpush.msra.mxu0 %v498
        %1186 = vmatpush.msra.mxu0 %v486
        %1187 = vmatpush.msra.mxu0 %v474
        %1188 = vmatpush.msra.mxu0 %v462
        %1189 = vmatpush.msra.mxu0 %v450
        %1190 = vmatpush.msra.mxu0 %v438
        %1191 = vmatpush.msra.mxu0 %v426
        %1192 = vmatpush.msra.mxu0 %v414
        %1193 = vmatpush.msra.mxu0 %v402
        %1194 = vmatpush.msra.mxu0 %v390
        %1195 = vmatpush.msra.mxu0 %v378
        %1196 = vmatpush.msra.mxu0 %v366
        %1197 = vmatmul.f32.gmra.mxu0 %v353
        %v1198 = vpop.f32.mrf.mxu0
        %v1199 = vadd.f32 %v752, %v1198
        %1200 = vmatmul.f32.gmra.mxu0 %v355
        %v1201 = vpop.f32.mrf.mxu0
        %v1202 = vadd.f32 %v752, %v1201
        %1203 = vdwg.mxu0
        %1204 = vmatpush.msra.mxu0 %v738
        %1205 = vmatpush.msra.mxu0 %v726
        %1206 = vmatpush.msra.mxu0 %v714
        %1207 = vmatpush.msra.mxu0 %v702
        %1208 = vmatpush.msra.mxu0 %v690
        %1209 = vmatpush.msra.mxu0 %v678
        %1210 = vmatpush.msra.mxu0 %v666
        %1211 = vmatpush.msra.mxu0 %v654
        %1212 = vmatpush.msra.mxu0 %v642
        %1213 = vmatpush.msra.mxu0 %v630
        %1214 = vmatpush.msra.mxu0 %v618
        %1215 = vmatpush.msra.mxu0 %v606
        %1216 = vmatpush.msra.mxu0 %v594
        %1217 = vmatpush.msra.mxu0 %v582
        %1218 = vmatpush.msra.mxu0 %v570
        %1219 = vmatpush.msra.mxu0 %v558
        %1220 = vmatmul.f32.gmra.mxu0 %v354
        %v1221 = vpop.f32.mrf.mxu0
        %v1222 = vadd.f32 %v1199, %v1221
        %1223 = vmatmul.f32.gmra.mxu0 %v356
        %v1224 = vpop.f32.mrf.mxu0
        %v1225 = vadd.f32 %v1202, %v1224
        %1226 = vdwg.mxu0
        %1227 = vmatpush.msra.mxu0 %v547
        %1228 = vmatpush.msra.mxu0 %v535
        %1229 = vmatpush.msra.mxu0 %v523
        %1230 = vmatpush.msra.mxu0 %v511
        %1231 = vmatpush.msra.mxu0 %v499
        %1232 = vmatpush.msra.mxu0 %v487
        %1233 = vmatpush.msra.mxu0 %v475
        %1234 = vmatpush.msra.mxu0 %v463
        %1235 = vmatpush.msra.mxu0 %v451
        %1236 = vmatpush.msra.mxu0 %v439
        %1237 = vmatpush.msra.mxu0 %v427
        %1238 = vmatpush.msra.mxu0 %v415
        %1239 = vmatpush.msra.mxu0 %v403
        %1240 = vmatpush.msra.mxu0 %v391
        %1241 = vmatpush.msra.mxu0 %v379
        %1242 = vmatpush.msra.mxu0 %v367
        %1243 = vmatmul.f32.gmra.mxu0 %v353
        %v1244 = vpop.f32.mrf.mxu0
        %v1245 = vadd.f32 %v753, %v1244
        %1246 = vmatmul.f32.gmra.mxu0 %v355
        %v1247 = vpop.f32.mrf.mxu0
        %v1248 = vadd.f32 %v753, %v1247
        %1249 = vdwg.mxu0
        %1250 = vmatpush.msra.mxu0 %v739
        %1251 = vmatpush.msra.mxu0 %v727
        %1252 = vmatpush.msra.mxu0 %v715
        %1253 = vmatpush.msra.mxu0 %v703
        %1254 = vmatpush.msra.mxu0 %v691
        %1255 = vmatpush.msra.mxu0 %v679
        %1256 = vmatpush.msra.mxu0 %v667
        %1257 = vmatpush.msra.mxu0 %v655
        %1258 = vmatpush.msra.mxu0 %v643
        %1259 = vmatpush.msra.mxu0 %v631
        %1260 = vmatpush.msra.mxu0 %v619
        %1261 = vmatpush.msra.mxu0 %v607
        %1262 = vmatpush.msra.mxu0 %v595
        %1263 = vmatpush.msra.mxu0 %v583
        %1264 = vmatpush.msra.mxu0 %v571
        %1265 = vmatpush.msra.mxu0 %v559
        %1266 = vmatmul.f32.gmra.mxu0 %v354
        %v1267 = vpop.f32.mrf.mxu0
        %v1268 = vadd.f32 %v1245, %v1267
        %1269 = vmatmul.f32.gmra.mxu0 %v356
        %v1270 = vpop.f32.mrf.mxu0
        %v1271 = vadd.f32 %v1248, %v1270
        %1272 = vdwg.mxu0
        %1273 = vmatpush.msra.mxu0 %v548
        %1274 = vmatpush.msra.mxu0 %v536
        %1275 = vmatpush.msra.mxu0 %v524
        %1276 = vmatpush.msra.mxu0 %v512
        %1277 = vmatpush.msra.mxu0 %v500
        %1278 = vmatpush.msra.mxu0 %v488
        %1279 = vmatpush.msra.mxu0 %v476
        %1280 = vmatpush.msra.mxu0 %v464
        %1281 = vmatpush.msra.mxu0 %v452
        %1282 = vmatpush.msra.mxu0 %v440
        %1283 = vmatpush.msra.mxu0 %v428
        %1284 = vmatpush.msra.mxu0 %v416
        %1285 = vmatpush.msra.mxu0 %v404
        %1286 = vmatpush.msra.mxu0 %v392
        %1287 = vmatpush.msra.mxu0 %v380
        %1288 = vmatpush.msra.mxu0 %v368
        %1289 = vmatmul.f32.gmra.mxu0 %v353
        %v1290 = vpop.f32.mrf.mxu0
        %v1291 = vadd.f32 %v754, %v1290
        %1292 = vmatmul.f32.gmra.mxu0 %v355
        %v1293 = vpop.f32.mrf.mxu0
        %v1294 = vadd.f32 %v754, %v1293
        %1295 = vdwg.mxu0
        %1296 = vmatpush.msra.mxu0 %v740
        %1297 = vmatpush.msra.mxu0 %v728
        %1298 = vmatpush.msra.mxu0 %v716
        %1299 = vmatpush.msra.mxu0 %v704
        %1300 = vmatpush.msra.mxu0 %v692
        %1301 = vmatpush.msra.mxu0 %v680
        %1302 = vmatpush.msra.mxu0 %v668
        %1303 = vmatpush.msra.mxu0 %v656
        %1304 = vmatpush.msra.mxu0 %v644
        %1305 = vmatpush.msra.mxu0 %v632
        %1306 = vmatpush.msra.mxu0 %v620
        %1307 = vmatpush.msra.mxu0 %v608
        %1308 = vmatpush.msra.mxu0 %v596
        %1309 = vmatpush.msra.mxu0 %v584
        %1310 = vmatpush.msra.mxu0 %v572
        %1311 = vmatpush.msra.mxu0 %v560
        %1312 = vmatmul.f32.gmra.mxu0 %v354
        %v1313 = vpop.f32.mrf.mxu0
        %v1314 = vadd.f32 %v1291, %v1313
        %1315 = vmatmul.f32.gmra.mxu0 %v356
        %v1316 = vpop.f32.mrf.mxu0
        %v1317 = vadd.f32 %v1294, %v1316
        %1318 = vdwg.mxu0
        %v1319 = vadd.f32 %v808, 3.0
        %v1320 = vadd.f32 %v854, 3.0
        %v1321 = vadd.f32 %v900, 3.0
        %v1322 = vadd.f32 %v946, 3.0
        %v1323 = vadd.f32 %v992, 3.0
        %v1324 = vadd.f32 %v1038, 3.0
        %v1325 = vadd.f32 %v1084, 3.0
        %v1326 = vadd.f32 %v1130, 3.0
        %v1327 = vadd.f32 %v1176, 3.0
        %v1328 = vadd.f32 %v1222, 3.0
        %v1329 = vadd.f32 %v1268, 3.0
        %v1330 = vadd.f32 %v1314, 3.0
        %v1331 = vadd.f32 %v811, 3.0
        %v1332 = vadd.f32 %v857, 3.0
        %v1333 = vadd.f32 %v903, 3.0
        %v1334 = vadd.f32 %v949, 3.0
        %v1335 = vadd.f32 %v995, 3.0
        %v1336 = vadd.f32 %v1041, 3.0
        %v1337 = vadd.f32 %v1087, 3.0
        %v1338 = vadd.f32 %v1133, 3.0
        %v1339 = vadd.f32 %v1179, 3.0
        %v1340 = vadd.f32 %v1225, 3.0
        %v1341 = vadd.f32 %v1271, 3.0
        %v1342 = vadd.f32 %v1317, 3.0
        %v1343 = vmax.f32 %v1319, 0.0
        %v1344 = vmax.f32 %v1320, 0.0
        %v1345 = vmax.f32 %v1321, 0.0
        %v1346 = vmax.f32 %v1322, 0.0
        %v1347 = vmax.f32 %v1323, 0.0
        %v1348 = vmax.f32 %v1324, 0.0
        %v1349 = vmax.f32 %v1325, 0.0
        %v1350 = vmax.f32 %v1326, 0.0
        %v1351 = vmax.f32 %v1327, 0.0
        %v1352 = vmax.f32 %v1328, 0.0
        %v1353 = vmax.f32 %v1329, 0.0
        %v1354 = vmax.f32 %v1330, 0.0
        %v1355 = vmax.f32 %v1331, 0.0
        %v1356 = vmax.f32 %v1332, 0.0
        %v1357 = vmax.f32 %v1333, 0.0
        %v1358 = vmax.f32 %v1334, 0.0
        %v1359 = vmax.f32 %v1335, 0.0
        %v1360 = vmax.f32 %v1336, 0.0
        %v1361 = vmax.f32 %v1337, 0.0
        %v1362 = vmax.f32 %v1338, 0.0
        %v1363 = vmax.f32 %v1339, 0.0
        %v1364 = vmax.f32 %v1340, 0.0
        %v1365 = vmax.f32 %v1341, 0.0
        %v1366 = vmax.f32 %v1342, 0.0
        %v1367 = vmin.f32 %v1343, 6.0
        %v1368 = vmin.f32 %v1344, 6.0
        %v1369 = vmin.f32 %v1345, 6.0
        %v1370 = vmin.f32 %v1346, 6.0
        %v1371 = vmin.f32 %v1347, 6.0
        %v1372 = vmin.f32 %v1348, 6.0
        %v1373 = vmin.f32 %v1349, 6.0
        %v1374 = vmin.f32 %v1350, 6.0
        %v1375 = vmin.f32 %v1351, 6.0
        %v1376 = vmin.f32 %v1352, 6.0
        %v1377 = vmin.f32 %v1353, 6.0
        %v1378 = vmin.f32 %v1354, 6.0
        %v1379 = vmin.f32 %v1355, 6.0
        %v1380 = vmin.f32 %v1356, 6.0
        %v1381 = vmin.f32 %v1357, 6.0
        %v1382 = vmin.f32 %v1358, 6.0
        %v1383 = vmin.f32 %v1359, 6.0
        %v1384 = vmin.f32 %v1360, 6.0
        %v1385 = vmin.f32 %v1361, 6.0
        %v1386 = vmin.f32 %v1362, 6.0
        %v1387 = vmin.f32 %v1363, 6.0
        %v1388 = vmin.f32 %v1364, 6.0
        %v1389 = vmin.f32 %v1365, 6.0
        %v1390 = vmin.f32 %v1366, 6.0
        %v1391 = vmul.f32 %v808, %v1367
        %v1392 = vmul.f32 %v854, %v1368
        %v1393 = vmul.f32 %v900, %v1369
        %v1394 = vmul.f32 %v946, %v1370
        %v1395 = vmul.f32 %v992, %v1371
        %v1396 = vmul.f32 %v1038, %v1372
        %v1397 = vmul.f32 %v1084, %v1373
        %v1398 = vmul.f32 %v1130, %v1374
        %v1399 = vmul.f32 %v1176, %v1375
        %v1400 = vmul.f32 %v1222, %v1376
        %v1401 = vmul.f32 %v1268, %v1377
        %v1402 = vmul.f32 %v1314, %v1378
        %v1403 = vmul.f32 %v811, %v1379
        %v1404 = vmul.f32 %v857, %v1380
        %v1405 = vmul.f32 %v903, %v1381
        %v1406 = vmul.f32 %v949, %v1382
        %v1407 = vmul.f32 %v995, %v1383
        %v1408 = vmul.f32 %v1041, %v1384
        %v1409 = vmul.f32 %v1087, %v1385
        %v1410 = vmul.f32 %v1133, %v1386
        %v1411 = vmul.f32 %v1179, %v1387
        %v1412 = vmul.f32 %v1225, %v1388
        %v1413 = vmul.f32 %v1271, %v1389
        %v1414 = vmul.f32 %v1317, %v1390
        %v1415 = vmul.f32 %v1391, 0.16666667
        %v1416 = vmul.f32 %v1392, 0.16666667
        %v1417 = vmul.f32 %v1393, 0.16666667
        %v1418 = vmul.f32 %v1394, 0.16666667
        %v1419 = vmul.f32 %v1395, 0.16666667
        %v1420 = vmul.f32 %v1396, 0.16666667
        %v1421 = vmul.f32 %v1397, 0.16666667
        %v1422 = vmul.f32 %v1398, 0.16666667
        %v1423 = vmul.f32 %v1399, 0.16666667
        %v1424 = vmul.f32 %v1400, 0.16666667
        %v1425 = vmul.f32 %v1401, 0.16666667
        %v1426 = vmul.f32 %v1402, 0.16666667
        %v1427 = vmul.f32 %v1403, 0.16666667
        %v1428 = vmul.f32 %v1404, 0.16666667
        %v1429 = vmul.f32 %v1405, 0.16666667
        %v1430 = vmul.f32 %v1406, 0.16666667
        %v1431 = vmul.f32 %v1407, 0.16666667
        %v1432 = vmul.f32 %v1408, 0.16666667
        %v1433 = vmul.f32 %v1409, 0.16666667
        %v1434 = vmul.f32 %v1410, 0.16666667
        %v1435 = vmul.f32 %v1411, 0.16666667
        %v1436 = vmul.f32 %v1412, 0.16666667
        %v1437 = vmul.f32 %v1413, 0.16666667
        %v1438 = vmul.f32 %v1414, 0.16666667
        %s1439 = scalar_lea.vmem [#allocation7], 5
        %v1440 = vld [vmem:[%s1439] ss:$8 sm:$0xf]
        %v1442 = vperm.slane %v1440, 0
        %v1443 = vperm.slane %v1440, 1
        %v1444 = vperm.slane %v1440, 2
        %v1445 = vperm.slane %v1440, 3
        %v1450 = vmul.f32 %v1415, %v1442
        %v1451 = vmul.f32 %v1416, %v1443
        %v1452 = vmul.f32 %v1417, %v1444
        %v1453 = vmul.f32 %v1418, %v1445
        %v1454 = vmul.f32 %v1427, %v1442
        %v1455 = vmul.f32 %v1428, %v1443
        %v1456 = vmul.f32 %v1429, %v1444
        %v1457 = vmul.f32 %v1430, %v1445
        %s1458 = scalar_lea.vmem [#allocation7], 6
        %v1459 = vld [vmem:[%s1458] ss:$8 sm:$0xf]
        %v1461 = vperm.slane %v1459, 0
        %v1462 = vperm.slane %v1459, 1
        %v1463 = vperm.slane %v1459, 2
        %v1464 = vperm.slane %v1459, 3
        %v1469 = vmul.f32 %v1419, %v1461
        %v1470 = vmul.f32 %v1420, %v1462
        %v1471 = vmul.f32 %v1421, %v1463
        %v1472 = vmul.f32 %v1422, %v1464
        %v1473 = vmul.f32 %v1431, %v1461
        %v1474 = vmul.f32 %v1432, %v1462
        %v1475 = vmul.f32 %v1433, %v1463
        %v1476 = vmul.f32 %v1434, %v1464
        %v1477 = vadd.f32 %v1450, %v1469
        %v1478 = vadd.f32 %v1451, %v1470
        %v1479 = vadd.f32 %v1452, %v1471
        %v1480 = vadd.f32 %v1453, %v1472
        %v1481 = vadd.f32 %v1454, %v1473
        %v1482 = vadd.f32 %v1455, %v1474
        %v1483 = vadd.f32 %v1456, %v1475
        %v1484 = vadd.f32 %v1457, %v1476
        %s1485 = scalar_lea.vmem [#allocation7], 7
        %v1486 = vld [vmem:[%s1485] ss:$8 sm:$0xf]
        %v1488 = vperm.slane %v1486, 0
        %v1489 = vperm.slane %v1486, 1
        %v1490 = vperm.slane %v1486, 2
        %v1491 = vperm.slane %v1486, 3
        %v1496 = vmul.f32 %v1423, %v1488
        %v1497 = vmul.f32 %v1424, %v1489
        %v1498 = vmul.f32 %v1425, %v1490
        %v1499 = vmul.f32 %v1426, %v1491
        %v1500 = vmul.f32 %v1435, %v1488
        %v1501 = vmul.f32 %v1436, %v1489
        %v1502 = vmul.f32 %v1437, %v1490
        %v1503 = vmul.f32 %v1438, %v1491
        %v1504 = vadd.f32 %v1477, %v1496
        %v1505 = vadd.f32 %v1478, %v1497
        %v1506 = vadd.f32 %v1479, %v1498
        %v1507 = vadd.f32 %v1480, %v1499
        %v1508 = vadd.f32 %v1481, %v1500
        %v1509 = vadd.f32 %v1482, %v1501
        %v1510 = vadd.f32 %v1483, %v1502
        %v1511 = vadd.f32 %v1484, %v1503
        %s1512 = scalar_lea.vmem [#allocation7], 2
        %v1513 = vld [vmem:[%s1512] ss:$8 sm:$0xf]
        %v1515 = vperm.slane %v1513, 0
        %v1516 = vperm.slane %v1513, 1
        %v1517 = vperm.slane %v1513, 2
        %v1518 = vperm.slane %v1513, 3
        %v1523 = vmul.f32 %v1415, %v1515
        %v1524 = vmul.f32 %v1416, %v1516
        %v1525 = vmul.f32 %v1417, %v1517
        %v1526 = vmul.f32 %v1418, %v1518
        %v1527 = vmul.f32 %v1427, %v1515
        %v1528 = vmul.f32 %v1428, %v1516
        %v1529 = vmul.f32 %v1429, %v1517
        %v1530 = vmul.f32 %v1430, %v1518
        %s1531 = scalar_lea.vmem [#allocation7], 3
        %v1532 = vld [vmem:[%s1531] ss:$8 sm:$0xf]
        %v1534 = vperm.slane %v1532, 0
        %v1535 = vperm.slane %v1532, 1
        %v1536 = vperm.slane %v1532, 2
        %v1537 = vperm.slane %v1532, 3
        %v1542 = vmul.f32 %v1419, %v1534
        %v1543 = vmul.f32 %v1420, %v1535
        %v1544 = vmul.f32 %v1421, %v1536
        %v1545 = vmul.f32 %v1422, %v1537
        %v1546 = vmul.f32 %v1431, %v1534
        %v1547 = vmul.f32 %v1432, %v1535
        %v1548 = vmul.f32 %v1433, %v1536
        %v1549 = vmul.f32 %v1434, %v1537
        %v1550 = vadd.f32 %v1523, %v1542
        %v1551 = vadd.f32 %v1524, %v1543
        %v1552 = vadd.f32 %v1525, %v1544
        %v1553 = vadd.f32 %v1526, %v1545
        %v1554 = vadd.f32 %v1527, %v1546
        %v1555 = vadd.f32 %v1528, %v1547
        %v1556 = vadd.f32 %v1529, %v1548
        %v1557 = vadd.f32 %v1530, %v1549
        %s1558 = scalar_lea.vmem [#allocation7], 4
        %v1559 = vld [vmem:[%s1558] ss:$8 sm:$0xf]
        %v1561 = vperm.slane %v1559, 0
        %v1562 = vperm.slane %v1559, 1
        %v1563 = vperm.slane %v1559, 2
        %v1564 = vperm.slane %v1559, 3
        %v1569 = vmul.f32 %v1423, %v1561
        %v1570 = vmul.f32 %v1424, %v1562
        %v1571 = vmul.f32 %v1425, %v1563
        %v1572 = vmul.f32 %v1426, %v1564
        %v1573 = vmul.f32 %v1435, %v1561
        %v1574 = vmul.f32 %v1436, %v1562
        %v1575 = vmul.f32 %v1437, %v1563
        %v1576 = vmul.f32 %v1438, %v1564
        %v1577 = vadd.f32 %v1550, %v1569
        %v1578 = vadd.f32 %v1551, %v1570
        %v1579 = vadd.f32 %v1552, %v1571
        %v1580 = vadd.f32 %v1553, %v1572
        %v1581 = vadd.f32 %v1554, %v1573
        %v1582 = vadd.f32 %v1555, %v1574
        %v1583 = vadd.f32 %v1556, %v1575
        %v1584 = vadd.f32 %v1557, %v1576
        %vm1585 = vcmask 130048
        %v1587 = vsel %vm1585, %v343, 0
        %v1590 = vsel %vm1585, %v344, 0
        %1592 = vmatpush.msra.mxu0 0.0
        %1593 = vmatpush.msra.mxu0 0.0
        %1594 = vmatpush.msra.mxu0 0.0
        %1595 = vmatpush.msra.mxu0 0.0
        %1596 = vmatpush.msra.mxu0 0.0
        %1597 = vmatpush.msra.mxu0 0.0
        %1598 = vmatpush.msra.mxu0 0.0
        %1599 = vmatpush.msra.mxu0 0.0
        %1600 = vmatpush.msra.mxu0 0.0
        %1601 = vmatpush.msra.mxu0 0.0
        %1602 = vmatpush.msra.mxu0 0.0
        %1603 = vmatpush.msra.mxu0 0.0
        %1604 = vmatpush.msra.mxu0 0.0
        %1605 = vmatpush.msra.mxu0 0.0
        %1606 = vmatpush.msra.mxu0 %v1581
        %1607 = vmatpush.msra.mxu0 %v1577
        %1608 = vmatmul.f32.gmra.mxu0 %v1587
        %v1609 = vpop.f32.mrf.mxu0
        %v1610 = vadd.f32 0.0, %v1609
        %1611 = vmatmul.f32.gmra.mxu0 %v1590
        %v1612 = vpop.f32.mrf.mxu0
        %v1613 = vadd.f32 0.0, %v1612
        %1614 = vdwg.mxu0
        %1615 = vmatpush.msra.mxu0 0.0
        %1616 = vmatpush.msra.mxu0 0.0
        %1617 = vmatpush.msra.mxu0 0.0
        %1618 = vmatpush.msra.mxu0 0.0
        %1619 = vmatpush.msra.mxu0 0.0
        %1620 = vmatpush.msra.mxu0 0.0
        %1621 = vmatpush.msra.mxu0 0.0
        %1622 = vmatpush.msra.mxu0 0.0
        %1623 = vmatpush.msra.mxu0 0.0
        %1624 = vmatpush.msra.mxu0 0.0
        %1625 = vmatpush.msra.mxu0 0.0
        %1626 = vmatpush.msra.mxu0 0.0
        %1627 = vmatpush.msra.mxu0 0.0
        %1628 = vmatpush.msra.mxu0 0.0
        %1629 = vmatpush.msra.mxu0 %v1582
        %1630 = vmatpush.msra.mxu0 %v1578
        %1631 = vmatmul.f32.gmra.mxu0 %v1587
        %v1632 = vpop.f32.mrf.mxu0
        %v1633 = vadd.f32 0.0, %v1632
        %1634 = vmatmul.f32.gmra.mxu0 %v1590
        %v1635 = vpop.f32.mrf.mxu0
        %v1636 = vadd.f32 0.0, %v1635
        %1637 = vdwg.mxu0
        %1638 = vmatpush.msra.mxu0 0.0
        %1639 = vmatpush.msra.mxu0 0.0
        %1640 = vmatpush.msra.mxu0 0.0
        %1641 = vmatpush.msra.mxu0 0.0
        %1642 = vmatpush.msra.mxu0 0.0
        %1643 = vmatpush.msra.mxu0 0.0
        %1644 = vmatpush.msra.mxu0 0.0
        %1645 = vmatpush.msra.mxu0 0.0
        %1646 = vmatpush.msra.mxu0 0.0
        %1647 = vmatpush.msra.mxu0 0.0
        %1648 = vmatpush.msra.mxu0 0.0
        %1649 = vmatpush.msra.mxu0 0.0
        %1650 = vmatpush.msra.mxu0 0.0
        %1651 = vmatpush.msra.mxu0 0.0
        %1652 = vmatpush.msra.mxu0 %v1583
        %1653 = vmatpush.msra.mxu0 %v1579
        %1654 = vmatmul.f32.gmra.mxu0 %v1587
        %v1655 = vpop.f32.mrf.mxu0
        %v1656 = vadd.f32 0.0, %v1655
        %1657 = vmatmul.f32.gmra.mxu0 %v1590
        %v1658 = vpop.f32.mrf.mxu0
        %v1659 = vadd.f32 0.0, %v1658
        %1660 = vdwg.mxu0
        %1661 = vmatpush.msra.mxu0 0.0
        %1662 = vmatpush.msra.mxu0 0.0
        %1663 = vmatpush.msra.mxu0 0.0
        %1664 = vmatpush.msra.mxu0 0.0
        %1665 = vmatpush.msra.mxu0 0.0
        %1666 = vmatpush.msra.mxu0 0.0
        %1667 = vmatpush.msra.mxu0 0.0
        %1668 = vmatpush.msra.mxu0 0.0
        %1669 = vmatpush.msra.mxu0 0.0
        %1670 = vmatpush.msra.mxu0 0.0
        %1671 = vmatpush.msra.mxu0 0.0
        %1672 = vmatpush.msra.mxu0 0.0
        %1673 = vmatpush.msra.mxu0 0.0
        %1674 = vmatpush.msra.mxu0 0.0
        %1675 = vmatpush.msra.mxu0 %v1584
        %1676 = vmatpush.msra.mxu0 %v1580
        %1677 = vmatmul.f32.gmra.mxu0 %v1587
        %v1678 = vpop.f32.mrf.mxu0
        %v1679 = vadd.f32 0.0, %v1678
        %1680 = vmatmul.f32.gmra.mxu0 %v1590
        %v1681 = vpop.f32.mrf.mxu0
        %v1682 = vadd.f32 0.0, %v1681
        %1683 = vdwg.mxu0
        %v1684 = vadd.f32 %v1504, %v1610
        %v1685 = vadd.f32 %v1505, %v1633
        %v1686 = vadd.f32 %v1506, %v1656
        %v1687 = vadd.f32 %v1507, %v1679
        %v1688 = vadd.f32 %v1508, %v1613
        %v1689 = vadd.f32 %v1509, %v1636
        %v1690 = vadd.f32 %v1510, %v1659
        %v1691 = vadd.f32 %v1511, %v1682
        %s1692 = scalar_lea.vmem [#allocation7], 96
        %v1693 = vld [vmem:[%s1692] ss:$8 sm:$0xf]
        %v1695 = vperm.slane %v1693, 0
        %v1696 = vperm.slane %v1693, 1
        %v1697 = vperm.slane %v1693, 2
        %v1698 = vperm.slane %v1693, 3
        %v1703 = vmul.f32 %v1415, %v1695
        %v1704 = vmul.f32 %v1416, %v1696
        %v1705 = vmul.f32 %v1417, %v1697
        %v1706 = vmul.f32 %v1418, %v1698
        %v1707 = vmul.f32 %v1427, %v1695
        %v1708 = vmul.f32 %v1428, %v1696
        %v1709 = vmul.f32 %v1429, %v1697
        %v1710 = vmul.f32 %v1430, %v1698
        %s1711 = scalar_lea.vmem [#allocation7], 97
        %v1712 = vld [vmem:[%s1711] ss:$8 sm:$0xf]
        %v1714 = vperm.slane %v1712, 0
        %v1715 = vperm.slane %v1712, 1
        %v1716 = vperm.slane %v1712, 2
        %v1717 = vperm.slane %v1712, 3
        %v1722 = vmul.f32 %v1419, %v1714
        %v1723 = vmul.f32 %v1420, %v1715
        %v1724 = vmul.f32 %v1421, %v1716
        %v1725 = vmul.f32 %v1422, %v1717
        %v1726 = vmul.f32 %v1431, %v1714
        %v1727 = vmul.f32 %v1432, %v1715
        %v1728 = vmul.f32 %v1433, %v1716
        %v1729 = vmul.f32 %v1434, %v1717
        %v1730 = vadd.f32 %v1703, %v1722
        %v1731 = vadd.f32 %v1704, %v1723
        %v1732 = vadd.f32 %v1705, %v1724
        %v1733 = vadd.f32 %v1706, %v1725
        %v1734 = vadd.f32 %v1707, %v1726
        %v1735 = vadd.f32 %v1708, %v1727
        %v1736 = vadd.f32 %v1709, %v1728
        %v1737 = vadd.f32 %v1710, %v1729
        %s1738 = scalar_lea.vmem [#allocation7], 98
        %v1739 = vld [vmem:[%s1738] ss:$8 sm:$0xf]
        %v1741 = vperm.slane %v1739, 0
        %v1742 = vperm.slane %v1739, 1
        %v1743 = vperm.slane %v1739, 2
        %v1744 = vperm.slane %v1739, 3
        %v1749 = vmul.f32 %v1423, %v1741
        %v1750 = vmul.f32 %v1424, %v1742
        %v1751 = vmul.f32 %v1425, %v1743
        %v1752 = vmul.f32 %v1426, %v1744
        %v1753 = vmul.f32 %v1435, %v1741
        %v1754 = vmul.f32 %v1436, %v1742
        %v1755 = vmul.f32 %v1437, %v1743
        %v1756 = vmul.f32 %v1438, %v1744
        %v1757 = vadd.f32 %v1730, %v1749
        %v1758 = vadd.f32 %v1731, %v1750
        %v1759 = vadd.f32 %v1732, %v1751
        %v1760 = vadd.f32 %v1733, %v1752
        %v1761 = vadd.f32 %v1734, %v1753
        %v1762 = vadd.f32 %v1735, %v1754
        %v1763 = vadd.f32 %v1736, %v1755
        %v1764 = vadd.f32 %v1737, %v1756
        %v1766 = vsel %vm1585, %v351, 0
        %v1769 = vsel %vm1585, %v352, 0
        %1771 = vmatpush.msra.mxu0 0.0
        %1772 = vmatpush.msra.mxu0 0.0
        %1773 = vmatpush.msra.mxu0 0.0
        %1774 = vmatpush.msra.mxu0 0.0
        %1775 = vmatpush.msra.mxu0 0.0
        %1776 = vmatpush.msra.mxu0 0.0
        %1777 = vmatpush.msra.mxu0 0.0
        %1778 = vmatpush.msra.mxu0 0.0
        %1779 = vmatpush.msra.mxu0 0.0
        %1780 = vmatpush.msra.mxu0 0.0
        %1781 = vmatpush.msra.mxu0 0.0
        %1782 = vmatpush.msra.mxu0 0.0
        %1783 = vmatpush.msra.mxu0 0.0
        %1784 = vmatpush.msra.mxu0 0.0
        %1785 = vmatpush.msra.mxu0 %v1761
        %1786 = vmatpush.msra.mxu0 %v1757
        %1787 = vmatmul.f32.gmra.mxu0 %v1766
        %v1788 = vpop.f32.mrf.mxu0
        %v1789 = vadd.f32 0.0, %v1788
        %1790 = vmatmul.f32.gmra.mxu0 %v1769
        %v1791 = vpop.f32.mrf.mxu0
        %v1792 = vadd.f32 0.0, %v1791
        %1793 = vdwg.mxu0
        %1794 = vmatpush.msra.mxu0 0.0
        %1795 = vmatpush.msra.mxu0 0.0
        %1796 = vmatpush.msra.mxu0 0.0
        %1797 = vmatpush.msra.mxu0 0.0
        %1798 = vmatpush.msra.mxu0 0.0
        %1799 = vmatpush.msra.mxu0 0.0
        %1800 = vmatpush.msra.mxu0 0.0
        %1801 = vmatpush.msra.mxu0 0.0
        %1802 = vmatpush.msra.mxu0 0.0
        %1803 = vmatpush.msra.mxu0 0.0
        %1804 = vmatpush.msra.mxu0 0.0
        %1805 = vmatpush.msra.mxu0 0.0
        %1806 = vmatpush.msra.mxu0 0.0
        %1807 = vmatpush.msra.mxu0 0.0
        %1808 = vmatpush.msra.mxu0 %v1762
        %1809 = vmatpush.msra.mxu0 %v1758
        %1810 = vmatmul.f32.gmra.mxu0 %v1766
        %v1811 = vpop.f32.mrf.mxu0
        %v1812 = vadd.f32 0.0, %v1811
        %1813 = vmatmul.f32.gmra.mxu0 %v1769
        %v1814 = vpop.f32.mrf.mxu0
        %v1815 = vadd.f32 0.0, %v1814
        %1816 = vdwg.mxu0
        %1817 = vmatpush.msra.mxu0 0.0
        %1818 = vmatpush.msra.mxu0 0.0
        %1819 = vmatpush.msra.mxu0 0.0
        %1820 = vmatpush.msra.mxu0 0.0
        %1821 = vmatpush.msra.mxu0 0.0
        %1822 = vmatpush.msra.mxu0 0.0
        %1823 = vmatpush.msra.mxu0 0.0
        %1824 = vmatpush.msra.mxu0 0.0
        %1825 = vmatpush.msra.mxu0 0.0
        %1826 = vmatpush.msra.mxu0 0.0
        %1827 = vmatpush.msra.mxu0 0.0
        %1828 = vmatpush.msra.mxu0 0.0
        %1829 = vmatpush.msra.mxu0 0.0
        %1830 = vmatpush.msra.mxu0 0.0
        %1831 = vmatpush.msra.mxu0 %v1763
        %1832 = vmatpush.msra.mxu0 %v1759
        %1833 = vmatmul.f32.gmra.mxu0 %v1766
        %v1834 = vpop.f32.mrf.mxu0
        %v1835 = vadd.f32 0.0, %v1834
        %1836 = vmatmul.f32.gmra.mxu0 %v1769
        %v1837 = vpop.f32.mrf.mxu0
        %v1838 = vadd.f32 0.0, %v1837
        %1839 = vdwg.mxu0
        %1840 = vmatpush.msra.mxu0 0.0
        %1841 = vmatpush.msra.mxu0 0.0
        %1842 = vmatpush.msra.mxu0 0.0
        %1843 = vmatpush.msra.mxu0 0.0
        %1844 = vmatpush.msra.mxu0 0.0
        %1845 = vmatpush.msra.mxu0 0.0
        %1846 = vmatpush.msra.mxu0 0.0
        %1847 = vmatpush.msra.mxu0 0.0
        %1848 = vmatpush.msra.mxu0 0.0
        %1849 = vmatpush.msra.mxu0 0.0
        %1850 = vmatpush.msra.mxu0 0.0
        %1851 = vmatpush.msra.mxu0 0.0
        %1852 = vmatpush.msra.mxu0 0.0
        %1853 = vmatpush.msra.mxu0 0.0
        %1854 = vmatpush.msra.mxu0 %v1764
        %1855 = vmatpush.msra.mxu0 %v1760
        %1856 = vmatmul.f32.gmra.mxu0 %v1766
        %v1857 = vpop.f32.mrf.mxu0
        %v1858 = vadd.f32 0.0, %v1857
        %1859 = vmatmul.f32.gmra.mxu0 %v1769
        %v1860 = vpop.f32.mrf.mxu0
        %v1861 = vadd.f32 0.0, %v1860
        %1862 = vdwg.mxu0
        %v1863 = vadd.f32 %v1684, %v1789
        %v1864 = vadd.f32 %v1685, %v1812
        %v1865 = vadd.f32 %v1686, %v1835
        %v1866 = vadd.f32 %v1687, %v1858
        %v1867 = vadd.f32 %v1688, %v1792
        %v1868 = vadd.f32 %v1689, %v1815
        %v1869 = vadd.f32 %v1690, %v1838
        %v1870 = vadd.f32 %v1691, %v1861
        %v1872 = vperm.slane %v325, 0
        %v1873 = vperm.slane %v325, 1
        %v1874 = vperm.slane %v325, 2
        %v1875 = vperm.slane %v325, 3
        %v1880 = vadd.f32 %v1863, %v1872
        %v1881 = vadd.f32 %v1864, %v1873
        %v1882 = vadd.f32 %v1865, %v1874
        %v1883 = vadd.f32 %v1866, %v1875
        %v1884 = vadd.f32 %v1867, %v1872
        %v1885 = vadd.f32 %v1868, %v1873
        %v1886 = vadd.f32 %v1869, %v1874
        %v1887 = vadd.f32 %v1870, %v1875
        %v1888 = vadd.f32 %v1880, 3.0
        %v1889 = vadd.f32 %v1881, 3.0
        %v1890 = vadd.f32 %v1882, 3.0
        %v1891 = vadd.f32 %v1883, 3.0
        %v1892 = vadd.f32 %v1884, 3.0
        %v1893 = vadd.f32 %v1885, 3.0
        %v1894 = vadd.f32 %v1886, 3.0
        %v1895 = vadd.f32 %v1887, 3.0
        %v1896 = vmax.f32 %v1888, 0.0
        %v1897 = vmax.f32 %v1889, 0.0
        %v1898 = vmax.f32 %v1890, 0.0
        %v1899 = vmax.f32 %v1891, 0.0
        %v1900 = vmax.f32 %v1892, 0.0
        %v1901 = vmax.f32 %v1893, 0.0
        %v1902 = vmax.f32 %v1894, 0.0
        %v1903 = vmax.f32 %v1895, 0.0
        %v1904 = vmin.f32 %v1896, 6.0
        %v1905 = vmin.f32 %v1897, 6.0
        %v1906 = vmin.f32 %v1898, 6.0
        %v1907 = vmin.f32 %v1899, 6.0
        %v1908 = vmin.f32 %v1900, 6.0
        %v1909 = vmin.f32 %v1901, 6.0
        %v1910 = vmin.f32 %v1902, 6.0
        %v1911 = vmin.f32 %v1903, 6.0
        %v1912 = vmul.f32 %v1880, %v1904
        %v1913 = vmul.f32 %v1881, %v1905
        %v1914 = vmul.f32 %v1882, %v1906
        %v1915 = vmul.f32 %v1883, %v1907
        %v1916 = vmul.f32 %v1884, %v1908
        %v1917 = vmul.f32 %v1885, %v1909
        %v1918 = vmul.f32 %v1886, %v1910
        %v1919 = vmul.f32 %v1887, %v1911
        %v1920 = vmul.f32 %v1912, 0.16666667
        %v1921 = vmul.f32 %v1913, 0.16666667
        %v1922 = vmul.f32 %v1914, 0.16666667
        %v1923 = vmul.f32 %v1915, 0.16666667
        %v1924 = vmul.f32 %v1916, 0.16666667
        %v1925 = vmul.f32 %v1917, 0.16666667
        %v1926 = vmul.f32 %v1918, 0.16666667
        %v1927 = vmul.f32 %v1919, 0.16666667
        %s1928 = scalar_lea.vmem [#allocation7], 99
        %v1929 = vld [vmem:[%s1928] ss:$8 sm:$0xf]
        %v1931 = vperm.slane %v1929, 0
        %v1932 = vperm.slane %v1929, 1
        %v1933 = vperm.slane %v1929, 2
        %v1934 = vperm.slane %v1929, 3
        %v1939 = vmul.f32 %v1920, %v1931
        %v1940 = vmul.f32 %v1921, %v1932
        %v1941 = vmul.f32 %v1922, %v1933
        %v1942 = vmul.f32 %v1923, %v1934
        %v1943 = vmul.f32 %v1924, %v1931
        %v1944 = vmul.f32 %v1925, %v1932
        %v1945 = vmul.f32 %v1926, %v1933
        %v1946 = vmul.f32 %v1927, %v1934
        %v1947 = vadd.f32 %v1939, %v1940
        %v1948 = vadd.f32 %v1947, %v1941
        %v1949 = vadd.f32 %v1948, %v1942
        %1950 = vadd.xlane.f32.xlu0 %v1949
        %v1951 = vpop.xlane.xlu0 %1950
        %v1952 = vadd.f32 %v1943, %v1944
        %v1953 = vadd.f32 %v1952, %v1945
        %v1954 = vadd.f32 %v1953, %v1946
        %1955 = vadd.xlane.f32.xlu0 %v1954
        %v1956 = vpop.xlane.xlu0 %1955
        %v1957 = vmul.f32 %v1951, 0.0625
        %v1958 = vmul.f32 %v1956, 0.0625
        %v1959 = vadd.f32 %v1957, %v330
        %v1960 = vadd.f32 %v1958, %v330
        %v1961 = vadd.f32 %v1959, 3.0
        %v1962 = vadd.f32 %v1960, 3.0
        %v1963 = vmax.f32 %v1961, 0.0
        %v1964 = vmax.f32 %v1962, 0.0
        %v1965 = vmin.f32 %v1963, 6.0
        %v1966 = vmin.f32 %v1964, 6.0
        %v1967 = vmul.f32 %v1959, %v1965
        %v1968 = vmul.f32 %v1960, %v1966
        %v1969 = vmul.f32 %v1967, 0.16666667
        %v1970 = vmul.f32 %v1968, 0.16666667
        %s1971 = scalar_lea.vmem [#allocation7], 101
        %v1972 = vld [vmem:[%s1971] ss:$8 sm:$0xf]
        %1974 = vset.pattern.permute.xlu0 0
        %1975 = vperm.xlu0 %1974, %v1969
        %v1976 = vpop.permute.xlu0 %1975
        %1979 = vset.pattern.permute.xlu0 0
        %1980 = vperm.xlu0 %1979, %v1970
        %v1981 = vpop.permute.xlu0 %1980
        %v1984 = vperm.slane %v1972, 0
        %v1985 = vperm.slane %v1972, 1
        %v1986 = vperm.slane %v1972, 2
        %v1987 = vperm.slane %v1972, 3
        %v1992 = vmul.f32 %v1976, %v1984
        %v1993 = vmul.f32 %v1976, %v1985
        %v1994 = vmul.f32 %v1976, %v1986
        %v1995 = vmul.f32 %v1976, %v1987
        %v1996 = vmul.f32 %v1981, %v1984
        %v1997 = vmul.f32 %v1981, %v1985
        %v1998 = vmul.f32 %v1981, %v1986
        %v1999 = vmul.f32 %v1981, %v1987
        %v2001 = vperm.slane %v327, 0
        %v2002 = vperm.slane %v327, 1
        %v2003 = vperm.slane %v327, 2
        %v2004 = vperm.slane %v327, 3
        %v2009 = vadd.f32 %v2001, %v1992
        %v2010 = vadd.f32 %v2002, %v1993
        %v2011 = vadd.f32 %v2003, %v1994
        %v2012 = vadd.f32 %v2004, %v1995
        %v2013 = vadd.f32 %v2001, %v1996
        %v2014 = vadd.f32 %v2002, %v1997
        %v2015 = vadd.f32 %v2003, %v1998
        %v2016 = vadd.f32 %v2004, %v1999
        %s2017 = scalar_lea.vmem [#allocation7], 100
        %v2018 = vld [vmem:[%s2017] ss:$8 sm:$0xf]
        %v2020 = vperm.slane %v2018, 0
        %v2021 = vperm.slane %v2018, 1
        %v2022 = vperm.slane %v2018, 2
        %v2023 = vperm.slane %v2018, 3
        %v2028 = vmul.f32 %v1920, %v2020
        %v2029 = vmul.f32 %v1921, %v2021
        %v2030 = vmul.f32 %v1922, %v2022
        %v2031 = vmul.f32 %v1923, %v2023
        %v2032 = vmul.f32 %v1924, %v2020
        %v2033 = vmul.f32 %v1925, %v2021
        %v2034 = vmul.f32 %v1926, %v2022
        %v2035 = vmul.f32 %v1927, %v2023
        %v2036 = vadd.f32 %v2028, %v2029
        %v2037 = vadd.f32 %v2036, %v2030
        %v2038 = vadd.f32 %v2037, %v2031
        %2039 = vadd.xlane.f32.xlu0 %v2038
        %v2040 = vpop.xlane.xlu0 %2039
        %v2041 = vadd.f32 %v2032, %v2033
        %v2042 = vadd.f32 %v2041, %v2034
        %v2043 = vadd.f32 %v2042, %v2035
        %2044 = vadd.xlane.f32.xlu0 %v2043
        %v2045 = vpop.xlane.xlu0 %2044
        %v2046 = vmul.f32 %v2040, 0.0625
        %v2047 = vmul.f32 %v2045, 0.0625
        %v2048 = vadd.f32 %v2046, %v330
        %v2049 = vadd.f32 %v2047, %v330
        %v2050 = vadd.f32 %v2048, 3.0
        %v2051 = vadd.f32 %v2049, 3.0
        %v2052 = vmax.f32 %v2050, 0.0
        %v2053 = vmax.f32 %v2051, 0.0
        %v2054 = vmin.f32 %v2052, 6.0
        %v2055 = vmin.f32 %v2053, 6.0
        %v2056 = vmul.f32 %v2048, %v2054
        %v2057 = vmul.f32 %v2049, %v2055
        %v2058 = vmul.f32 %v2056, 0.16666667
        %v2059 = vmul.f32 %v2057, 0.16666667
        %s2060 = scalar_lea.vmem [#allocation7], 102
        %v2061 = vld [vmem:[%s2060] ss:$8 sm:$0xf]
        %2063 = vset.pattern.permute.xlu0 1
        %2064 = vperm.xlu0 %2063, %v2058
        %v2065 = vpop.permute.xlu0 %2064
        %2068 = vset.pattern.permute.xlu0 1
        %2069 = vperm.xlu0 %2068, %v2059
        %v2070 = vpop.permute.xlu0 %2069
        %v2073 = vperm.slane %v2061, 0
        %v2074 = vperm.slane %v2061, 1
        %v2075 = vperm.slane %v2061, 2
        %v2076 = vperm.slane %v2061, 3
        %v2081 = vmul.f32 %v2065, %v2073
        %v2082 = vmul.f32 %v2065, %v2074
        %v2083 = vmul.f32 %v2065, %v2075
        %v2084 = vmul.f32 %v2065, %v2076
        %v2085 = vmul.f32 %v2070, %v2073
        %v2086 = vmul.f32 %v2070, %v2074
        %v2087 = vmul.f32 %v2070, %v2075
        %v2088 = vmul.f32 %v2070, %v2076
        %v2089 = vadd.f32 %v2009, %v2081
        %v2090 = vadd.f32 %v2010, %v2082
        %v2091 = vadd.f32 %v2011, %v2083
        %v2092 = vadd.f32 %v2012, %v2084
        %v2093 = vadd.f32 %v2013, %v2085
        %v2094 = vadd.f32 %v2014, %v2086
        %v2095 = vadd.f32 %v2015, %v2087
        %v2096 = vadd.f32 %v2016, %v2088
        %v2097 = vxor.u32 %v2089, 2147483648
        %v2098 = vxor.u32 %v2090, 2147483648
        %v2099 = vxor.u32 %v2091, 2147483648
        %v2100 = vxor.u32 %v2092, 2147483648
        %v2101 = vxor.u32 %v2093, 2147483648
        %v2102 = vxor.u32 %v2094, 2147483648
        %v2103 = vxor.u32 %v2095, 2147483648
        %v2104 = vxor.u32 %v2096, 2147483648
        %v2105 = vmul.f32 %v2097, 1.442695
        %v2106 = vpow.pop %v2105
        %v2107 = vmul.f32 %v2098, 1.442695
        %v2108 = vpow.pop %v2107
        %v2109 = vmul.f32 %v2099, 1.442695
        %v2110 = vpow.pop %v2109
        %v2111 = vmul.f32 %v2100, 1.442695
        %v2112 = vpow.pop %v2111
        %v2113 = vmul.f32 %v2101, 1.442695
        %v2114 = vpow.pop %v2113
        %v2115 = vmul.f32 %v2102, 1.442695
        %v2116 = vpow.pop %v2115
        %v2117 = vmul.f32 %v2103, 1.442695
        %v2118 = vpow.pop %v2117
        %v2119 = vmul.f32 %v2104, 1.442695
        %v2120 = vpow.pop %v2119
        %v2121 = vadd.f32 %v2106, 1.0
        %v2122 = vadd.f32 %v2108, 1.0
        %v2123 = vadd.f32 %v2110, 1.0
        %v2124 = vadd.f32 %v2112, 1.0
        %v2125 = vadd.f32 %v2114, 1.0
        %v2126 = vadd.f32 %v2116, 1.0
        %v2127 = vadd.f32 %v2118, 1.0
        %v2128 = vadd.f32 %v2120, 1.0
        %v2129 = vrcp.pop %v2121
        %v2130 = vmul.f32 %v2121, %v2129
        %v2131 = vsub.f32 1.0, %v2130
        %v2132 = vmul.f32 %v2129, %v2131
        %v2133 = vadd.f32 %v2129, %v2132
        %vm2134 = vweird.f32 %v2121
        %vm2135 = vweird.f32 %v2129
        %vm2136 = vmor %vm2134, %vm2135
        %v2137 = vsel %vm2136, %v2129, %v2133
        %v2138 = vand.u32 2147483647, %v2121
        %vm2139 = vcmp.eq.f32.partialorder %v2138, 8.507059e+37
        %v2140 = vand.u32 %v2121, 2147483648
        %v2141 = vor.u32 1.1754944e-38, %v2140
        %v2142 = vsel %vm2139, %v2141, %v2137
        %v2143 = vmul.f32 1.0, %v2142
        %v2144 = vrcp.pop %v2122
        %v2145 = vmul.f32 %v2122, %v2144
        %v2146 = vsub.f32 1.0, %v2145
        %v2147 = vmul.f32 %v2144, %v2146
        %v2148 = vadd.f32 %v2144, %v2147
        %vm2149 = vweird.f32 %v2122
        %vm2150 = vweird.f32 %v2144
        %vm2151 = vmor %vm2149, %vm2150
        %v2152 = vsel %vm2151, %v2144, %v2148
        %v2153 = vand.u32 2147483647, %v2122
        %vm2154 = vcmp.eq.f32.partialorder %v2153, 8.507059e+37
        %v2155 = vand.u32 %v2122, 2147483648
        %v2156 = vor.u32 1.1754944e-38, %v2155
        %v2157 = vsel %vm2154, %v2156, %v2152
        %v2158 = vmul.f32 1.0, %v2157
        %v2159 = vrcp.pop %v2123
        %v2160 = vmul.f32 %v2123, %v2159
        %v2161 = vsub.f32 1.0, %v2160
        %v2162 = vmul.f32 %v2159, %v2161
        %v2163 = vadd.f32 %v2159, %v2162
        %vm2164 = vweird.f32 %v2123
        %vm2165 = vweird.f32 %v2159
        %vm2166 = vmor %vm2164, %vm2165
        %v2167 = vsel %vm2166, %v2159, %v2163
        %v2168 = vand.u32 2147483647, %v2123
        %vm2169 = vcmp.eq.f32.partialorder %v2168, 8.507059e+37
        %v2170 = vand.u32 %v2123, 2147483648
        %v2171 = vor.u32 1.1754944e-38, %v2170
        %v2172 = vsel %vm2169, %v2171, %v2167
        %v2173 = vmul.f32 1.0, %v2172
        %v2174 = vrcp.pop %v2124
        %v2175 = vmul.f32 %v2124, %v2174
        %v2176 = vsub.f32 1.0, %v2175
        %v2177 = vmul.f32 %v2174, %v2176
        %v2178 = vadd.f32 %v2174, %v2177
        %vm2179 = vweird.f32 %v2124
        %vm2180 = vweird.f32 %v2174
        %vm2181 = vmor %vm2179, %vm2180
        %v2182 = vsel %vm2181, %v2174, %v2178
        %v2183 = vand.u32 2147483647, %v2124
        %vm2184 = vcmp.eq.f32.partialorder %v2183, 8.507059e+37
        %v2185 = vand.u32 %v2124, 2147483648
        %v2186 = vor.u32 1.1754944e-38, %v2185
        %v2187 = vsel %vm2184, %v2186, %v2182
        %v2188 = vmul.f32 1.0, %v2187
        %v2189 = vrcp.pop %v2125
        %v2190 = vmul.f32 %v2125, %v2189
        %v2191 = vsub.f32 1.0, %v2190
        %v2192 = vmul.f32 %v2189, %v2191
        %v2193 = vadd.f32 %v2189, %v2192
        %vm2194 = vweird.f32 %v2125
        %vm2195 = vweird.f32 %v2189
        %vm2196 = vmor %vm2194, %vm2195
        %v2197 = vsel %vm2196, %v2189, %v2193
        %v2198 = vand.u32 2147483647, %v2125
        %vm2199 = vcmp.eq.f32.partialorder %v2198, 8.507059e+37
        %v2200 = vand.u32 %v2125, 2147483648
        %v2201 = vor.u32 1.1754944e-38, %v2200
        %v2202 = vsel %vm2199, %v2201, %v2197
        %v2203 = vmul.f32 1.0, %v2202
        %v2204 = vrcp.pop %v2126
        %v2205 = vmul.f32 %v2126, %v2204
        %v2206 = vsub.f32 1.0, %v2205
        %v2207 = vmul.f32 %v2204, %v2206
        %v2208 = vadd.f32 %v2204, %v2207
        %vm2209 = vweird.f32 %v2126
        %vm2210 = vweird.f32 %v2204
        %vm2211 = vmor %vm2209, %vm2210
        %v2212 = vsel %vm2211, %v2204, %v2208
        %v2213 = vand.u32 2147483647, %v2126
        %vm2214 = vcmp.eq.f32.partialorder %v2213, 8.507059e+37
        %v2215 = vand.u32 %v2126, 2147483648
        %v2216 = vor.u32 1.1754944e-38, %v2215
        %v2217 = vsel %vm2214, %v2216, %v2212
        %v2218 = vmul.f32 1.0, %v2217
        %v2219 = vrcp.pop %v2127
        %v2220 = vmul.f32 %v2127, %v2219
        %v2221 = vsub.f32 1.0, %v2220
        %v2222 = vmul.f32 %v2219, %v2221
        %v2223 = vadd.f32 %v2219, %v2222
        %vm2224 = vweird.f32 %v2127
        %vm2225 = vweird.f32 %v2219
        %vm2226 = vmor %vm2224, %vm2225
        %v2227 = vsel %vm2226, %v2219, %v2223
        %v2228 = vand.u32 2147483647, %v2127
        %vm2229 = vcmp.eq.f32.partialorder %v2228, 8.507059e+37
        %v2230 = vand.u32 %v2127, 2147483648
        %v2231 = vor.u32 1.1754944e-38, %v2230
        %v2232 = vsel %vm2229, %v2231, %v2227
        %v2233 = vmul.f32 1.0, %v2232
        %v2234 = vrcp.pop %v2128
        %v2235 = vmul.f32 %v2128, %v2234
        %v2236 = vsub.f32 1.0, %v2235
        %v2237 = vmul.f32 %v2234, %v2236
        %v2238 = vadd.f32 %v2234, %v2237
        %vm2239 = vweird.f32 %v2128
        %vm2240 = vweird.f32 %v2234
        %vm2241 = vmor %vm2239, %vm2240
        %v2242 = vsel %vm2241, %v2234, %v2238
        %v2243 = vand.u32 2147483647, %v2128
        %vm2244 = vcmp.eq.f32.partialorder %v2243, 8.507059e+37
        %v2245 = vand.u32 %v2128, 2147483648
        %v2246 = vor.u32 1.1754944e-38, %v2245
        %v2247 = vsel %vm2244, %v2246, %v2242
        %v2248 = vmul.f32 1.0, %v2247
        %v2249 = vadd.f32 %v1920, %v1924
        %v2250 = vrot.slane %v2249, 4
        %v2251 = vadd.f32 %v2249, %v2250
        %v2252 = vrot.slane %v2251, 2
        %v2253 = vadd.f32 %v2251, %v2252
        %v2254 = vrot.slane %v2253, 1
        %v2255 = vadd.f32 %v2253, %v2254
        %v2256 = vadd.f32 %v1921, %v1925
        %v2257 = vrot.slane %v2256, 4
        %v2258 = vadd.f32 %v2256, %v2257
        %v2259 = vrot.slane %v2258, 2
        %v2260 = vadd.f32 %v2258, %v2259
        %v2261 = vrot.slane %v2260, 1
        %v2262 = vadd.f32 %v2260, %v2261
        %v2263 = vadd.f32 %v1922, %v1926
        %v2264 = vrot.slane %v2263, 4
        %v2265 = vadd.f32 %v2263, %v2264
        %v2266 = vrot.slane %v2265, 2
        %v2267 = vadd.f32 %v2265, %v2266
        %v2268 = vrot.slane %v2267, 1
        %v2269 = vadd.f32 %v2267, %v2268
        %v2270 = vadd.f32 %v1923, %v1927
        %v2271 = vrot.slane %v2270, 4
        %v2272 = vadd.f32 %v2270, %v2271
        %v2273 = vrot.slane %v2272, 2
        %v2274 = vadd.f32 %v2272, %v2273
        %v2275 = vrot.slane %v2274, 1
        %v2276 = vadd.f32 %v2274, %v2275
        %v2277 = vrcp.pop 16.0
        %v2278 = vmul.f32 16.0, %v2277
        %v2279 = vsub.f32 1.0, %v2278
        %v2280 = vmul.f32 %v2277, %v2279
        %v2281 = vadd.f32 %v2277, %v2280
        %vm2282 = vweird.f32 %v2277
        %v2283 = vsel %vm2282, %v2277, %v2281
        %v2284 = vmul.f32 %v2255, %v2283
        %v2285 = vmul.f32 %v2262, %v2283
        %v2286 = vmul.f32 %v2269, %v2283
        %v2287 = vmul.f32 %v2276, %v2283
        %v2288 = vld [vmem:[%s3] sm:$0xff]
        %v2289 = vld [vmem:[%s3 + $0x8] sm:$0xff]
        %v2290 = vld [vmem:[%s3 + $0x10] sm:$0xff]
        %v2291 = vld [vmem:[%s3 + $0x18] sm:$0xff]
        %v2292 = vld [vmem:[%s3 + $0x20] sm:$0xff]
        %v2293 = vld [vmem:[%s3 + $0x28] sm:$0xff]
        %v2294 = vld [vmem:[%s3 + $0x30] sm:$0xff]
        %v2295 = vld [vmem:[%s3 + $0x38] sm:$0xff]
        %v2296 = vld [vmem:[%s3 + $0x40] sm:$0xff]
        %v2297 = vld [vmem:[%s3 + $0x48] sm:$0xff]
        %v2298 = vld [vmem:[%s3 + $0x50] sm:$0xff]
        %v2299 = vld [vmem:[%s3 + $0x58] sm:$0xff]
        %v2300 = vld [vmem:[%s3 + $0x60] sm:$0xff]
        %v2301 = vld [vmem:[%s3 + $0x68] sm:$0xff]
        %v2302 = vld [vmem:[%s3 + $0x70] sm:$0xff]
        %v2303 = vld [vmem:[%s3 + $0x78] sm:$0xff]
        %v2304 = vld [vmem:[%s3 + $0x80] sm:$0xff]
        %v2305 = vld [vmem:[%s3 + $0x88] sm:$0xff]
        %v2306 = vld [vmem:[%s3 + $0x90] sm:$0xff]
        %v2307 = vld [vmem:[%s3 + $0x98] sm:$0xff]
        %v2308 = vld [vmem:[%s3 + $0xa0] sm:$0xff]
        %v2309 = vld [vmem:[%s3 + $0xa8] sm:$0xff]
        %v2310 = vld [vmem:[%s3 + $0xb0] sm:$0xff]
        %v2311 = vld [vmem:[%s3 + $0xb8] sm:$0xff]
        %v2312 = vld [vmem:[%s3 + $0xc0] sm:$0xff]
        %v2313 = vld [vmem:[%s3 + $0xc8] sm:$0xff]
        %v2314 = vld [vmem:[%s3 + $0xd0] sm:$0xff]
        %v2315 = vld [vmem:[%s3 + $0xd8] sm:$0xff]
        %v2316 = vld [vmem:[%s3 + $0xe0] sm:$0xff]
        %v2317 = vld [vmem:[%s3 + $0xe8] sm:$0xff]
        %v2318 = vld [vmem:[%s3 + $0xf0] sm:$0xff]
        %v2319 = vld [vmem:[%s3 + $0xf8] sm:$0xff]
        %v2320 = vld [vmem:[%s3 + $0x100] sm:$0xff]
        %v2321 = vld [vmem:[%s3 + $0x108] sm:$0xff]
        %v2322 = vld [vmem:[%s3 + $0x110] sm:$0xff]
        %v2323 = vld [vmem:[%s3 + $0x118] sm:$0xff]
        %v2324 = vld [vmem:[%s3 + $0x120] sm:$0xff]
        %v2325 = vld [vmem:[%s3 + $0x128] sm:$0xff]
        %v2326 = vld [vmem:[%s3 + $0x130] sm:$0xff]
        %v2327 = vld [vmem:[%s3 + $0x138] sm:$0xff]
        %v2328 = vld [vmem:[%s3 + $0x140] sm:$0xff]
        %v2329 = vld [vmem:[%s3 + $0x148] sm:$0xff]
        %v2330 = vld [vmem:[%s3 + $0x150] sm:$0xff]
        %v2331 = vld [vmem:[%s3 + $0x158] sm:$0xff]
        %v2332 = vld [vmem:[%s3 + $0x160] sm:$0xff]
        %v2333 = vld [vmem:[%s3 + $0x168] sm:$0xff]
        %v2334 = vld [vmem:[%s3 + $0x170] sm:$0xff]
        %v2335 = vld [vmem:[%s3 + $0x178] sm:$0xff]
        %v2336 = vld [vmem:[%s3 + $0x180] sm:$0xff]
        %v2337 = vld [vmem:[%s3 + $0x188] sm:$0xff]
        %v2338 = vld [vmem:[%s3 + $0x190] sm:$0xff]
        %v2339 = vld [vmem:[%s3 + $0x198] sm:$0xff]
        %v2340 = vld [vmem:[%s3 + $0x1a0] sm:$0xff]
        %v2341 = vld [vmem:[%s3 + $0x1a8] sm:$0xff]
        %v2342 = vld [vmem:[%s3 + $0x1b0] sm:$0xff]
        %v2343 = vld [vmem:[%s3 + $0x1b8] sm:$0xff]
        %v2344 = vld [vmem:[%s3 + $0x1c0] sm:$0xff]
        %v2345 = vld [vmem:[%s3 + $0x1c8] sm:$0xff]
        %v2346 = vld [vmem:[%s3 + $0x1d0] sm:$0xff]
        %v2347 = vld [vmem:[%s3 + $0x1d8] sm:$0xff]
        %v2348 = vld [vmem:[%s3 + $0x1e0] sm:$0xff]
        %v2349 = vld [vmem:[%s3 + $0x1e8] sm:$0xff]
        %v2350 = vld [vmem:[%s3 + $0x1f0] sm:$0xff]
        %v2351 = vld [vmem:[%s3 + $0x1f8] sm:$0xff]
        %2352 = vmatpush.msra.mxu0 %v2303
        %2353 = vmatpush.msra.mxu0 %v2302
        %2354 = vmatpush.msra.mxu0 %v2301
        %2355 = vmatpush.msra.mxu0 %v2300
        %2356 = vmatpush.msra.mxu0 %v2299
        %2357 = vmatpush.msra.mxu0 %v2298
        %2358 = vmatpush.msra.mxu0 %v2297
        %2359 = vmatpush.msra.mxu0 %v2296
        %2360 = vmatpush.msra.mxu0 %v2295
        %2361 = vmatpush.msra.mxu0 %v2294
        %2362 = vmatpush.msra.mxu0 %v2293
        %2363 = vmatpush.msra.mxu0 %v2292
        %2364 = vmatpush.msra.mxu0 %v2291
        %2365 = vmatpush.msra.mxu0 %v2290
        %2366 = vmatpush.msra.mxu0 %v2289
        %2367 = vmatpush.msra.mxu0 %v2288
        %2368 = vmatmul.f32.gmra.mxu0 %v2284
        %v2369 = vpop.f32.mrf.mxu0
        %v2370 = vadd.f32 %v330, %v2369
        %2371 = vdwg.mxu0
        %2372 = vmatpush.msra.mxu0 %v2319
        %2373 = vmatpush.msra.mxu0 %v2318
        %2374 = vmatpush.msra.mxu0 %v2317
        %2375 = vmatpush.msra.mxu0 %v2316
        %2376 = vmatpush.msra.mxu0 %v2315
        %2377 = vmatpush.msra.mxu0 %v2314
        %2378 = vmatpush.msra.mxu0 %v2313
        %2379 = vmatpush.msra.mxu0 %v2312
        %2380 = vmatpush.msra.mxu0 %v2311
        %2381 = vmatpush.msra.mxu0 %v2310
        %2382 = vmatpush.msra.mxu0 %v2309
        %2383 = vmatpush.msra.mxu0 %v2308
        %2384 = vmatpush.msra.mxu0 %v2307
        %2385 = vmatpush.msra.mxu0 %v2306
        %2386 = vmatpush.msra.mxu0 %v2305
        %2387 = vmatpush.msra.mxu0 %v2304
        %2388 = vmatmul.f32.gmra.mxu0 %v2285
        %v2389 = vpop.f32.mrf.mxu0
        %v2390 = vadd.f32 %v2370, %v2389
        %2391 = vdwg.mxu0
        %2392 = vmatpush.msra.mxu0 %v2335
        %2393 = vmatpush.msra.mxu0 %v2334
        %2394 = vmatpush.msra.mxu0 %v2333
        %2395 = vmatpush.msra.mxu0 %v2332
        %2396 = vmatpush.msra.mxu0 %v2331
        %2397 = vmatpush.msra.mxu0 %v2330
        %2398 = vmatpush.msra.mxu0 %v2329
        %2399 = vmatpush.msra.mxu0 %v2328
        %2400 = vmatpush.msra.mxu0 %v2327
        %2401 = vmatpush.msra.mxu0 %v2326
        %2402 = vmatpush.msra.mxu0 %v2325
        %2403 = vmatpush.msra.mxu0 %v2324
        %2404 = vmatpush.msra.mxu0 %v2323
        %2405 = vmatpush.msra.mxu0 %v2322
        %2406 = vmatpush.msra.mxu0 %v2321
        %2407 = vmatpush.msra.mxu0 %v2320
        %2408 = vmatmul.f32.gmra.mxu0 %v2286
        %v2409 = vpop.f32.mrf.mxu0
        %v2410 = vadd.f32 %v2390, %v2409
        %2411 = vdwg.mxu0
        %2412 = vmatpush.msra.mxu0 %v2351
        %2413 = vmatpush.msra.mxu0 %v2350
        %2414 = vmatpush.msra.mxu0 %v2349
        %2415 = vmatpush.msra.mxu0 %v2348
        %2416 = vmatpush.msra.mxu0 %v2347
        %2417 = vmatpush.msra.mxu0 %v2346
        %2418 = vmatpush.msra.mxu0 %v2345
        %2419 = vmatpush.msra.mxu0 %v2344
        %2420 = vmatpush.msra.mxu0 %v2343
        %2421 = vmatpush.msra.mxu0 %v2342
        %2422 = vmatpush.msra.mxu0 %v2341
        %2423 = vmatpush.msra.mxu0 %v2340
        %2424 = vmatpush.msra.mxu0 %v2339
        %2425 = vmatpush.msra.mxu0 %v2338
        %2426 = vmatpush.msra.mxu0 %v2337
        %2427 = vmatpush.msra.mxu0 %v2336
        %2428 = vmatmul.f32.gmra.mxu0 %v2287
        %v2429 = vpop.f32.mrf.mxu0
        %v2430 = vadd.f32 %v2410, %v2429
        %2431 = vdwg.mxu0
        %v2432 = vadd.f32 %v2430, 3.0
        %v2433 = vmax.f32 %v2432, 0.0
        %v2434 = vmin.f32 %v2433, 6.0
        %v2435 = vmul.f32 %v2430, %v2434
        %v2436 = vmul.f32 %v2435, 0.16666667
        %v2437 = vld [vmem:[#allocation6] sm:$0xff]
        %v2438 = vld [vmem:[#allocation6 + $0x8] sm:$0xff]
        %v2439 = vld [vmem:[#allocation6 + $0x10] sm:$0xff]
        %v2440 = vld [vmem:[#allocation6 + $0x18] sm:$0xff]
        %v2441 = vld [vmem:[#allocation6 + $0x20] sm:$0xff]
        %v2442 = vld [vmem:[#allocation6 + $0x28] sm:$0xff]
        %v2443 = vld [vmem:[#allocation6 + $0x30] sm:$0xff]
        %v2444 = vld [vmem:[#allocation6 + $0x38] sm:$0xff]
        %v2445 = vld [vmem:[#allocation6 + $0x40] sm:$0xff]
        %v2446 = vld [vmem:[#allocation6 + $0x48] sm:$0xff]
        %v2447 = vld [vmem:[#allocation6 + $0x50] sm:$0xff]
        %v2448 = vld [vmem:[#allocation6 + $0x58] sm:$0xff]
        %v2449 = vld [vmem:[#allocation6 + $0x60] sm:$0xff]
        %v2450 = vld [vmem:[#allocation6 + $0x68] sm:$0xff]
        %v2451 = vld [vmem:[#allocation6 + $0x70] sm:$0xff]
        %v2452 = vld [vmem:[#allocation6 + $0x78] sm:$0xff]
        %v2454 = vperm.slane %v329, 0
        %v2455 = vperm.slane %v329, 1
        %v2456 = vperm.slane %v329, 2
        %v2457 = vperm.slane %v329, 3
        %vm2462 = vcmask 261120
        %v2464 = vsel %vm2462, %v2436, 0
        %2466 = vmatpush.msra.mxu0 0.0
        %2467 = vmatpush.msra.mxu0 0.0
        %2468 = vmatpush.msra.mxu0 0.0
        %2469 = vmatpush.msra.mxu0 0.0
        %2470 = vmatpush.msra.mxu0 0.0
        %2471 = vmatpush.msra.mxu0 0.0
        %2472 = vmatpush.msra.mxu0 0.0
        %2473 = vmatpush.msra.mxu0 0.0
        %2474 = vmatpush.msra.mxu0 0.0
        %2475 = vmatpush.msra.mxu0 0.0
        %2476 = vmatpush.msra.mxu0 0.0
        %2477 = vmatpush.msra.mxu0 0.0
        %2478 = vmatpush.msra.mxu0 %v2449
        %2479 = vmatpush.msra.mxu0 %v2445
        %2480 = vmatpush.msra.mxu0 %v2441
        %2481 = vmatpush.msra.mxu0 %v2437
        %2482 = vmatmul.f32.gmra.mxu0 %v2464
        %v2483 = vpop.f32.mrf.mxu0
        %v2484 = vadd.f32 %v2454, %v2483
        %2485 = vdwg.mxu0
        %2486 = vmatpush.msra.mxu0 0.0
        %2487 = vmatpush.msra.mxu0 0.0
        %2488 = vmatpush.msra.mxu0 0.0
        %2489 = vmatpush.msra.mxu0 0.0
        %2490 = vmatpush.msra.mxu0 0.0
        %2491 = vmatpush.msra.mxu0 0.0
        %2492 = vmatpush.msra.mxu0 0.0
        %2493 = vmatpush.msra.mxu0 0.0
        %2494 = vmatpush.msra.mxu0 0.0
        %2495 = vmatpush.msra.mxu0 0.0
        %2496 = vmatpush.msra.mxu0 0.0
        %2497 = vmatpush.msra.mxu0 0.0
        %2498 = vmatpush.msra.mxu0 %v2450
        %2499 = vmatpush.msra.mxu0 %v2446
        %2500 = vmatpush.msra.mxu0 %v2442
        %2501 = vmatpush.msra.mxu0 %v2438
        %2502 = vmatmul.f32.gmra.mxu0 %v2464
        %v2503 = vpop.f32.mrf.mxu0
        %v2504 = vadd.f32 %v2455, %v2503
        %2505 = vdwg.mxu0
        %2506 = vmatpush.msra.mxu0 0.0
        %2507 = vmatpush.msra.mxu0 0.0
        %2508 = vmatpush.msra.mxu0 0.0
        %2509 = vmatpush.msra.mxu0 0.0
        %2510 = vmatpush.msra.mxu0 0.0
        %2511 = vmatpush.msra.mxu0 0.0
        %2512 = vmatpush.msra.mxu0 0.0
        %2513 = vmatpush.msra.mxu0 0.0
        %2514 = vmatpush.msra.mxu0 0.0
        %2515 = vmatpush.msra.mxu0 0.0
        %2516 = vmatpush.msra.mxu0 0.0
        %2517 = vmatpush.msra.mxu0 0.0
        %2518 = vmatpush.msra.mxu0 %v2451
        %2519 = vmatpush.msra.mxu0 %v2447
        %2520 = vmatpush.msra.mxu0 %v2443
        %2521 = vmatpush.msra.mxu0 %v2439
        %2522 = vmatmul.f32.gmra.mxu0 %v2464
        %v2523 = vpop.f32.mrf.mxu0
        %v2524 = vadd.f32 %v2456, %v2523
        %2525 = vdwg.mxu0
        %2526 = vmatpush.msra.mxu0 0.0
        %2527 = vmatpush.msra.mxu0 0.0
        %2528 = vmatpush.msra.mxu0 0.0
        %2529 = vmatpush.msra.mxu0 0.0
        %2530 = vmatpush.msra.mxu0 0.0
        %2531 = vmatpush.msra.mxu0 0.0
        %2532 = vmatpush.msra.mxu0 0.0
        %2533 = vmatpush.msra.mxu0 0.0
        %2534 = vmatpush.msra.mxu0 0.0
        %2535 = vmatpush.msra.mxu0 0.0
        %2536 = vmatpush.msra.mxu0 0.0
        %2537 = vmatpush.msra.mxu0 0.0
        %2538 = vmatpush.msra.mxu0 %v2452
        %2539 = vmatpush.msra.mxu0 %v2448
        %2540 = vmatpush.msra.mxu0 %v2444
        %2541 = vmatpush.msra.mxu0 %v2440
        %2542 = vmatmul.f32.gmra.mxu0 %v2464
        %v2543 = vpop.f32.mrf.mxu0
        %v2544 = vadd.f32 %v2457, %v2543
        %2545 = vdwg.mxu0
        %v2546 = vxor.u32 %v2484, 2147483648
        %v2547 = vxor.u32 %v2504, 2147483648
        %v2548 = vxor.u32 %v2524, 2147483648
        %v2549 = vxor.u32 %v2544, 2147483648
        %v2550 = vmul.f32 %v2546, 1.442695
        %v2551 = vpow.pop %v2550
        %v2552 = vmul.f32 %v2547, 1.442695
        %v2553 = vpow.pop %v2552
        %v2554 = vmul.f32 %v2548, 1.442695
        %v2555 = vpow.pop %v2554
        %v2556 = vmul.f32 %v2549, 1.442695
        %v2557 = vpow.pop %v2556
        %v2558 = vadd.f32 %v2551, 1.0
        %v2559 = vadd.f32 %v2553, 1.0
        %v2560 = vadd.f32 %v2555, 1.0
        %v2561 = vadd.f32 %v2557, 1.0
        %v2562 = vrcp.pop %v2558
        %v2563 = vmul.f32 %v2558, %v2562
        %v2564 = vsub.f32 1.0, %v2563
        %v2565 = vmul.f32 %v2562, %v2564
        %v2566 = vadd.f32 %v2562, %v2565
        %vm2567 = vweird.f32 %v2558
        %vm2568 = vweird.f32 %v2562
        %vm2569 = vmor %vm2567, %vm2568
        %v2570 = vsel %vm2569, %v2562, %v2566
        %v2571 = vand.u32 2147483647, %v2558
        %vm2572 = vcmp.eq.f32.partialorder %v2571, 8.507059e+37
        %v2573 = vand.u32 %v2558, 2147483648
        %v2574 = vor.u32 1.1754944e-38, %v2573
        %v2575 = vsel %vm2572, %v2574, %v2570
        %v2576 = vmul.f32 1.0, %v2575
        %v2577 = vrcp.pop %v2559
        %v2578 = vmul.f32 %v2559, %v2577
        %v2579 = vsub.f32 1.0, %v2578
        %v2580 = vmul.f32 %v2577, %v2579
        %v2581 = vadd.f32 %v2577, %v2580
        %vm2582 = vweird.f32 %v2559
        %vm2583 = vweird.f32 %v2577
        %vm2584 = vmor %vm2582, %vm2583
        %v2585 = vsel %vm2584, %v2577, %v2581
        %v2586 = vand.u32 2147483647, %v2559
        %vm2587 = vcmp.eq.f32.partialorder %v2586, 8.507059e+37
        %v2588 = vand.u32 %v2559, 2147483648
        %v2589 = vor.u32 1.1754944e-38, %v2588
        %v2590 = vsel %vm2587, %v2589, %v2585
        %v2591 = vmul.f32 1.0, %v2590
        %v2592 = vrcp.pop %v2560
        %v2593 = vmul.f32 %v2560, %v2592
        %v2594 = vsub.f32 1.0, %v2593
        %v2595 = vmul.f32 %v2592, %v2594
        %v2596 = vadd.f32 %v2592, %v2595
        %vm2597 = vweird.f32 %v2560
        %vm2598 = vweird.f32 %v2592
        %vm2599 = vmor %vm2597, %vm2598
        %v2600 = vsel %vm2599, %v2592, %v2596
        %v2601 = vand.u32 2147483647, %v2560
        %vm2602 = vcmp.eq.f32.partialorder %v2601, 8.507059e+37
        %v2603 = vand.u32 %v2560, 2147483648
        %v2604 = vor.u32 1.1754944e-38, %v2603
        %v2605 = vsel %vm2602, %v2604, %v2600
        %v2606 = vmul.f32 1.0, %v2605
        %v2607 = vrcp.pop %v2561
        %v2608 = vmul.f32 %v2561, %v2607
        %v2609 = vsub.f32 1.0, %v2608
        %v2610 = vmul.f32 %v2607, %v2609
        %v2611 = vadd.f32 %v2607, %v2610
        %vm2612 = vweird.f32 %v2561
        %vm2613 = vweird.f32 %v2607
        %vm2614 = vmor %vm2612, %vm2613
        %v2615 = vsel %vm2614, %v2607, %v2611
        %v2616 = vand.u32 2147483647, %v2561
        %vm2617 = vcmp.eq.f32.partialorder %v2616, 8.507059e+37
        %v2618 = vand.u32 %v2561, 2147483648
        %v2619 = vor.u32 1.1754944e-38, %v2618
        %v2620 = vsel %vm2617, %v2619, %v2615
        %v2621 = vmul.f32 1.0, %v2620
        %v2622 = vmul.f32 %v1920, %v2143
        %v2623 = vmul.f32 %v1921, %v2158
        %v2624 = vmul.f32 %v1922, %v2173
        %v2625 = vmul.f32 %v1923, %v2188
        %v2626 = vmul.f32 %v1924, %v2203
        %v2627 = vmul.f32 %v1925, %v2218
        %v2628 = vmul.f32 %v1926, %v2233
        %v2629 = vmul.f32 %v1927, %v2248
        %v2630 = vperm.slane %v2576, 0
        %v2631 = vperm.slane %v2591, 0
        %v2632 = vperm.slane %v2606, 0
        %v2633 = vperm.slane %v2621, 0
        %v2634 = vmul.f32 %v2622, %v2630
        %v2635 = vmul.f32 %v2623, %v2631
        %v2636 = vmul.f32 %v2624, %v2632
        %v2637 = vmul.f32 %v2625, %v2633
        %v2638 = vmul.f32 %v2626, %v2630
        %v2639 = vmul.f32 %v2627, %v2631
        %v2640 = vmul.f32 %v2628, %v2632
        %v2641 = vmul.f32 %v2629, %v2633
        %v2642 = vld [vmem:[#allocation4] sm:$0xff]
        %v2643 = vld [vmem:[#allocation4 + $0x8] sm:$0xff]
        %v2644 = vld [vmem:[#allocation4 + $0x10] sm:$0xff]
        %v2645 = vld [vmem:[#allocation4 + $0x18] sm:$0xff]
        %v2646 = vld [vmem:[#allocation4 + $0x20] sm:$0xff]
        %v2647 = vld [vmem:[#allocation4 + $0x28] sm:$0xff]
        %v2648 = vld [vmem:[#allocation4 + $0x30] sm:$0xff]
        %v2649 = vld [vmem:[#allocation4 + $0x38] sm:$0xff]
        %v2650 = vld [vmem:[#allocation4 + $0x40] sm:$0xff]
        %v2651 = vld [vmem:[#allocation4 + $0x48] sm:$0xff]
        %v2652 = vld [vmem:[#allocation4 + $0x50] sm:$0xff]
        %v2653 = vld [vmem:[#allocation4 + $0x58] sm:$0xff]
        %v2654 = vld [vmem:[#allocation4 + $0x60] sm:$0xff]
        %v2655 = vld [vmem:[#allocation4 + $0x68] sm:$0xff]
        %v2656 = vld [vmem:[#allocation4 + $0x70] sm:$0xff]
        %v2657 = vld [vmem:[#allocation4 + $0x78] sm:$0xff]
        %v2658 = vld [vmem:[#allocation4 + $0x80] sm:$0xff]
        %v2659 = vld [vmem:[#allocation4 + $0x88] sm:$0xff]
        %v2660 = vld [vmem:[#allocation4 + $0x90] sm:$0xff]
        %v2661 = vld [vmem:[#allocation4 + $0x98] sm:$0xff]
        %v2662 = vld [vmem:[#allocation4 + $0xa0] sm:$0xff]
        %v2663 = vld [vmem:[#allocation4 + $0xa8] sm:$0xff]
        %v2664 = vld [vmem:[#allocation4 + $0xb0] sm:$0xff]
        %v2665 = vld [vmem:[#allocation4 + $0xb8] sm:$0xff]
        %v2666 = vld [vmem:[#allocation4 + $0xc0] sm:$0xff]
        %v2667 = vld [vmem:[#allocation4 + $0xc8] sm:$0xff]
        %v2668 = vld [vmem:[#allocation4 + $0xd0] sm:$0xff]
        %v2669 = vld [vmem:[#allocation4 + $0xd8] sm:$0xff]
        %v2670 = vld [vmem:[#allocation4 + $0xe0] sm:$0xff]
        %v2671 = vld [vmem:[#allocation4 + $0xe8] sm:$0xff]
        %v2672 = vld [vmem:[#allocation4 + $0xf0] sm:$0xff]
        %v2673 = vld [vmem:[#allocation4 + $0xf8] sm:$0xff]
        %v2674 = vld [vmem:[#allocation4 + $0x100] sm:$0xff]
        %v2675 = vld [vmem:[#allocation4 + $0x108] sm:$0xff]
        %v2676 = vld [vmem:[#allocation4 + $0x110] sm:$0xff]
        %v2677 = vld [vmem:[#allocation4 + $0x118] sm:$0xff]
        %v2678 = vld [vmem:[#allocation4 + $0x120] sm:$0xff]
        %v2679 = vld [vmem:[#allocation4 + $0x128] sm:$0xff]
        %v2680 = vld [vmem:[#allocation4 + $0x130] sm:$0xff]
        %v2681 = vld [vmem:[#allocation4 + $0x138] sm:$0xff]
        %v2682 = vld [vmem:[#allocation4 + $0x140] sm:$0xff]
        %v2683 = vld [vmem:[#allocation4 + $0x148] sm:$0xff]
        %v2684 = vld [vmem:[#allocation4 + $0x150] sm:$0xff]
        %v2685 = vld [vmem:[#allocation4 + $0x158] sm:$0xff]
        %v2686 = vld [vmem:[#allocation4 + $0x160] sm:$0xff]
        %v2687 = vld [vmem:[#allocation4 + $0x168] sm:$0xff]
        %v2688 = vld [vmem:[#allocation4 + $0x170] sm:$0xff]
        %v2689 = vld [vmem:[#allocation4 + $0x178] sm:$0xff]
        %v2690 = vld [vmem:[#allocation4 + $0x180] sm:$0xff]
        %v2691 = vld [vmem:[#allocation4 + $0x188] sm:$0xff]
        %v2692 = vld [vmem:[#allocation4 + $0x190] sm:$0xff]
        %v2693 = vld [vmem:[#allocation4 + $0x198] sm:$0xff]
        %v2694 = vld [vmem:[#allocation4 + $0x1a0] sm:$0xff]
        %v2695 = vld [vmem:[#allocation4 + $0x1a8] sm:$0xff]
        %v2696 = vld [vmem:[#allocation4 + $0x1b0] sm:$0xff]
        %v2697 = vld [vmem:[#allocation4 + $0x1b8] sm:$0xff]
        %v2698 = vld [vmem:[#allocation4 + $0x1c0] sm:$0xff]
        %v2699 = vld [vmem:[#allocation4 + $0x1c8] sm:$0xff]
        %v2700 = vld [vmem:[#allocation4 + $0x1d0] sm:$0xff]
        %v2701 = vld [vmem:[#allocation4 + $0x1d8] sm:$0xff]
        %v2702 = vld [vmem:[#allocation4 + $0x1e0] sm:$0xff]
        %v2703 = vld [vmem:[#allocation4 + $0x1e8] sm:$0xff]
        %v2704 = vld [vmem:[#allocation4 + $0x1f0] sm:$0xff]
        %v2705 = vld [vmem:[#allocation4 + $0x1f8] sm:$0xff]
        %v2706 = vld [vmem:[#allocation4 + $0x200] sm:$0xff]
        %v2707 = vld [vmem:[#allocation4 + $0x208] sm:$0xff]
        %v2708 = vld [vmem:[#allocation4 + $0x210] sm:$0xff]
        %v2709 = vld [vmem:[#allocation4 + $0x218] sm:$0xff]
        %v2710 = vld [vmem:[#allocation4 + $0x220] sm:$0xff]
        %v2711 = vld [vmem:[#allocation4 + $0x228] sm:$0xff]
        %v2712 = vld [vmem:[#allocation4 + $0x230] sm:$0xff]
        %v2713 = vld [vmem:[#allocation4 + $0x238] sm:$0xff]
        %v2714 = vld [vmem:[#allocation4 + $0x240] sm:$0xff]
        %v2715 = vld [vmem:[#allocation4 + $0x248] sm:$0xff]
        %v2716 = vld [vmem:[#allocation4 + $0x250] sm:$0xff]
        %v2717 = vld [vmem:[#allocation4 + $0x258] sm:$0xff]
        %v2718 = vld [vmem:[#allocation4 + $0x260] sm:$0xff]
        %v2719 = vld [vmem:[#allocation4 + $0x268] sm:$0xff]
        %v2720 = vld [vmem:[#allocation4 + $0x270] sm:$0xff]
        %v2721 = vld [vmem:[#allocation4 + $0x278] sm:$0xff]
        %v2722 = vld [vmem:[#allocation4 + $0x280] sm:$0xff]
        %v2723 = vld [vmem:[#allocation4 + $0x288] sm:$0xff]
        %v2724 = vld [vmem:[#allocation4 + $0x290] sm:$0xff]
        %v2725 = vld [vmem:[#allocation4 + $0x298] sm:$0xff]
        %v2726 = vld [vmem:[#allocation4 + $0x2a0] sm:$0xff]
        %v2727 = vld [vmem:[#allocation4 + $0x2a8] sm:$0xff]
        %v2728 = vld [vmem:[#allocation4 + $0x2b0] sm:$0xff]
        %v2729 = vld [vmem:[#allocation4 + $0x2b8] sm:$0xff]
        %v2730 = vld [vmem:[#allocation4 + $0x2c0] sm:$0xff]
        %v2731 = vld [vmem:[#allocation4 + $0x2c8] sm:$0xff]
        %v2732 = vld [vmem:[#allocation4 + $0x2d0] sm:$0xff]
        %v2733 = vld [vmem:[#allocation4 + $0x2d8] sm:$0xff]
        %v2734 = vld [vmem:[#allocation4 + $0x2e0] sm:$0xff]
        %v2735 = vld [vmem:[#allocation4 + $0x2e8] sm:$0xff]
        %v2736 = vld [vmem:[#allocation4 + $0x2f0] sm:$0xff]
        %v2737 = vld [vmem:[#allocation4 + $0x2f8] sm:$0xff]
        %v2738 = vld [vmem:[#allocation4 + $0x300] sm:$0xff]
        %v2739 = vld [vmem:[#allocation4 + $0x308] sm:$0xff]
        %v2740 = vld [vmem:[#allocation4 + $0x310] sm:$0xff]
        %v2741 = vld [vmem:[#allocation4 + $0x318] sm:$0xff]
        %v2742 = vld [vmem:[#allocation4 + $0x320] sm:$0xff]
        %v2743 = vld [vmem:[#allocation4 + $0x328] sm:$0xff]
        %v2744 = vld [vmem:[#allocation4 + $0x330] sm:$0xff]
        %v2745 = vld [vmem:[#allocation4 + $0x338] sm:$0xff]
        %v2746 = vld [vmem:[#allocation4 + $0x340] sm:$0xff]
        %v2747 = vld [vmem:[#allocation4 + $0x348] sm:$0xff]
        %v2748 = vld [vmem:[#allocation4 + $0x350] sm:$0xff]
        %v2749 = vld [vmem:[#allocation4 + $0x358] sm:$0xff]
        %v2750 = vld [vmem:[#allocation4 + $0x360] sm:$0xff]
        %v2751 = vld [vmem:[#allocation4 + $0x368] sm:$0xff]
        %v2752 = vld [vmem:[#allocation4 + $0x370] sm:$0xff]
        %v2753 = vld [vmem:[#allocation4 + $0x378] sm:$0xff]
        %v2754 = vld [vmem:[#allocation4 + $0x380] sm:$0xff]
        %v2755 = vld [vmem:[#allocation4 + $0x388] sm:$0xff]
        %v2756 = vld [vmem:[#allocation4 + $0x390] sm:$0xff]
        %v2757 = vld [vmem:[#allocation4 + $0x398] sm:$0xff]
        %v2758 = vld [vmem:[#allocation4 + $0x3a0] sm:$0xff]
        %v2759 = vld [vmem:[#allocation4 + $0x3a8] sm:$0xff]
        %v2760 = vld [vmem:[#allocation4 + $0x3b0] sm:$0xff]
        %v2761 = vld [vmem:[#allocation4 + $0x3b8] sm:$0xff]
        %v2762 = vld [vmem:[#allocation4 + $0x3c0] sm:$0xff]
        %v2763 = vld [vmem:[#allocation4 + $0x3c8] sm:$0xff]
        %v2764 = vld [vmem:[#allocation4 + $0x3d0] sm:$0xff]
        %v2765 = vld [vmem:[#allocation4 + $0x3d8] sm:$0xff]
        %v2766 = vld [vmem:[#allocation4 + $0x3e0] sm:$0xff]
        %v2767 = vld [vmem:[#allocation4 + $0x3e8] sm:$0xff]
        %v2768 = vld [vmem:[#allocation4 + $0x3f0] sm:$0xff]
        %v2769 = vld [vmem:[#allocation4 + $0x3f8] sm:$0xff]
        %v2771 = vperm.slane %v332, 0
        %v2772 = vperm.slane %v332, 1
        %2775 = vmatpush.msra.mxu0 %v2672
        %2776 = vmatpush.msra.mxu0 %v2670
        %2777 = vmatpush.msra.mxu0 %v2668
        %2778 = vmatpush.msra.mxu0 %v2666
        %2779 = vmatpush.msra.mxu0 %v2664
        %2780 = vmatpush.msra.mxu0 %v2662
        %2781 = vmatpush.msra.mxu0 %v2660
        %2782 = vmatpush.msra.mxu0 %v2658
        %2783 = vmatpush.msra.mxu0 %v2656
        %2784 = vmatpush.msra.mxu0 %v2654
        %2785 = vmatpush.msra.mxu0 %v2652
        %2786 = vmatpush.msra.mxu0 %v2650
        %2787 = vmatpush.msra.mxu0 %v2648
        %2788 = vmatpush.msra.mxu0 %v2646
        %2789 = vmatpush.msra.mxu0 %v2644
        %2790 = vmatpush.msra.mxu0 %v2642
        %2791 = vmatmul.f32.gmra.mxu0 %v2634
        %v2792 = vpop.f32.mrf.mxu0
        %v2793 = vadd.f32 %v2771, %v2792
        %2794 = vmatmul.f32.gmra.mxu0 %v2638
        %v2795 = vpop.f32.mrf.mxu0
        %v2796 = vadd.f32 %v2771, %v2795
        %2797 = vdwg.mxu0
        %2798 = vmatpush.msra.mxu0 %v2704
        %2799 = vmatpush.msra.mxu0 %v2702
        %2800 = vmatpush.msra.mxu0 %v2700
        %2801 = vmatpush.msra.mxu0 %v2698
        %2802 = vmatpush.msra.mxu0 %v2696
        %2803 = vmatpush.msra.mxu0 %v2694
        %2804 = vmatpush.msra.mxu0 %v2692
        %2805 = vmatpush.msra.mxu0 %v2690
        %2806 = vmatpush.msra.mxu0 %v2688
        %2807 = vmatpush.msra.mxu0 %v2686
        %2808 = vmatpush.msra.mxu0 %v2684
        %2809 = vmatpush.msra.mxu0 %v2682
        %2810 = vmatpush.msra.mxu0 %v2680
        %2811 = vmatpush.msra.mxu0 %v2678
        %2812 = vmatpush.msra.mxu0 %v2676
        %2813 = vmatpush.msra.mxu0 %v2674
        %2814 = vmatmul.f32.gmra.mxu0 %v2635
        %v2815 = vpop.f32.mrf.mxu0
        %v2816 = vadd.f32 %v2793, %v2815
        %2817 = vmatmul.f32.gmra.mxu0 %v2639
        %v2818 = vpop.f32.mrf.mxu0
        %v2819 = vadd.f32 %v2796, %v2818
        %2820 = vdwg.mxu0
        %2821 = vmatpush.msra.mxu0 %v2736
        %2822 = vmatpush.msra.mxu0 %v2734
        %2823 = vmatpush.msra.mxu0 %v2732
        %2824 = vmatpush.msra.mxu0 %v2730
        %2825 = vmatpush.msra.mxu0 %v2728
        %2826 = vmatpush.msra.mxu0 %v2726
        %2827 = vmatpush.msra.mxu0 %v2724
        %2828 = vmatpush.msra.mxu0 %v2722
        %2829 = vmatpush.msra.mxu0 %v2720
        %2830 = vmatpush.msra.mxu0 %v2718
        %2831 = vmatpush.msra.mxu0 %v2716
        %2832 = vmatpush.msra.mxu0 %v2714
        %2833 = vmatpush.msra.mxu0 %v2712
        %2834 = vmatpush.msra.mxu0 %v2710
        %2835 = vmatpush.msra.mxu0 %v2708
        %2836 = vmatpush.msra.mxu0 %v2706
        %2837 = vmatmul.f32.gmra.mxu0 %v2636
        %v2838 = vpop.f32.mrf.mxu0
        %v2839 = vadd.f32 %v2816, %v2838
        %2840 = vmatmul.f32.gmra.mxu0 %v2640
        %v2841 = vpop.f32.mrf.mxu0
        %v2842 = vadd.f32 %v2819, %v2841
        %2843 = vdwg.mxu0
        %2844 = vmatpush.msra.mxu0 %v2768
        %2845 = vmatpush.msra.mxu0 %v2766
        %2846 = vmatpush.msra.mxu0 %v2764
        %2847 = vmatpush.msra.mxu0 %v2762
        %2848 = vmatpush.msra.mxu0 %v2760
        %2849 = vmatpush.msra.mxu0 %v2758
        %2850 = vmatpush.msra.mxu0 %v2756
        %2851 = vmatpush.msra.mxu0 %v2754
        %2852 = vmatpush.msra.mxu0 %v2752
        %2853 = vmatpush.msra.mxu0 %v2750
        %2854 = vmatpush.msra.mxu0 %v2748
        %2855 = vmatpush.msra.mxu0 %v2746
        %2856 = vmatpush.msra.mxu0 %v2744
        %2857 = vmatpush.msra.mxu0 %v2742
        %2858 = vmatpush.msra.mxu0 %v2740
        %2859 = vmatpush.msra.mxu0 %v2738
        %2860 = vmatmul.f32.gmra.mxu0 %v2637
        %v2861 = vpop.f32.mrf.mxu0
        %v2862 = vadd.f32 %v2839, %v2861
        %2863 = vmatmul.f32.gmra.mxu0 %v2641
        %v2864 = vpop.f32.mrf.mxu0
        %v2865 = vadd.f32 %v2842, %v2864
        %2866 = vdwg.mxu0
        %2867 = vmatpush.msra.mxu0 %v2673
        %2868 = vmatpush.msra.mxu0 %v2671
        %2869 = vmatpush.msra.mxu0 %v2669
        %2870 = vmatpush.msra.mxu0 %v2667
        %2871 = vmatpush.msra.mxu0 %v2665
        %2872 = vmatpush.msra.mxu0 %v2663
        %2873 = vmatpush.msra.mxu0 %v2661
        %2874 = vmatpush.msra.mxu0 %v2659
        %2875 = vmatpush.msra.mxu0 %v2657
        %2876 = vmatpush.msra.mxu0 %v2655
        %2877 = vmatpush.msra.mxu0 %v2653
        %2878 = vmatpush.msra.mxu0 %v2651
        %2879 = vmatpush.msra.mxu0 %v2649
        %2880 = vmatpush.msra.mxu0 %v2647
        %2881 = vmatpush.msra.mxu0 %v2645
        %2882 = vmatpush.msra.mxu0 %v2643
        %2883 = vmatmul.f32.gmra.mxu0 %v2634
        %v2884 = vpop.f32.mrf.mxu0
        %v2885 = vadd.f32 %v2772, %v2884
        %2886 = vmatmul.f32.gmra.mxu0 %v2638
        %v2887 = vpop.f32.mrf.mxu0
        %v2888 = vadd.f32 %v2772, %v2887
        %2889 = vdwg.mxu0
        %2890 = vmatpush.msra.mxu0 %v2705
        %2891 = vmatpush.msra.mxu0 %v2703
        %2892 = vmatpush.msra.mxu0 %v2701
        %2893 = vmatpush.msra.mxu0 %v2699
        %2894 = vmatpush.msra.mxu0 %v2697
        %2895 = vmatpush.msra.mxu0 %v2695
        %2896 = vmatpush.msra.mxu0 %v2693
        %2897 = vmatpush.msra.mxu0 %v2691
        %2898 = vmatpush.msra.mxu0 %v2689
        %2899 = vmatpush.msra.mxu0 %v2687
        %2900 = vmatpush.msra.mxu0 %v2685
        %2901 = vmatpush.msra.mxu0 %v2683
        %2902 = vmatpush.msra.mxu0 %v2681
        %2903 = vmatpush.msra.mxu0 %v2679
        %2904 = vmatpush.msra.mxu0 %v2677
        %2905 = vmatpush.msra.mxu0 %v2675
        %2906 = vmatmul.f32.gmra.mxu0 %v2635
        %v2907 = vpop.f32.mrf.mxu0
        %v2908 = vadd.f32 %v2885, %v2907
        %2909 = vmatmul.f32.gmra.mxu0 %v2639
        %v2910 = vpop.f32.mrf.mxu0
        %v2911 = vadd.f32 %v2888, %v2910
        %2912 = vdwg.mxu0
        %2913 = vmatpush.msra.mxu0 %v2737
        %2914 = vmatpush.msra.mxu0 %v2735
        %2915 = vmatpush.msra.mxu0 %v2733
        %2916 = vmatpush.msra.mxu0 %v2731
        %2917 = vmatpush.msra.mxu0 %v2729
        %2918 = vmatpush.msra.mxu0 %v2727
        %2919 = vmatpush.msra.mxu0 %v2725
        %2920 = vmatpush.msra.mxu0 %v2723
        %2921 = vmatpush.msra.mxu0 %v2721
        %2922 = vmatpush.msra.mxu0 %v2719
        %2923 = vmatpush.msra.mxu0 %v2717
        %2924 = vmatpush.msra.mxu0 %v2715
        %2925 = vmatpush.msra.mxu0 %v2713
        %2926 = vmatpush.msra.mxu0 %v2711
        %2927 = vmatpush.msra.mxu0 %v2709
        %2928 = vmatpush.msra.mxu0 %v2707
        %2929 = vmatmul.f32.gmra.mxu0 %v2636
        %v2930 = vpop.f32.mrf.mxu0
        %v2931 = vadd.f32 %v2908, %v2930
        %2932 = vmatmul.f32.gmra.mxu0 %v2640
        %v2933 = vpop.f32.mrf.mxu0
        %v2934 = vadd.f32 %v2911, %v2933
        %2935 = vdwg.mxu0
        %2936 = vmatpush.msra.mxu0 %v2769
        %2937 = vmatpush.msra.mxu0 %v2767
        %2938 = vmatpush.msra.mxu0 %v2765
        %2939 = vmatpush.msra.mxu0 %v2763
        %2940 = vmatpush.msra.mxu0 %v2761
        %2941 = vmatpush.msra.mxu0 %v2759
        %2942 = vmatpush.msra.mxu0 %v2757
        %2943 = vmatpush.msra.mxu0 %v2755
        %2944 = vmatpush.msra.mxu0 %v2753
        %2945 = vmatpush.msra.mxu0 %v2751
        %2946 = vmatpush.msra.mxu0 %v2749
        %2947 = vmatpush.msra.mxu0 %v2747
        %2948 = vmatpush.msra.mxu0 %v2745
        %2949 = vmatpush.msra.mxu0 %v2743
        %2950 = vmatpush.msra.mxu0 %v2741
        %2951 = vmatpush.msra.mxu0 %v2739
        %2952 = vmatmul.f32.gmra.mxu0 %v2637
        %v2953 = vpop.f32.mrf.mxu0
        %v2954 = vadd.f32 %v2931, %v2953
        %2955 = vmatmul.f32.gmra.mxu0 %v2641
        %v2956 = vpop.f32.mrf.mxu0
        %v2957 = vadd.f32 %v2934, %v2956
        %2958 = vdwg.mxu0
        %v2959 = vadd.f32 %v2862, %v353
        %v2960 = vadd.f32 %v2954, %v354
        %v2961 = vadd.f32 %v2865, %v355
        %v2962 = vadd.f32 %v2957, %v356
        %2963 = vst [vmem:[%s318] sm:$0xff] %v2959
        %2964 = vst [vmem:[%s318 + $0x8] sm:$0xff] %v2960
        %2965 = vst [vmem:[%s318 + $0x10] sm:$0xff] %v2961
        %2966 = vst [vmem:[%s318 + $0x18] sm:$0xff] %v2962
        %p2967 = scmp.lt.s32.totalorder %s20, 1
        %s2968 = scalar_select %p2967, %s20, 1
        %s2969 = smul.addr %s2968, 4
        %s2970 = smul.addr %s2969, 8
        %s2971 = scalar_lea.vmem %s6, %s2970
        // Predicated region
        $region61: #{block_forward.1} parent=43 // pred_check
          %p2972 = pneg %p169
        $region62: #{block_forward.1} parent=43 // pred_check_branch
          %2974 = sbr.rel (%p2972) target = $region64
        $region63: #{block_forward.1} parent=43 // pred_region
          _
        $region64: #{block_forward.1} parent=43 // pred_fallthru
          _
      $region44: #{block_forward.1} parent=5 // pred_fallthru
        _
      %p2975 = scmp.le.s32.totalorder 2, %s15
      // Predicated region
      $region65: #{block_forward.1} parent=5 // pred_check
        %p2976 = pneg %p2975
      $region66: #{block_forward.1} parent=5 // pred_check_branch
        %2978 = sbr.rel (%p2976) target = $region68
      $region67: #{block_forward.1} parent=5 // pred_region
        %s2979 = ssub.s32 %s15, 2
        // Predicated region
        $region69: #{block_forward.1} parent=67 // pred_check
          %p2980 = pneg %p175
        $region70: #{block_forward.1} parent=67 // pred_check_branch
          %2982 = sbr.rel (%p2980) target = $region72
        $region71: #{block_forward.1} parent=67 // pred_region
          %p2983 = scmp.lt.s32.totalorder %s21, 1
          %s2984 = scalar_select %p2983, %s21, 1
          %s2985 = smul.addr %s2984, 4
          %s2986 = smul.addr %s2985, 8
          %s2987 = scalar_lea.vmem %s6, %s2986
        $region72: #{block_forward.1} parent=67 // pred_fallthru
          _
      $region68: #{block_forward.1} parent=5 // pred_fallthru
        _
    $region6: #{block_forward.1} parent=1 // loop_footer
      %s19 = sadd.s32 1, %s15
    $region7: #{block_forward.1} parent=1 // loop_footer_branch
      %14 = sbr.rel target = $region3
    $region8: #{block_forward.1} parent=1 // loop_exit
      _
    %2988 = vsyncpa [#allocation3], 1
    %s2989 = scalar_lea.sflag [#allocation3], 1
    %2990 = vsyncpa %s2989, 1
    %2991 = vsyncpa [#allocation5], 1
    %2992 = vsyncpa [#allocation8], 1

</llo_original>
